<compile_context>
chip_gen: v7x
topology: tpu7x:2x2x1
jax: 0.10.0
libtpu: 0.0.40
codegen_flags: <defaults>
</compile_context>

<pallas_src>
import functools

import jax
import jax.numpy as jnp
import numpy as np
from jax import lax
from jax.experimental import pallas as pl
from jax.experimental.pallas import tpu as pltpu


def afg_kernel(xp_ref, wtap_ref, wcaf_ref, bias_ref, out_ref, *, W, TH, C, CKK):
    # xp_ref  : (H+2, W+2, C) bf16  zero-padded NHWC input (one batch element)
    # wtap_ref: (9, CKK, C)   bf16  per-tap folded weights  (w1^T * wsa[tap])
    # wcaf_ref: (CKK, C)      f32   (band @ w1)^T / (H*W)
    # bias_ref: (CKK, 1)      f32   ((bsa + bca) @ w1 + b1)^T
    # out_ref : (CKK, TH*W)   f32   transposed output tile (channels-major)
    si = pl.program_id(1)
    row0 = si * TH

    # ---- channel-attention bias column -------------------------------------
    # Global average pool over the FULL padded tile (zero pad adds nothing),
    # then fold through (band @ w1)^T with a cheap VPU mul + lane reduction.
    xp_full = xp_ref[...].astype(jnp.float32)                 # (Hp, Wp, C)
    ysum = jnp.sum(xp_full, axis=(0, 1))                      # (C,)
    bias_col = (jnp.sum(wcaf_ref[...] * ysum, axis=1, keepdims=True)
                + bias_ref[...])                              # (CKK, 1)

    # ---- depthwise 3x3 + 1x1 expand, fused on the MXU ----------------------
    # out^T[o, s] = sum_tap sum_c Wt[o, c] * x[h+dy, w+dx, c]
    acc = jnp.zeros((CKK, TH * W), jnp.float32)
    for t in range(9):
        dy, dx = t // 3, t % 3
        xs = xp_ref[pl.ds(row0 + dy, TH), pl.ds(dx, W), :]    # (TH, W, C) bf16
        xs = xs.reshape(TH * W, C)
        acc = acc + lax.dot_general(
            wtap_ref[t], xs,
            dimension_numbers=(((1,), (1,)), ((), ())),       # contract over C
            preferred_element_type=jnp.float32)

    out_ref[...] = (acc + bias_col).astype(out_ref.dtype)


def _pick_row_tile(h, w, target_rows=1024):
    """Largest divisor th of h with (th*w) % 128 == 0 and th*w <= target."""
    best = h
    for th in range(1, h):
        if h % th == 0 and (th * w) % 128 == 0 and th * w <= target_rows:
            best = th
    return best


def afg_forward(x_nchw, params, kernel_size=3, row_tile=None):
    """Pallas AFG forward. Returns (b, c, k*k, h, w), matching PyTorch."""
    wsa_pt, bsa, wca, bca, w1_pt, b1 = params
    b, c, h, w = x_nchw.shape
    kk = kernel_size * kernel_size
    ckk = c * kk

    th = _pick_row_tile(h, w) if row_tile is None else row_tile
    if h % th != 0 or (th != h and (th * w) % 128 != 0):
        th = h
    n_sp = h // th
    thw = th * w
    hp, wp = h + 2, w + 2

    # ---- one-time weight folding (tiny XLA ops) -----------------------------
    w1_t = w1_pt[:, :, 0, 0].astype(jnp.float32)                  # (ckk, c)
    wsa_flat = wsa_pt[:, 0, :, :].reshape(c, 9).T                 # (9, c), t=dy*3+dx
    w_taps = (w1_t[None, :, :] * wsa_flat[:, None, :]).astype(jnp.bfloat16)

    wv = wca[0, 0]                                                # (3,)
    ii = jnp.arange(c)[:, None]
    jj = jnp.arange(c)[None, :]
    band = (jnp.where(ii == jj - 1, wv[0], 0.0)
            + jnp.where(ii == jj, wv[1], 0.0)
            + jnp.where(ii == jj + 1, wv[2], 0.0)).astype(jnp.float32)
    wca_fold_t = ((w1_t @ band.T) / float(h * w)).astype(jnp.float32)   # (ckk, c)
    bias_const = (w1_t @ (bsa + bca[0]) + b1).reshape(ckk, 1)
    bias_const = bias_const.astype(jnp.float32)                         # (ckk, 1)

    # ---- input: NCHW -> padded NHWC bf16 (single fused pass over input) -----
    x_nhwc = jnp.transpose(x_nchw, (0, 2, 3, 1))
    xp = jnp.pad(x_nhwc, ((0, 0), (1, 1), (1, 1), (0, 0))).astype(jnp.bfloat16)

    kern = functools.partial(afg_kernel, W=w, TH=th, C=c, CKK=ckk)
    out = pl.pallas_call(
        kern,
        out_shape=jax.ShapeDtypeStruct((b, ckk, h * w), jnp.float32),
        grid_spec=pltpu.PrefetchScalarGridSpec(
            num_scalar_prefetch=0,
            grid=(b, n_sp),
            in_specs=[
                pl.BlockSpec((None, hp, wp, c), lambda bi, si: (bi, 0, 0, 0)),
                pl.BlockSpec((9, ckk, c), lambda bi, si: (0, 0, 0)),
                pl.BlockSpec((ckk, c), lambda bi, si: (0, 0)),
                pl.BlockSpec((ckk, 1), lambda bi, si: (0, 0)),
            ],
            out_specs=pl.BlockSpec((None, ckk, thw), lambda bi, si: (bi, 0, si)),
        ),
        compiler_params=pltpu.CompilerParams(
            dimension_semantics=("parallel", "parallel")),
    )(xp, w_taps, wca_fold_t, bias_const)

    # (b, c*kk, h*w) -> (b, c, kk, h, w): pure dim split, no HBM transpose.
    return out.reshape(b, c, kk, h, w)


def afg_ref(x_nchw, params, kernel_size=3):
    """Pure-JAX f32 reference mirroring the PyTorch module (NCHW)."""
    wsa_pt, bsa, wca, bca, w1_pt, b1 = params
    b, c, h, w = x_nchw.shape
    kk = kernel_size * kernel_size
    sa = jax.lax.conv_general_dilated(
        x_nchw, wsa_pt, window_strides=(1, 1), padding=((1, 1), (1, 1)),
        dimension_numbers=('NCHW', 'OIHW', 'NCHW'), feature_group_count=c)
    sa = sa + bsa.reshape(1, c, 1, 1)
    y = jnp.mean(x_nchw, axis=(2, 3))                    # (b, c)
    yp = jnp.pad(y, ((0, 0), (1, 1)))
    wv = wca[0, 0]
    ca = wv[0] * yp[:, :c] + wv[1] * yp[:, 1:c + 1] + wv[2] * yp[:, 2:c + 2]
    ca = ca + bca[0]
    sek = sa + ca.reshape(b, c, 1, 1)
    z = jax.lax.conv_general_dilated(
        sek, w1_pt, (1, 1), ((0, 0), (0, 0)),
        dimension_numbers=('NCHW', 'OIHW', 'NCHW'))
    z = z + b1.reshape(1, c * kk, 1, 1)
    return z.reshape(b, c, kk, h, w)


if __name__ == "__main__":
    b, c, h, w = 2, 32, 16, 16
    ks = 3
    kk = ks * ks

    key = jax.random.PRNGKey(0)
    keys = jax.random.split(key, 7)
    x = jax.random.normal(keys[0], (b, c, h, w), jnp.float32)

    # Deterministic parameter init (PyTorch-default-like uniform bounds).
    bound_sa = 1.0 / 3.0                      # fan_in = 1*3*3 (depthwise)
    wsa_pt = jax.random.uniform(keys[1], (c, 1, 3, 3), jnp.float32,
                                -bound_sa, bound_sa)
    bsa = jax.random.uniform(keys[2], (c,), jnp.float32, -bound_sa, bound_sa)
    bound_ca = 1.0 / float(np.sqrt(3.0))      # fan_in = 1*3
    wca = jax.random.uniform(keys[3], (1, 1, 3), jnp.float32,
                             -bound_ca, bound_ca)
    bca = jax.random.uniform(keys[4], (1,), jnp.float32, -bound_ca, bound_ca)
    bound_1 = 1.0 / float(np.sqrt(c))         # fan_in = c*1*1
    w1_pt = jax.random.uniform(keys[5], (c * kk, c, 1, 1), jnp.float32,
                               -bound_1, bound_1)
    b1 = jax.random.uniform(keys[6], (c * kk,), jnp.float32,
                            -bound_1, bound_1)
    params = (wsa_pt, bsa, wca, bca, w1_pt, b1)

    # row_tile=8 -> 2 spatial tiles per batch element, TH*W = 128 lanes/tile.
    out = afg_forward(x, params, ks, row_tile=8)
    out = jax.block_until_ready(out)
    assert out.shape == (b, c, kk, h, w)

    ref = afg_ref(x, params, ks)
    # bf16 MXU inputs (f32 accumulation) -> slightly looser tolerance than f32.
    np.testing.assert_allclose(np.asarray(out), np.asarray(ref),
                               rtol=2e-2, atol=2e-2)
    print("KERNEL_OK")
</pallas_src>

<mosaic_0001>
module attributes {stable_mosaic.version = 11 : i64} {
  func.func @afg_kernel(%arg0: i32, %arg1: i32, %arg2: memref<1x18x18x32xbf16, #tpu.memory_space<vmem>>, %arg3: memref<9x288x32xbf16, #tpu.memory_space<vmem>>, %arg4: memref<288x32xf32, #tpu.memory_space<vmem>>, %arg5: memref<288x1xf32, #tpu.memory_space<vmem>>, %arg6: memref<1x288x128xf32, #tpu.memory_space<vmem>>) attributes {dimension_semantics = [#tpu.dimension_semantics<parallel>, #tpu.dimension_semantics<parallel>], iteration_bounds = array<i64: 2, 2>, scalar_prefetch = 0 : i64, scratch_operands = 0 : i64, tpu.core_type = #tpu.core_type<tc>, window_params = [{transform_indices = @transform_0, window_bounds = array<i64: 1, 18, 18, 32>}, {pipeline_mode = #tpu.pipeline_mode<synchronous>, transform_indices = @transform_1, window_bounds = array<i64: 9, 288, 32>}, {pipeline_mode = #tpu.pipeline_mode<synchronous>, transform_indices = @transform_2, window_bounds = array<i64: 288, 32>}, {pipeline_mode = #tpu.pipeline_mode<synchronous>, transform_indices = @transform_3, window_bounds = array<i64: 288, 1>}, {transform_indices = @transform_4, window_bounds = array<i64: 1, 288, 128>}]} {
    %c8_i32 = arith.constant 8 : i32
    %0 = arith.muli %arg1, %c8_i32 : i32
    %c0 = arith.constant 0 : index
    %c0_0 = arith.constant 0 : index
    %c0_1 = arith.constant 0 : index
    %c0_2 = arith.constant 0 : index
    %1 = vector.load %arg2[%c0, %c0_0, %c0_1, %c0_2] : memref<1x18x18x32xbf16, #tpu.memory_space<vmem>>, vector<1x18x18x32xbf16>
    %2 = vector.shape_cast %1 : vector<1x18x18x32xbf16> to vector<18x18x32xbf16>
    %3 = arith.extf %2 : vector<18x18x32xbf16> to vector<18x18x32xf32>
    %cst = arith.constant dense<0.000000e+00> : vector<32xf32>
    %4 = vector.multi_reduction <add>, %3, %cst [0, 1] : vector<18x18x32xf32> to vector<32xf32>
    %c0_3 = arith.constant 0 : index
    %c0_4 = arith.constant 0 : index
    %5 = vector.load %arg4[%c0_3, %c0_4] : memref<288x32xf32, #tpu.memory_space<vmem>>, vector<288x32xf32>
    %6 = vector.shape_cast %4 : vector<32xf32> to vector<1x32xf32>
    %7 = vector.broadcast %6 : vector<1x32xf32> to vector<288x32xf32>
    %8 = arith.mulf %5, %7 : vector<288x32xf32>
    %cst_5 = arith.constant dense<0.000000e+00> : vector<288xf32>
    %9 = vector.multi_reduction <add>, %8, %cst_5 [1] : vector<288x32xf32> to vector<288xf32>
    %10 = vector.shape_cast %9 : vector<288xf32> to vector<288x1xf32>
    %c0_6 = arith.constant 0 : index
    %c0_7 = arith.constant 0 : index
    %11 = vector.load %arg5[%c0_6, %c0_7] : memref<288x1xf32, #tpu.memory_space<vmem>>, vector<288x1xf32>
    %12 = arith.addf %10, %11 : vector<288x1xf32>
    %cst_8 = arith.constant 0.000000e+00 : f32
    %13 = vector.broadcast %cst_8 : f32 to vector<288x128xf32>
    %c0_i32 = arith.constant 0 : i32
    %14 = arith.addi %0, %c0_i32 : i32
    %c0_9 = arith.constant 0 : index
    %15 = arith.index_cast %14 : i32 to index
    %c0_10 = arith.constant 0 : index
    %c0_11 = arith.constant 0 : index
    %16 = vector.load %arg2[%c0_9, %15, %c0_10, %c0_11] : memref<1x18x18x32xbf16, #tpu.memory_space<vmem>>, vector<1x8x16x32xbf16>
    %17 = vector.shape_cast %16 : vector<1x8x16x32xbf16> to vector<8x16x32xbf16>
    %18 = vector.shape_cast %17 : vector<8x16x32xbf16> to vector<128x32xbf16>
    %c0_12 = arith.constant 0 : index
    %c0_13 = arith.constant 0 : index
    %c0_14 = arith.constant 0 : index
    %19 = vector.load %arg3[%c0_12, %c0_13, %c0_14] : memref<9x288x32xbf16, #tpu.memory_space<vmem>>, vector<1x288x32xbf16>
    %20 = vector.shape_cast %19 : vector<1x288x32xbf16> to vector<288x32xbf16>
    %cst_15 = arith.constant dense<0.000000e+00> : vector<288x128xf32>
    %21 = tpu.matmul %20, %18, %cst_15 {dimension_numbers = #tpu.dot_dimension_numbers<[1], [1], [0], [0], [0, 0, 1, 0], [], []>} : vector<288x32xbf16>, vector<128x32xbf16>, vector<288x128xf32> -> vector<288x128xf32>
    %22 = arith.addf %13, %21 : vector<288x128xf32>
    %c0_i32_16 = arith.constant 0 : i32
    %23 = arith.addi %0, %c0_i32_16 : i32
    %c0_17 = arith.constant 0 : index
    %24 = arith.index_cast %23 : i32 to index
    %c1 = arith.constant 1 : index
    %c0_18 = arith.constant 0 : index
    %25 = vector.load %arg2[%c0_17, %24, %c1, %c0_18] : memref<1x18x18x32xbf16, #tpu.memory_space<vmem>>, vector<1x8x16x32xbf16>
    %26 = vector.shape_cast %25 : vector<1x8x16x32xbf16> to vector<8x16x32xbf16>
    %27 = vector.shape_cast %26 : vector<8x16x32xbf16> to vector<128x32xbf16>
    %c1_19 = arith.constant 1 : index
    %c0_20 = arith.constant 0 : index
    %c0_21 = arith.constant 0 : index
    %28 = vector.load %arg3[%c1_19, %c0_20, %c0_21] : memref<9x288x32xbf16, #tpu.memory_space<vmem>>, vector<1x288x32xbf16>
    %29 = vector.shape_cast %28 : vector<1x288x32xbf16> to vector<288x32xbf16>
    %cst_22 = arith.constant dense<0.000000e+00> : vector<288x128xf32>
    %30 = tpu.matmul %29, %27, %cst_22 {dimension_numbers = #tpu.dot_dimension_numbers<[1], [1], [0], [0], [0, 0, 1, 0], [], []>} : vector<288x32xbf16>, vector<128x32xbf16>, vector<288x128xf32> -> vector<288x128xf32>
    %31 = arith.addf %22, %30 : vector<288x128xf32>
    %c0_i32_23 = arith.constant 0 : i32
    %32 = arith.addi %0, %c0_i32_23 : i32
    %c0_24 = arith.constant 0 : index
    %33 = arith.index_cast %32 : i32 to index
    %c2 = arith.constant 2 : index
    %c0_25 = arith.constant 0 : index
    %34 = vector.load %arg2[%c0_24, %33, %c2, %c0_25] : memref<1x18x18x32xbf16, #tpu.memory_space<vmem>>, vector<1x8x16x32xbf16>
    %35 = vector.shape_cast %34 : vector<1x8x16x32xbf16> to vector<8x16x32xbf16>
    %36 = vector.shape_cast %35 : vector<8x16x32xbf16> to vector<128x32xbf16>
    %c2_26 = arith.constant 2 : index
    %c0_27 = arith.constant 0 : index
    %c0_28 = arith.constant 0 : index
    %37 = vector.load %arg3[%c2_26, %c0_27, %c0_28] : memref<9x288x32xbf16, #tpu.memory_space<vmem>>, vector<1x288x32xbf16>
    %38 = vector.shape_cast %37 : vector<1x288x32xbf16> to vector<288x32xbf16>
    %cst_29 = arith.constant dense<0.000000e+00> : vector<288x128xf32>
    %39 = tpu.matmul %38, %36, %cst_29 {dimension_numbers = #tpu.dot_dimension_numbers<[1], [1], [0], [0], [0, 0, 1, 0], [], []>} : vector<288x32xbf16>, vector<128x32xbf16>, vector<288x128xf32> -> vector<288x128xf32>
    %40 = arith.addf %31, %39 : vector<288x128xf32>
    %c1_i32 = arith.constant 1 : i32
    %41 = arith.addi %0, %c1_i32 : i32
    %c0_30 = arith.constant 0 : index
    %42 = arith.index_cast %41 : i32 to index
    %c0_31 = arith.constant 0 : index
    %c0_32 = arith.constant 0 : index
    %43 = vector.load %arg2[%c0_30, %42, %c0_31, %c0_32] : memref<1x18x18x32xbf16, #tpu.memory_space<vmem>>, vector<1x8x16x32xbf16>
    %44 = vector.shape_cast %43 : vector<1x8x16x32xbf16> to vector<8x16x32xbf16>
    %45 = vector.shape_cast %44 : vector<8x16x32xbf16> to vector<128x32xbf16>
    %c3 = arith.constant 3 : index
    %c0_33 = arith.constant 0 : index
    %c0_34 = arith.constant 0 : index
    %46 = vector.load %arg3[%c3, %c0_33, %c0_34] : memref<9x288x32xbf16, #tpu.memory_space<vmem>>, vector<1x288x32xbf16>
    %47 = vector.shape_cast %46 : vector<1x288x32xbf16> to vector<288x32xbf16>
    %cst_35 = arith.constant dense<0.000000e+00> : vector<288x128xf32>
    %48 = tpu.matmul %47, %45, %cst_35 {dimension_numbers = #tpu.dot_dimension_numbers<[1], [1], [0], [0], [0, 0, 1, 0], [], []>} : vector<288x32xbf16>, vector<128x32xbf16>, vector<288x128xf32> -> vector<288x128xf32>
    %49 = arith.addf %40, %48 : vector<288x128xf32>
    %c1_i32_36 = arith.constant 1 : i32
    %50 = arith.addi %0, %c1_i32_36 : i32
    %c0_37 = arith.constant 0 : index
    %51 = arith.index_cast %50 : i32 to index
    %c1_38 = arith.constant 1 : index
    %c0_39 = arith.constant 0 : index
    %52 = vector.load %arg2[%c0_37, %51, %c1_38, %c0_39] : memref<1x18x18x32xbf16, #tpu.memory_space<vmem>>, vector<1x8x16x32xbf16>
    %53 = vector.shape_cast %52 : vector<1x8x16x32xbf16> to vector<8x16x32xbf16>
    %54 = vector.shape_cast %53 : vector<8x16x32xbf16> to vector<128x32xbf16>
    %c4 = arith.constant 4 : index
    %c0_40 = arith.constant 0 : index
    %c0_41 = arith.constant 0 : index
    %55 = vector.load %arg3[%c4, %c0_40, %c0_41] : memref<9x288x32xbf16, #tpu.memory_space<vmem>>, vector<1x288x32xbf16>
    %56 = vector.shape_cast %55 : vector<1x288x32xbf16> to vector<288x32xbf16>
    %cst_42 = arith.constant dense<0.000000e+00> : vector<288x128xf32>
    %57 = tpu.matmul %56, %54, %cst_42 {dimension_numbers = #tpu.dot_dimension_numbers<[1], [1], [0], [0], [0, 0, 1, 0], [], []>} : vector<288x32xbf16>, vector<128x32xbf16>, vector<288x128xf32> -> vector<288x128xf32>
    %58 = arith.addf %49, %57 : vector<288x128xf32>
    %c1_i32_43 = arith.constant 1 : i32
    %59 = arith.addi %0, %c1_i32_43 : i32
    %c0_44 = arith.constant 0 : index
    %60 = arith.index_cast %59 : i32 to index
    %c2_45 = arith.constant 2 : index
    %c0_46 = arith.constant 0 : index
    %61 = vector.load %arg2[%c0_44, %60, %c2_45, %c0_46] : memref<1x18x18x32xbf16, #tpu.memory_space<vmem>>, vector<1x8x16x32xbf16>
    %62 = vector.shape_cast %61 : vector<1x8x16x32xbf16> to vector<8x16x32xbf16>
    %63 = vector.shape_cast %62 : vector<8x16x32xbf16> to vector<128x32xbf16>
    %c5 = arith.constant 5 : index
    %c0_47 = arith.constant 0 : index
    %c0_48 = arith.constant 0 : index
    %64 = vector.load %arg3[%c5, %c0_47, %c0_48] : memref<9x288x32xbf16, #tpu.memory_space<vmem>>, vector<1x288x32xbf16>
    %65 = vector.shape_cast %64 : vector<1x288x32xbf16> to vector<288x32xbf16>
    %cst_49 = arith.constant dense<0.000000e+00> : vector<288x128xf32>
    %66 = tpu.matmul %65, %63, %cst_49 {dimension_numbers = #tpu.dot_dimension_numbers<[1], [1], [0], [0], [0, 0, 1, 0], [], []>} : vector<288x32xbf16>, vector<128x32xbf16>, vector<288x128xf32> -> vector<288x128xf32>
    %67 = arith.addf %58, %66 : vector<288x128xf32>
    %c2_i32 = arith.constant 2 : i32
    %68 = arith.addi %0, %c2_i32 : i32
    %c0_50 = arith.constant 0 : index
    %69 = arith.index_cast %68 : i32 to index
    %c0_51 = arith.constant 0 : index
    %c0_52 = arith.constant 0 : index
    %70 = vector.load %arg2[%c0_50, %69, %c0_51, %c0_52] : memref<1x18x18x32xbf16, #tpu.memory_space<vmem>>, vector<1x8x16x32xbf16>
    %71 = vector.shape_cast %70 : vector<1x8x16x32xbf16> to vector<8x16x32xbf16>
    %72 = vector.shape_cast %71 : vector<8x16x32xbf16> to vector<128x32xbf16>
    %c6 = arith.constant 6 : index
    %c0_53 = arith.constant 0 : index
    %c0_54 = arith.constant 0 : index
    %73 = vector.load %arg3[%c6, %c0_53, %c0_54] : memref<9x288x32xbf16, #tpu.memory_space<vmem>>, vector<1x288x32xbf16>
    %74 = vector.shape_cast %73 : vector<1x288x32xbf16> to vector<288x32xbf16>
    %cst_55 = arith.constant dense<0.000000e+00> : vector<288x128xf32>
    %75 = tpu.matmul %74, %72, %cst_55 {dimension_numbers = #tpu.dot_dimension_numbers<[1], [1], [0], [0], [0, 0, 1, 0], [], []>} : vector<288x32xbf16>, vector<128x32xbf16>, vector<288x128xf32> -> vector<288x128xf32>
    %76 = arith.addf %67, %75 : vector<288x128xf32>
    %c2_i32_56 = arith.constant 2 : i32
    %77 = arith.addi %0, %c2_i32_56 : i32
    %c0_57 = arith.constant 0 : index
    %78 = arith.index_cast %77 : i32 to index
    %c1_58 = arith.constant 1 : index
    %c0_59 = arith.constant 0 : index
    %79 = vector.load %arg2[%c0_57, %78, %c1_58, %c0_59] : memref<1x18x18x32xbf16, #tpu.memory_space<vmem>>, vector<1x8x16x32xbf16>
    %80 = vector.shape_cast %79 : vector<1x8x16x32xbf16> to vector<8x16x32xbf16>
    %81 = vector.shape_cast %80 : vector<8x16x32xbf16> to vector<128x32xbf16>
    %c7 = arith.constant 7 : index
    %c0_60 = arith.constant 0 : index
    %c0_61 = arith.constant 0 : index
    %82 = vector.load %arg3[%c7, %c0_60, %c0_61] : memref<9x288x32xbf16, #tpu.memory_space<vmem>>, vector<1x288x32xbf16>
    %83 = vector.shape_cast %82 : vector<1x288x32xbf16> to vector<288x32xbf16>
    %cst_62 = arith.constant dense<0.000000e+00> : vector<288x128xf32>
    %84 = tpu.matmul %83, %81, %cst_62 {dimension_numbers = #tpu.dot_dimension_numbers<[1], [1], [0], [0], [0, 0, 1, 0], [], []>} : vector<288x32xbf16>, vector<128x32xbf16>, vector<288x128xf32> -> vector<288x128xf32>
    %85 = arith.addf %76, %84 : vector<288x128xf32>
    %c2_i32_63 = arith.constant 2 : i32
    %86 = arith.addi %0, %c2_i32_63 : i32
    %c0_64 = arith.constant 0 : index
    %87 = arith.index_cast %86 : i32 to index
    %c2_65 = arith.constant 2 : index
    %c0_66 = arith.constant 0 : index
    %88 = vector.load %arg2[%c0_64, %87, %c2_65, %c0_66] : memref<1x18x18x32xbf16, #tpu.memory_space<vmem>>, vector<1x8x16x32xbf16>
    %89 = vector.shape_cast %88 : vector<1x8x16x32xbf16> to vector<8x16x32xbf16>
    %90 = vector.shape_cast %89 : vector<8x16x32xbf16> to vector<128x32xbf16>
    %c8 = arith.constant 8 : index
    %c0_67 = arith.constant 0 : index
    %c0_68 = arith.constant 0 : index
    %91 = vector.load %arg3[%c8, %c0_67, %c0_68] : memref<9x288x32xbf16, #tpu.memory_space<vmem>>, vector<1x288x32xbf16>
    %92 = vector.shape_cast %91 : vector<1x288x32xbf16> to vector<288x32xbf16>
    %cst_69 = arith.constant dense<0.000000e+00> : vector<288x128xf32>
    %93 = tpu.matmul %92, %90, %cst_69 {dimension_numbers = #tpu.dot_dimension_numbers<[1], [1], [0], [0], [0, 0, 1, 0], [], []>} : vector<288x32xbf16>, vector<128x32xbf16>, vector<288x128xf32> -> vector<288x128xf32>
    %94 = arith.addf %85, %93 : vector<288x128xf32>
    %95 = vector.broadcast %12 : vector<288x1xf32> to vector<288x128xf32>
    %96 = arith.addf %94, %95 : vector<288x128xf32>
    %c0_70 = arith.constant 0 : index
    %c0_71 = arith.constant 0 : index
    %c0_72 = arith.constant 0 : index
    %97 = vector.load %arg6[%c0_70, %c0_71, %c0_72] : memref<1x288x128xf32, #tpu.memory_space<vmem>>, vector<1x288x128xf32>
    %98 = vector.shape_cast %97 : vector<1x288x128xf32> to vector<288x128xf32>
    %99 = vector.shape_cast %96 : vector<288x128xf32> to vector<1x288x128xf32>
    tpu.vector_store %arg6[%c0_70, %c0_71, %c0_72], %99 {strides = array<i32>} : memref<1x288x128xf32, #tpu.memory_space<vmem>>, vector<1x288x128xf32>,
    return
  }
  func.func @transform_0(%arg0: i32, %arg1: i32) -> (i32, i32, i32, i32) {
    %c0_i32 = arith.constant 0 : i32
    %c0_i32_0 = arith.constant 0 : i32
    %c0_i32_1 = arith.constant 0 : i32
    %c0_i32_2 = arith.constant 0 : i32
    return %arg0, %c0_i32, %c0_i32_0, %c0_i32_1 : i32, i32, i32, i32
  }
  func.func @transform_1(%arg0: i32, %arg1: i32) -> (i32, i32, i32) {
    %c0_i32 = arith.constant 0 : i32
    %c0_i32_0 = arith.constant 0 : i32
    %c0_i32_1 = arith.constant 0 : i32
    %c0_i32_2 = arith.constant 0 : i32
    return %c0_i32, %c0_i32_0, %c0_i32_1 : i32, i32, i32
  }
  func.func @transform_2(%arg0: i32, %arg1: i32) -> (i32, i32) {
    %c0_i32 = arith.constant 0 : i32
    %c0_i32_0 = arith.constant 0 : i32
    %c0_i32_1 = arith.constant 0 : i32
    return %c0_i32, %c0_i32_0 : i32, i32
  }
  func.func @transform_3(%arg0: i32, %arg1: i32) -> (i32, i32) {
    %c0_i32 = arith.constant 0 : i32
    %c0_i32_0 = arith.constant 0 : i32
    %c0_i32_1 = arith.constant 0 : i32
    return %c0_i32, %c0_i32_0 : i32, i32
  }
  func.func @transform_4(%arg0: i32, %arg1: i32) -> (i32, i32, i32) {
    %c0_i32 = arith.constant 0 : i32
    %c0_i32_0 = arith.constant 0 : i32
    return %arg0, %c0_i32, %arg1 : i32, i32, i32
  }
}

</mosaic_0001>

<llo_original>
// kernel: tpu_custom_call.1
$region0: #{tpu_custom_call.1}
  #allocation0 [shape = 'u32[]', space=smem, size = 0x4, offset = 0x4, fixed_abs, tag = 'smem constant byte address 0x4 - core index']
  #allocation1 [shape = 'u32[144,128]{1,0:T(1,128)}', space=vmem, size = 0x12000, scoped, tag = 'internal scratch']
  %s0 = inlined_call_operand.vmem [shape: bf16[2,18,18,32], index: 0, kind: input, shape index: {}]
  %s1 = inlined_call_operand.vmem [shape: bf16[9,288,32], index: 1, kind: input, shape index: {}]
  %s2 = inlined_call_operand.vmem [shape: f32[288,32], index: 2, kind: input, shape index: {}]
  %s3 = inlined_call_operand.vmem [shape: f32[288,1], index: 3, kind: input, shape index: {}]
  %s4 = inlined_call_operand.hbm [shape: f32[2,288,256], index: 4, kind: output, shape index: {}]
  %s5 = sld [smem:[#allocation0]]
  $region49: #{tpu_custom_call.1} parent=0
    _
  %s7 = ssub.s32 1, %s5
  %s8 = scalar_select 0, %s7, %s5
  $region1: #{tpu_custom_call.1} parent=0
    #allocation2 [shape = 'u8[294912]{0}', space=vmem, size = 0x48000, scoped, tag = 'output window, operand 0']
    #allocation3 [shape = 's32[2]{0}', space=sflag, size = 0x8, scoped, tag = 'scoped memory for tpu_custom_call.1']
    %9 = vsyncpa [#allocation3], 0
    %s10 = scalar_lea.sflag [#allocation3], 1
    %11 = vsyncpa %s10, 0
    loop: start=0, step=1, limit=6
    $region2: #{tpu_custom_call.1} parent=1 // loop_pre_header
      _
    $region3: #{tpu_custom_call.1} parent=1 // loop_header
      %s13 = sphi 0, %s17
      %p14 = scmp.ge.s32.totalorder %s13, 6
      %s20 = sphi 0, %s32
      %s21 = sphi 0, %s28
      %s22 = sphi 0, %s20
      %s23 = sphi 0, %s21
      %s24 = sphi 0, %s22
      %s25 = sphi 0, %s23
      %s35 = sphi 0, %s37
      %s38 = sphi 0, %s35
      %s39 = sphi 0, %s38
      %s55 = sphi 0, %s39
      %s59 = sphi 0, %s59
      %s61 = sphi 0, %s59
      %s62 = sphi 0, %s61
      %s76 = sphi 0, %s62
      %s80 = sphi 0, %s80
      %s82 = sphi 0, %s80
      %s83 = sphi 0, %s82
      %s97 = sphi 0, %s83
      %s101 = sphi 0, %s101
      %s103 = sphi 0, %s101
      %s104 = sphi 0, %s103
      %s118 = sphi 0, %s104
      %s126 = sphi 0, %s128
      %s129 = sphi 0, %s126
      %s130 = sphi 0, %s129
      %s146 = sphi 0, %s130
    $region4: #{tpu_custom_call.1} parent=1 // loop_header_branch
      %16 = sbr.rel (%p14) target = $region8
    $region5: #{tpu_custom_call.1} parent=1 // loop_body
      %s18 = ssub.s32 %s13, 1
      %s19 = ssub.s32 %s13, 2
      %s26 = sadd.s32 1, %s21
      %p27 = scmp.ge.s32.totalorder %s26, 2
      %s28 = scalar_select %p27, 0, %s26
      %s29 = sadd.s32 1, %s20
      %s30 = scalar_select %p27, %s29, %s20
      %p31 = scmp.ge.s32.totalorder %s30, 2
      %s32 = scalar_select %p31, 0, %s30
      %s33 = ssub.s32 %s20, %s32
      %p34 = scmp.eq.s32.totalorder %s33, 0
      %s36 = sadd.s32 %s35, 1
      %s37 = scalar_select %p34, %s35, %s36
      %p40 = pneg %p34
      %p41 = scmp.eq.s32.totalorder %s13, 3
      %p42 = por %p40, %p41
      %p43 = scmp.ne.s32.totalorder %s35, %s38
      %p44 = scmp.eq.s32.totalorder %s13, 0
      %p45 = por %p43, %p44
      %p46 = scmp.ne.s32.totalorder %s35, %s38
      %p47 = scmp.eq.s32.totalorder %s18, 3
      %p48 = por %p46, %p47
      %p49 = scmp.ne.s32.totalorder %s38, %s39
      %p50 = scmp.eq.s32.totalorder %s18, 0
      %p51 = por %p49, %p50
      %p52 = scmp.ne.s32.totalorder %s38, %s39
      %p53 = scmp.eq.s32.totalorder %s19, 3
      %p54 = por %p52, %p53
      %p56 = scmp.ne.s32.totalorder %s39, %s55
      %p57 = scmp.eq.s32.totalorder %s19, 0
      %p58 = por %p56, %p57
      %s60 = sadd.s32 %s59, 1
      %p63 = scmp.eq.s32.totalorder %s13, 3
      %p64 = scmp.ne.s32.totalorder %s59, %s61
      %p65 = scmp.eq.s32.totalorder %s13, 0
      %p66 = por %p64, %p65
      %p67 = scmp.ne.s32.totalorder %s59, %s61
      %p68 = scmp.eq.s32.totalorder %s18, 3
      %p69 = por %p67, %p68
      %p70 = scmp.ne.s32.totalorder %s61, %s62
      %p71 = scmp.eq.s32.totalorder %s18, 0
      %p72 = por %p70, %p71
      %p73 = scmp.ne.s32.totalorder %s61, %s62
      %p74 = scmp.eq.s32.totalorder %s19, 3
      %p75 = por %p73, %p74
      %p77 = scmp.ne.s32.totalorder %s62, %s76
      %p78 = scmp.eq.s32.totalorder %s19, 0
      %p79 = por %p77, %p78
      %s81 = sadd.s32 %s80, 1
      %p84 = scmp.eq.s32.totalorder %s13, 3
      %p85 = scmp.ne.s32.totalorder %s80, %s82
      %p86 = scmp.eq.s32.totalorder %s13, 0
      %p87 = por %p85, %p86
      %p88 = scmp.ne.s32.totalorder %s80, %s82
      %p89 = scmp.eq.s32.totalorder %s18, 3
      %p90 = por %p88, %p89
      %p91 = scmp.ne.s32.totalorder %s82, %s83
      %p92 = scmp.eq.s32.totalorder %s18, 0
      %p93 = por %p91, %p92
      %p94 = scmp.ne.s32.totalorder %s82, %s83
      %p95 = scmp.eq.s32.totalorder %s19, 3
      %p96 = por %p94, %p95
      %p98 = scmp.ne.s32.totalorder %s83, %s97
      %p99 = scmp.eq.s32.totalorder %s19, 0
      %p100 = por %p98, %p99
      %s102 = sadd.s32 %s101, 1
      %p105 = scmp.eq.s32.totalorder %s13, 3
      %p106 = scmp.ne.s32.totalorder %s101, %s103
      %p107 = scmp.eq.s32.totalorder %s13, 0
      %p108 = por %p106, %p107
      %p109 = scmp.ne.s32.totalorder %s101, %s103
      %p110 = scmp.eq.s32.totalorder %s18, 3
      %p111 = por %p109, %p110
      %p112 = scmp.ne.s32.totalorder %s103, %s104
      %p113 = scmp.eq.s32.totalorder %s18, 0
      %p114 = por %p112, %p113
      %p115 = scmp.ne.s32.totalorder %s103, %s104
      %p116 = scmp.eq.s32.totalorder %s19, 3
      %p117 = por %p115, %p116
      %p119 = scmp.ne.s32.totalorder %s104, %s118
      %p120 = scmp.eq.s32.totalorder %s19, 0
      %p121 = por %p119, %p120
      %s122 = ssub.s32 %s20, %s32
      %s123 = ssub.s32 %s21, %s28
      %s124 = sor.u32 %s122, %s123
      %p125 = scmp.eq.s32.totalorder %s124, 0
      %s127 = sadd.s32 %s126, 1
      %s128 = scalar_select %p125, %s126, %s127
      %p131 = pneg %p125
      %p132 = scmp.eq.s32.totalorder %s13, 3
      %p133 = por %p131, %p132
      %p134 = scmp.ne.s32.totalorder %s126, %s129
      %p135 = scmp.eq.s32.totalorder %s13, 0
      %p136 = por %p134, %p135
      %p137 = scmp.ne.s32.totalorder %s126, %s129
      %p138 = scmp.eq.s32.totalorder %s18, 3
      %p139 = por %p137, %p138
      %p140 = scmp.ne.s32.totalorder %s129, %s130
      %p141 = scmp.eq.s32.totalorder %s18, 0
      %p142 = por %p140, %p141
      %p143 = scmp.ne.s32.totalorder %s129, %s130
      %p144 = scmp.eq.s32.totalorder %s19, 3
      %p145 = por %p143, %p144
      %p147 = scmp.ne.s32.totalorder %s130, %s146
      %p148 = scmp.eq.s32.totalorder %s19, 0
      %p149 = por %p147, %p148
      %p150 = scmp.le.s32.totalorder 1, %s13
      %p151 = scmp.lt.s32.totalorder %s13, 5
      %p152 = pnand %p150, %p151
      %p153 = pneg %p152
      // Predicated region
      $region9: #{tpu_custom_call.1} parent=5 // pred_check
        _
      $region10: #{tpu_custom_call.1} parent=5 // pred_check_branch
        %155 = sbr.rel (%p152) target = $region12
      $region11: #{tpu_custom_call.1} parent=5 // pred_region
        %s156 = ssub.s32 %s13, 1
        // Predicated region
        $region13: #{tpu_custom_call.1} parent=11 // pred_check
          %p157 = pneg %p72
        $region14: #{tpu_custom_call.1} parent=11 // pred_check_branch
          %159 = sbr.rel (%p157) target = $region16
        $region15: #{tpu_custom_call.1} parent=11 // pred_region
          _
        $region16: #{tpu_custom_call.1} parent=11 // pred_fallthru
          _
        // Predicated region
        $region17: #{tpu_custom_call.1} parent=11 // pred_check
          %p160 = pneg %p93
        $region18: #{tpu_custom_call.1} parent=11 // pred_check_branch
          %162 = sbr.rel (%p160) target = $region20
        $region19: #{tpu_custom_call.1} parent=11 // pred_region
          _
        $region20: #{tpu_custom_call.1} parent=11 // pred_fallthru
          _
        // Predicated region
        $region21: #{tpu_custom_call.1} parent=11 // pred_check
          %p163 = pneg %p114
        $region22: #{tpu_custom_call.1} parent=11 // pred_check_branch
          %165 = sbr.rel (%p163) target = $region24
        $region23: #{tpu_custom_call.1} parent=11 // pred_region
          _
        $region24: #{tpu_custom_call.1} parent=11 // pred_fallthru
          _
      $region12: #{tpu_custom_call.1} parent=5 // pred_fallthru
        _
      %p166 = scmp.lt.s32.totalorder %s13, 4
      // Predicated region
      $region25: #{tpu_custom_call.1} parent=5 // pred_check
        %p167 = pneg %p166
      $region26: #{tpu_custom_call.1} parent=5 // pred_check_branch
        %169 = sbr.rel (%p167) target = $region28
      $region27: #{tpu_custom_call.1} parent=5 // pred_region
        // Predicated region
        $region29: #{tpu_custom_call.1} parent=27 // pred_check
          %p170 = pneg %p45
        $region30: #{tpu_custom_call.1} parent=27 // pred_check_branch
          %172 = sbr.rel (%p170) target = $region32
        $region31: #{tpu_custom_call.1} parent=27 // pred_region
          %p173 = scmp.lt.s32.totalorder %s20, 1
          %s174 = scalar_select %p173, %s20, 1
          %s175 = smul.addr %s174, 54
          %s176 = smul.addr %s175, 4
          %s177 = scalar_lea.vmem %s0, %s176
        $region32: #{tpu_custom_call.1} parent=27 // pred_fallthru
          _
      $region28: #{tpu_custom_call.1} parent=5 // pred_fallthru
        _
      %p178 = scmp.le.s32.totalorder 1, %s13
      %p179 = scmp.lt.s32.totalorder %s13, 5
      %p180 = pnand %p178, %p179
      %p181 = pneg %p180
      // Predicated region
      $region33: #{tpu_custom_call.1} parent=5 // pred_check
        _
      $region34: #{tpu_custom_call.1} parent=5 // pred_check_branch
        %183 = sbr.rel (%p180) target = $region36
      $region35: #{tpu_custom_call.1} parent=5 // pred_region
        %s184 = ssub.s32 %s13, 1
        %p185 = scmp.lt.s32.totalorder %s22, 1
        %s186 = scalar_select %p185, %s22, 1
        %s187 = smul.addr %s186, 54
        %s188 = smul.addr %s187, 4
        %s189 = scalar_lea.vmem %s0, %s188
        %p190 = pneg %p51
        %p191 = pneg %p48
        %p192 = pneg %p72
        %p193 = pneg %p69
        %p194 = pneg %p93
        %p195 = pneg %p90
        %p196 = pneg %p114
        %p197 = pneg %p111
        %p198 = pneg %p142
        %p199 = pneg %p139
        %s200 = sand.u32 %s129, 1
        %s201 = scalar_lea.sflag [#allocation3], %s200
        %s202 = sand.u32 %s129, 1
        %s203 = smul.addr %s202, 288
        %s204 = scalar_lea.vmem [#allocation2], %s203
        %p205 = scmp.lt.s32.totalorder %s22, 1
        %s206 = scalar_select %p205, %s22, 1
        %s207 = smul.addr %s206, 54
        %s208 = smul.addr %s207, 4
        %s209 = scalar_lea.vmem %s0, %s208
        %s211 = smul.u32 %s23, 8
        %v212 = vld [vmem:[%s209] sm:$0xf]
        %v213 = vld [vmem:[%s209 + $0x4] sm:$0xf]
        %v214 = vld [vmem:[%s209 + $0x8] sm:$0x1]
        %v215 = vld [vmem:[%s209 + $0xc] sm:$0xf]
        %v216 = vld [vmem:[%s209 + $0x10] sm:$0xf]
        %v217 = vld [vmem:[%s209 + $0x14] sm:$0x1]
        %v218 = vld [vmem:[%s209 + $0x18] sm:$0xf]
        %v219 = vld [vmem:[%s209 + $0x1c] sm:$0xf]
        %v220 = vld [vmem:[%s209 + $0x20] sm:$0x1]
        %v221 = vld [vmem:[%s209 + $0x24] sm:$0xf]
        %v222 = vld [vmem:[%s209 + $0x28] sm:$0xf]
        %v223 = vld [vmem:[%s209 + $0x2c] sm:$0x1]
        %v224 = vld [vmem:[%s209 + $0x30] sm:$0xf]
        %v225 = vld [vmem:[%s209 + $0x34] sm:$0xf]
        %v226 = vld [vmem:[%s209 + $0x38] sm:$0x1]
        %v227 = vld [vmem:[%s209 + $0x3c] sm:$0xf]
        %v228 = vld [vmem:[%s209 + $0x40] sm:$0xf]
        %v229 = vld [vmem:[%s209 + $0x44] sm:$0x1]
        %v230 = vld [vmem:[%s209 + $0x48] sm:$0xf]
        %v231 = vld [vmem:[%s209 + $0x4c] sm:$0xf]
        %v232 = vld [vmem:[%s209 + $0x50] sm:$0x1]
        %v233 = vld [vmem:[%s209 + $0x54] sm:$0xf]
        %v234 = vld [vmem:[%s209 + $0x58] sm:$0xf]
        %v235 = vld [vmem:[%s209 + $0x5c] sm:$0x1]
        %v236 = vld [vmem:[%s209 + $0x60] sm:$0xf]
        %v237 = vld [vmem:[%s209 + $0x64] sm:$0xf]
        %v238 = vld [vmem:[%s209 + $0x68] sm:$0x1]
        %v239 = vld [vmem:[%s209 + $0x6c] sm:$0xf]
        %v240 = vld [vmem:[%s209 + $0x70] sm:$0xf]
        %v241 = vld [vmem:[%s209 + $0x74] sm:$0x1]
        %v242 = vld [vmem:[%s209 + $0x78] sm:$0xf]
        %v243 = vld [vmem:[%s209 + $0x7c] sm:$0xf]
        %v244 = vld [vmem:[%s209 + $0x80] sm:$0x1]
        %v245 = vld [vmem:[%s209 + $0x84] sm:$0xf]
        %v246 = vld [vmem:[%s209 + $0x88] sm:$0xf]
        %v247 = vld [vmem:[%s209 + $0x8c] sm:$0x1]
        %v248 = vld [vmem:[%s209 + $0x90] sm:$0xf]
        %v249 = vld [vmem:[%s209 + $0x94] sm:$0xf]
        %v250 = vld [vmem:[%s209 + $0x98] sm:$0x1]
        %v251 = vld [vmem:[%s209 + $0x9c] sm:$0xf]
        %v252 = vld [vmem:[%s209 + $0xa0] sm:$0xf]
        %v253 = vld [vmem:[%s209 + $0xa4] sm:$0x1]
        %v254 = vld [vmem:[%s209 + $0xa8] sm:$0xf]
        %v255 = vld [vmem:[%s209 + $0xac] sm:$0xf]
        %v256 = vld [vmem:[%s209 + $0xb0] sm:$0x1]
        %v257 = vld [vmem:[%s209 + $0xb4] sm:$0xf]
        %v258 = vld [vmem:[%s209 + $0xb8] sm:$0xf]
        %v259 = vld [vmem:[%s209 + $0xbc] sm:$0x1]
        %v260 = vld [vmem:[%s209 + $0xc0] sm:$0xf]
        %v261 = vld [vmem:[%s209 + $0xc4] sm:$0xf]
        %v262 = vld [vmem:[%s209 + $0xc8] sm:$0x1]
        %v263 = vld [vmem:[%s209 + $0xcc] sm:$0xf]
        %v264 = vld [vmem:[%s209 + $0xd0] sm:$0xf]
        %v265 = vld [vmem:[%s209 + $0xd4] sm:$0x1]
        %v266 = vunpack.c.l.bf16 %v212
        %v267 = vunpack.c.l.bf16 %v213
        %v268 = vunpack.c.l.bf16 %v214
        %v269 = vunpack.c.l.bf16 %v215
        %v270 = vunpack.c.l.bf16 %v216
        %v271 = vunpack.c.l.bf16 %v217
        %v272 = vunpack.c.l.bf16 %v218
        %v273 = vunpack.c.l.bf16 %v219
        %v274 = vunpack.c.l.bf16 %v220
        %v275 = vunpack.c.l.bf16 %v221
        %v276 = vunpack.c.l.bf16 %v222
        %v277 = vunpack.c.l.bf16 %v223
        %v278 = vunpack.c.l.bf16 %v224
        %v279 = vunpack.c.l.bf16 %v225
        %v280 = vunpack.c.l.bf16 %v226
        %v281 = vunpack.c.l.bf16 %v227
        %v282 = vunpack.c.l.bf16 %v228
        %v283 = vunpack.c.l.bf16 %v229
        %v284 = vunpack.c.l.bf16 %v230
        %v285 = vunpack.c.l.bf16 %v231
        %v286 = vunpack.c.l.bf16 %v232
        %v287 = vunpack.c.l.bf16 %v233
        %v288 = vunpack.c.l.bf16 %v234
        %v289 = vunpack.c.l.bf16 %v235
        %v290 = vunpack.c.l.bf16 %v236
        %v291 = vunpack.c.l.bf16 %v237
        %v292 = vunpack.c.l.bf16 %v238
        %v293 = vunpack.c.l.bf16 %v239
        %v294 = vunpack.c.l.bf16 %v240
        %v295 = vunpack.c.l.bf16 %v241
        %v296 = vunpack.c.l.bf16 %v242
        %v297 = vunpack.c.l.bf16 %v243
        %v298 = vunpack.c.l.bf16 %v244
        %v299 = vunpack.c.l.bf16 %v245
        %v300 = vunpack.c.l.bf16 %v246
        %v301 = vunpack.c.l.bf16 %v247
        %v302 = vunpack.c.l.bf16 %v248
        %v303 = vunpack.c.l.bf16 %v249
        %v304 = vunpack.c.l.bf16 %v250
        %v305 = vunpack.c.l.bf16 %v251
        %v306 = vunpack.c.l.bf16 %v252
        %v307 = vunpack.c.l.bf16 %v253
        %v308 = vunpack.c.l.bf16 %v254
        %v309 = vunpack.c.l.bf16 %v255
        %v310 = vunpack.c.l.bf16 %v256
        %v311 = vunpack.c.l.bf16 %v257
        %v312 = vunpack.c.l.bf16 %v258
        %v313 = vunpack.c.l.bf16 %v259
        %v314 = vunpack.c.l.bf16 %v260
        %v315 = vunpack.c.l.bf16 %v261
        %v316 = vunpack.c.l.bf16 %v262
        %v317 = vunpack.c.l.bf16 %v263
        %v318 = vunpack.c.l.bf16 %v264
        %v319 = vunpack.c.l.bf16 %v265
        %vm320 = vcmask 261120
        %v321 = vsel %vm320, %v266, 0.0
        %v322 = vsel %vm320, %v267, 0.0
        %v323 = vadd.f32 %v321, %v322
        %vm324 = vcmask 254976
        %v325 = vsel %vm324, %v268, 0.0
        %v326 = vadd.f32 %v323, %v325
        %v327 = vsel %vm320, %v269, 0.0
        %v328 = vadd.f32 %v326, %v327
        %v329 = vsel %vm320, %v270, 0.0
        %v330 = vadd.f32 %v328, %v329
        %v331 = vsel %vm324, %v271, 0.0
        %v332 = vadd.f32 %v330, %v331
        %v333 = vsel %vm320, %v272, 0.0
        %v334 = vadd.f32 %v332, %v333
        %v335 = vsel %vm320, %v273, 0.0
        %v336 = vadd.f32 %v334, %v335
        %v337 = vsel %vm324, %v274, 0.0
        %v338 = vadd.f32 %v336, %v337
        %v339 = vsel %vm320, %v275, 0.0
        %v340 = vadd.f32 %v338, %v339
        %v341 = vsel %vm320, %v276, 0.0
        %v342 = vadd.f32 %v340, %v341
        %v343 = vsel %vm324, %v277, 0.0
        %v344 = vadd.f32 %v342, %v343
        %v345 = vsel %vm320, %v278, 0.0
        %v346 = vadd.f32 %v344, %v345
        %v347 = vsel %vm320, %v279, 0.0
        %v348 = vadd.f32 %v346, %v347
        %v349 = vsel %vm324, %v280, 0.0
        %v350 = vadd.f32 %v348, %v349
        %v351 = vsel %vm320, %v281, 0.0
        %v352 = vadd.f32 %v350, %v351
        %v353 = vsel %vm320, %v282, 0.0
        %v354 = vadd.f32 %v352, %v353
        %v355 = vsel %vm324, %v283, 0.0
        %v356 = vadd.f32 %v354, %v355
        %v357 = vsel %vm320, %v284, 0.0
        %v358 = vadd.f32 %v356, %v357
        %v359 = vsel %vm320, %v285, 0.0
        %v360 = vadd.f32 %v358, %v359
        %v361 = vsel %vm324, %v286, 0.0
        %v362 = vadd.f32 %v360, %v361
        %v363 = vsel %vm320, %v287, 0.0
        %v364 = vadd.f32 %v362, %v363
        %v365 = vsel %vm320, %v288, 0.0
        %v366 = vadd.f32 %v364, %v365
        %v367 = vsel %vm324, %v289, 0.0
        %v368 = vadd.f32 %v366, %v367
        %v369 = vsel %vm320, %v290, 0.0
        %v370 = vadd.f32 %v368, %v369
        %v371 = vsel %vm320, %v291, 0.0
        %v372 = vadd.f32 %v370, %v371
        %v373 = vsel %vm324, %v292, 0.0
        %v374 = vadd.f32 %v372, %v373
        %v375 = vsel %vm320, %v293, 0.0
        %v376 = vadd.f32 %v374, %v375
        %v377 = vsel %vm320, %v294, 0.0
        %v378 = vadd.f32 %v376, %v377
        %v379 = vsel %vm324, %v295, 0.0
        %v380 = vadd.f32 %v378, %v379
        %v381 = vsel %vm320, %v296, 0.0
        %v382 = vadd.f32 %v380, %v381
        %v383 = vsel %vm320, %v297, 0.0
        %v384 = vadd.f32 %v382, %v383
        %v385 = vsel %vm324, %v298, 0.0
        %v386 = vadd.f32 %v384, %v385
        %v387 = vsel %vm320, %v299, 0.0
        %v388 = vadd.f32 %v386, %v387
        %v389 = vsel %vm320, %v300, 0.0
        %v390 = vadd.f32 %v388, %v389
        %v391 = vsel %vm324, %v301, 0.0
        %v392 = vadd.f32 %v390, %v391
        %v393 = vsel %vm320, %v302, 0.0
        %v394 = vadd.f32 %v392, %v393
        %v395 = vsel %vm320, %v303, 0.0
        %v396 = vadd.f32 %v394, %v395
        %v397 = vsel %vm324, %v304, 0.0
        %v398 = vadd.f32 %v396, %v397
        %v399 = vsel %vm320, %v305, 0.0
        %v400 = vadd.f32 %v398, %v399
        %v401 = vsel %vm320, %v306, 0.0
        %v402 = vadd.f32 %v400, %v401
        %v403 = vsel %vm324, %v307, 0.0
        %v404 = vadd.f32 %v402, %v403
        %v405 = vsel %vm320, %v308, 0.0
        %v406 = vadd.f32 %v404, %v405
        %v407 = vsel %vm320, %v309, 0.0
        %v408 = vadd.f32 %v406, %v407
        %v409 = vsel %vm324, %v310, 0.0
        %v410 = vadd.f32 %v408, %v409
        %v411 = vsel %vm320, %v311, 0.0
        %v412 = vadd.f32 %v410, %v411
        %v413 = vsel %vm320, %v312, 0.0
        %v414 = vadd.f32 %v412, %v413
        %v415 = vsel %vm324, %v313, 0.0
        %v416 = vadd.f32 %v414, %v415
        %v417 = vsel %vm320, %v314, 0.0
        %v418 = vadd.f32 %v416, %v417
        %v419 = vsel %vm320, %v315, 0.0
        %v420 = vadd.f32 %v418, %v419
        %v421 = vsel %vm324, %v316, 0.0
        %v422 = vadd.f32 %v420, %v421
        %v423 = vsel %vm320, %v317, 0.0
        %v424 = vadd.f32 %v422, %v423
        %v425 = vsel %vm320, %v318, 0.0
        %v426 = vadd.f32 %v424, %v425
        %v427 = vsel %vm324, %v319, 0.0
        %v428 = vadd.f32 %v426, %v427
        %v429 = vrot.slane %v428, 4
        %v430 = vadd.f32 %v428, %v429
        %v431 = vrot.slane %v430, 2
        %v432 = vadd.f32 %v430, %v431
        %v433 = vrot.slane %v432, 1
        %v434 = vadd.f32 %v432, %v433
        %v435 = vld [vmem:[%s2] sm:$0xff]
        %v436 = vld [vmem:[%s2 + $0x8] sm:$0xff]
        %v437 = vld [vmem:[%s2 + $0x10] sm:$0xff]
        %v438 = vld [vmem:[%s2 + $0x18] sm:$0xff]
        %v439 = vld [vmem:[%s2 + $0x20] sm:$0xff]
        %v440 = vld [vmem:[%s2 + $0x28] sm:$0xff]
        %v441 = vld [vmem:[%s2 + $0x30] sm:$0xff]
        %v442 = vld [vmem:[%s2 + $0x38] sm:$0xff]
        %v443 = vld [vmem:[%s2 + $0x40] sm:$0xff]
        %v444 = vld [vmem:[%s2 + $0x48] sm:$0xff]
        %v445 = vld [vmem:[%s2 + $0x50] sm:$0xff]
        %v446 = vld [vmem:[%s2 + $0x58] sm:$0xff]
        %v447 = vld [vmem:[%s2 + $0x60] sm:$0xff]
        %v448 = vld [vmem:[%s2 + $0x68] sm:$0xff]
        %v449 = vld [vmem:[%s2 + $0x70] sm:$0xff]
        %v450 = vld [vmem:[%s2 + $0x78] sm:$0xff]
        %v451 = vld [vmem:[%s2 + $0x80] sm:$0xff]
        %v452 = vld [vmem:[%s2 + $0x88] sm:$0xff]
        %v453 = vld [vmem:[%s2 + $0x90] sm:$0xff]
        %v454 = vld [vmem:[%s2 + $0x98] sm:$0xff]
        %v455 = vld [vmem:[%s2 + $0xa0] sm:$0xff]
        %v456 = vld [vmem:[%s2 + $0xa8] sm:$0xff]
        %v457 = vld [vmem:[%s2 + $0xb0] sm:$0xff]
        %v458 = vld [vmem:[%s2 + $0xb8] sm:$0xff]
        %v459 = vld [vmem:[%s2 + $0xc0] sm:$0xff]
        %v460 = vld [vmem:[%s2 + $0xc8] sm:$0xff]
        %v461 = vld [vmem:[%s2 + $0xd0] sm:$0xff]
        %v462 = vld [vmem:[%s2 + $0xd8] sm:$0xff]
        %v463 = vld [vmem:[%s2 + $0xe0] sm:$0xff]
        %v464 = vld [vmem:[%s2 + $0xe8] sm:$0xff]
        %v465 = vld [vmem:[%s2 + $0xf0] sm:$0xff]
        %v466 = vld [vmem:[%s2 + $0xf8] sm:$0xff]
        %v467 = vld [vmem:[%s2 + $0x100] sm:$0xff]
        %v468 = vld [vmem:[%s2 + $0x108] sm:$0xff]
        %v469 = vld [vmem:[%s2 + $0x110] sm:$0xff]
        %v470 = vld [vmem:[%s2 + $0x118] sm:$0xff]
        %v471 = vmul.f32 %v435, %v434
        %v472 = vmul.f32 %v436, %v434
        %v473 = vmul.f32 %v437, %v434
        %v474 = vmul.f32 %v438, %v434
        %v475 = vmul.f32 %v439, %v434
        %v476 = vmul.f32 %v440, %v434
        %v477 = vmul.f32 %v441, %v434
        %v478 = vmul.f32 %v442, %v434
        %v479 = vmul.f32 %v443, %v434
        %v480 = vmul.f32 %v444, %v434
        %v481 = vmul.f32 %v445, %v434
        %v482 = vmul.f32 %v446, %v434
        %v483 = vmul.f32 %v447, %v434
        %v484 = vmul.f32 %v448, %v434
        %v485 = vmul.f32 %v449, %v434
        %v486 = vmul.f32 %v450, %v434
        %v487 = vmul.f32 %v451, %v434
        %v488 = vmul.f32 %v452, %v434
        %v489 = vmul.f32 %v453, %v434
        %v490 = vmul.f32 %v454, %v434
        %v491 = vmul.f32 %v455, %v434
        %v492 = vmul.f32 %v456, %v434
        %v493 = vmul.f32 %v457, %v434
        %v494 = vmul.f32 %v458, %v434
        %v495 = vmul.f32 %v459, %v434
        %v496 = vmul.f32 %v460, %v434
        %v497 = vmul.f32 %v461, %v434
        %v498 = vmul.f32 %v462, %v434
        %v499 = vmul.f32 %v463, %v434
        %v500 = vmul.f32 %v464, %v434
        %v501 = vmul.f32 %v465, %v434
        %v502 = vmul.f32 %v466, %v434
        %v503 = vmul.f32 %v467, %v434
        %v504 = vmul.f32 %v468, %v434
        %v505 = vmul.f32 %v469, %v434
        %v506 = vmul.f32 %v470, %v434
        %v507 = vsel %vm320, %v471, 0.0
        %508 = vadd.xlane.f32.xlu0 %v507
        %v509 = vpop.xlane.xlu0 %508
        %v510 = vsel %vm320, %v472, 0.0
        %511 = vadd.xlane.f32.xlu0 %v510
        %v512 = vpop.xlane.xlu0 %511
        %v513 = vsel %vm320, %v473, 0.0
        %514 = vadd.xlane.f32.xlu0 %v513
        %v515 = vpop.xlane.xlu0 %514
        %v516 = vsel %vm320, %v474, 0.0
        %517 = vadd.xlane.f32.xlu0 %v516
        %v518 = vpop.xlane.xlu0 %517
        %v519 = vsel %vm320, %v475, 0.0
        %520 = vadd.xlane.f32.xlu0 %v519
        %v521 = vpop.xlane.xlu0 %520
        %v522 = vsel %vm320, %v476, 0.0
        %523 = vadd.xlane.f32.xlu0 %v522
        %v524 = vpop.xlane.xlu0 %523
        %v525 = vsel %vm320, %v477, 0.0
        %526 = vadd.xlane.f32.xlu0 %v525
        %v527 = vpop.xlane.xlu0 %526
        %v528 = vsel %vm320, %v478, 0.0
        %529 = vadd.xlane.f32.xlu0 %v528
        %v530 = vpop.xlane.xlu0 %529
        %v531 = vsel %vm320, %v479, 0.0
        %532 = vadd.xlane.f32.xlu0 %v531
        %v533 = vpop.xlane.xlu0 %532
        %v534 = vsel %vm320, %v480, 0.0
        %535 = vadd.xlane.f32.xlu0 %v534
        %v536 = vpop.xlane.xlu0 %535
        %v537 = vsel %vm320, %v481, 0.0
        %538 = vadd.xlane.f32.xlu0 %v537
        %v539 = vpop.xlane.xlu0 %538
        %v540 = vsel %vm320, %v482, 0.0
        %541 = vadd.xlane.f32.xlu0 %v540
        %v542 = vpop.xlane.xlu0 %541
        %v543 = vsel %vm320, %v483, 0.0
        %544 = vadd.xlane.f32.xlu0 %v543
        %v545 = vpop.xlane.xlu0 %544
        %v546 = vsel %vm320, %v484, 0.0
        %547 = vadd.xlane.f32.xlu0 %v546
        %v548 = vpop.xlane.xlu0 %547
        %v549 = vsel %vm320, %v485, 0.0
        %550 = vadd.xlane.f32.xlu0 %v549
        %v551 = vpop.xlane.xlu0 %550
        %v552 = vsel %vm320, %v486, 0.0
        %553 = vadd.xlane.f32.xlu0 %v552
        %v554 = vpop.xlane.xlu0 %553
        %v555 = vsel %vm320, %v487, 0.0
        %556 = vadd.xlane.f32.xlu0 %v555
        %v557 = vpop.xlane.xlu0 %556
        %v558 = vsel %vm320, %v488, 0.0
        %559 = vadd.xlane.f32.xlu0 %v558
        %v560 = vpop.xlane.xlu0 %559
        %v561 = vsel %vm320, %v489, 0.0
        %562 = vadd.xlane.f32.xlu0 %v561
        %v563 = vpop.xlane.xlu0 %562
        %v564 = vsel %vm320, %v490, 0.0
        %565 = vadd.xlane.f32.xlu0 %v564
        %v566 = vpop.xlane.xlu0 %565
        %v567 = vsel %vm320, %v491, 0.0
        %568 = vadd.xlane.f32.xlu0 %v567
        %v569 = vpop.xlane.xlu0 %568
        %v570 = vsel %vm320, %v492, 0.0
        %571 = vadd.xlane.f32.xlu0 %v570
        %v572 = vpop.xlane.xlu0 %571
        %v573 = vsel %vm320, %v493, 0.0
        %574 = vadd.xlane.f32.xlu0 %v573
        %v575 = vpop.xlane.xlu0 %574
        %v576 = vsel %vm320, %v494, 0.0
        %577 = vadd.xlane.f32.xlu0 %v576
        %v578 = vpop.xlane.xlu0 %577
        %v579 = vsel %vm320, %v495, 0.0
        %580 = vadd.xlane.f32.xlu0 %v579
        %v581 = vpop.xlane.xlu0 %580
        %v582 = vsel %vm320, %v496, 0.0
        %583 = vadd.xlane.f32.xlu0 %v582
        %v584 = vpop.xlane.xlu0 %583
        %v585 = vsel %vm320, %v497, 0.0
        %586 = vadd.xlane.f32.xlu0 %v585
        %v587 = vpop.xlane.xlu0 %586
        %v588 = vsel %vm320, %v498, 0.0
        %589 = vadd.xlane.f32.xlu0 %v588
        %v590 = vpop.xlane.xlu0 %589
        %v591 = vsel %vm320, %v499, 0.0
        %592 = vadd.xlane.f32.xlu0 %v591
        %v593 = vpop.xlane.xlu0 %592
        %v594 = vsel %vm320, %v500, 0.0
        %595 = vadd.xlane.f32.xlu0 %v594
        %v596 = vpop.xlane.xlu0 %595
        %v597 = vsel %vm320, %v501, 0.0
        %598 = vadd.xlane.f32.xlu0 %v597
        %v599 = vpop.xlane.xlu0 %598
        %v600 = vsel %vm320, %v502, 0.0
        %601 = vadd.xlane.f32.xlu0 %v600
        %v602 = vpop.xlane.xlu0 %601
        %v603 = vsel %vm320, %v503, 0.0
        %604 = vadd.xlane.f32.xlu0 %v603
        %v605 = vpop.xlane.xlu0 %604
        %v606 = vsel %vm320, %v504, 0.0
        %607 = vadd.xlane.f32.xlu0 %v606
        %v608 = vpop.xlane.xlu0 %607
        %v609 = vsel %vm320, %v505, 0.0
        %610 = vadd.xlane.f32.xlu0 %v609
        %v611 = vpop.xlane.xlu0 %610
        %v612 = vsel %vm320, %v506, 0.0
        %613 = vadd.xlane.f32.xlu0 %v612
        %v614 = vpop.xlane.xlu0 %613
        %v615 = vld [vmem:[%s3] sm:$0xff]
        %v616 = vld [vmem:[%s3 + $0x8] sm:$0xff]
        %v617 = vld [vmem:[%s3 + $0x10] sm:$0xff]
        %v618 = vld [vmem:[%s3 + $0x18] sm:$0xff]
        %v619 = vld [vmem:[%s3 + $0x20] sm:$0xff]
        %v620 = vld [vmem:[%s3 + $0x28] sm:$0xff]
        %v621 = vld [vmem:[%s3 + $0x30] sm:$0xff]
        %v622 = vld [vmem:[%s3 + $0x38] sm:$0xff]
        %v623 = vld [vmem:[%s3 + $0x40] sm:$0xff]
        %v624 = vld [vmem:[%s3 + $0x48] sm:$0xff]
        %v625 = vld [vmem:[%s3 + $0x50] sm:$0xff]
        %v626 = vld [vmem:[%s3 + $0x58] sm:$0xff]
        %v627 = vld [vmem:[%s3 + $0x60] sm:$0xff]
        %v628 = vld [vmem:[%s3 + $0x68] sm:$0xff]
        %v629 = vld [vmem:[%s3 + $0x70] sm:$0xff]
        %v630 = vld [vmem:[%s3 + $0x78] sm:$0xff]
        %v631 = vld [vmem:[%s3 + $0x80] sm:$0xff]
        %v632 = vld [vmem:[%s3 + $0x88] sm:$0xff]
        %v633 = vld [vmem:[%s3 + $0x90] sm:$0xff]
        %v634 = vld [vmem:[%s3 + $0x98] sm:$0xff]
        %v635 = vld [vmem:[%s3 + $0xa0] sm:$0xff]
        %v636 = vld [vmem:[%s3 + $0xa8] sm:$0xff]
        %v637 = vld [vmem:[%s3 + $0xb0] sm:$0xff]
        %v638 = vld [vmem:[%s3 + $0xb8] sm:$0xff]
        %v639 = vld [vmem:[%s3 + $0xc0] sm:$0xff]
        %v640 = vld [vmem:[%s3 + $0xc8] sm:$0xff]
        %v641 = vld [vmem:[%s3 + $0xd0] sm:$0xff]
        %v642 = vld [vmem:[%s3 + $0xd8] sm:$0xff]
        %v643 = vld [vmem:[%s3 + $0xe0] sm:$0xff]
        %v644 = vld [vmem:[%s3 + $0xe8] sm:$0xff]
        %v645 = vld [vmem:[%s3 + $0xf0] sm:$0xff]
        %v646 = vld [vmem:[%s3 + $0xf8] sm:$0xff]
        %v647 = vld [vmem:[%s3 + $0x100] sm:$0xff]
        %v648 = vld [vmem:[%s3 + $0x108] sm:$0xff]
        %v649 = vld [vmem:[%s3 + $0x110] sm:$0xff]
        %v650 = vld [vmem:[%s3 + $0x118] sm:$0xff]
        %v651 = vadd.f32 %v509, %v615
        %v652 = vadd.f32 %v512, %v616
        %v653 = vadd.f32 %v515, %v617
        %v654 = vadd.f32 %v518, %v618
        %v655 = vadd.f32 %v521, %v619
        %v656 = vadd.f32 %v524, %v620
        %v657 = vadd.f32 %v527, %v621
        %v658 = vadd.f32 %v530, %v622
        %v659 = vadd.f32 %v533, %v623
        %v660 = vadd.f32 %v536, %v624
        %v661 = vadd.f32 %v539, %v625
        %v662 = vadd.f32 %v542, %v626
        %v663 = vadd.f32 %v545, %v627
        %v664 = vadd.f32 %v548, %v628
        %v665 = vadd.f32 %v551, %v629
        %v666 = vadd.f32 %v554, %v630
        %v667 = vadd.f32 %v557, %v631
        %v668 = vadd.f32 %v560, %v632
        %v669 = vadd.f32 %v563, %v633
        %v670 = vadd.f32 %v566, %v634
        %v671 = vadd.f32 %v569, %v635
        %v672 = vadd.f32 %v572, %v636
        %v673 = vadd.f32 %v575, %v637
        %v674 = vadd.f32 %v578, %v638
        %v675 = vadd.f32 %v581, %v639
        %v676 = vadd.f32 %v584, %v640
        %v677 = vadd.f32 %v587, %v641
        %v678 = vadd.f32 %v590, %v642
        %v679 = vadd.f32 %v593, %v643
        %v680 = vadd.f32 %v596, %v644
        %v681 = vadd.f32 %v599, %v645
        %v682 = vadd.f32 %v602, %v646
        %v683 = vadd.f32 %v605, %v647
        %v684 = vadd.f32 %v608, %v648
        %v685 = vadd.f32 %v611, %v649
        %v686 = vadd.f32 %v614, %v650
        %s687 = smul.u32 %s211, 3
        %s688 = smul.addr %s687, 4
        %s689 = scalar_lea.vmem %s209, %s688
        %v690 = vld [vmem:[%s689] sm:$0xf]
        %v691 = vld [vmem:[%s689 + $0x4] sm:$0xf]
        %v692 = vld [vmem:[%s689 + $0xc] sm:$0xf]
        %v693 = vld [vmem:[%s689 + $0x10] sm:$0xf]
        %v694 = vld [vmem:[%s689 + $0x18] sm:$0xf]
        %v695 = vld [vmem:[%s689 + $0x1c] sm:$0xf]
        %v696 = vld [vmem:[%s689 + $0x24] sm:$0xf]
        %v697 = vld [vmem:[%s689 + $0x28] sm:$0xf]
        %v698 = vld [vmem:[%s689 + $0x30] sm:$0xf]
        %v699 = vld [vmem:[%s689 + $0x34] sm:$0xf]
        %v700 = vld [vmem:[%s689 + $0x3c] sm:$0xf]
        %v701 = vld [vmem:[%s689 + $0x40] sm:$0xf]
        %v702 = vld [vmem:[%s689 + $0x48] sm:$0xf]
        %v703 = vld [vmem:[%s689 + $0x4c] sm:$0xf]
        %v704 = vld [vmem:[%s689 + $0x54] sm:$0xf]
        %v705 = vld [vmem:[%s689 + $0x58] sm:$0xf]
        %v706 = vld [vmem:[%s1] sm:$0xf]
        %v707 = vld [vmem:[%s1 + $0x4] sm:$0xf]
        %v708 = vld [vmem:[%s1 + $0x8] sm:$0xf]
        %v709 = vld [vmem:[%s1 + $0xc] sm:$0xf]
        %v710 = vld [vmem:[%s1 + $0x10] sm:$0xf]
        %v711 = vld [vmem:[%s1 + $0x14] sm:$0xf]
        %v712 = vld [vmem:[%s1 + $0x18] sm:$0xf]
        %v713 = vld [vmem:[%s1 + $0x1c] sm:$0xf]
        %v714 = vld [vmem:[%s1 + $0x20] sm:$0xf]
        %v715 = vld [vmem:[%s1 + $0x24] sm:$0xf]
        %v716 = vld [vmem:[%s1 + $0x28] sm:$0xf]
        %v717 = vld [vmem:[%s1 + $0x2c] sm:$0xf]
        %v718 = vld [vmem:[%s1 + $0x30] sm:$0xf]
        %v719 = vld [vmem:[%s1 + $0x34] sm:$0xf]
        %v720 = vld [vmem:[%s1 + $0x38] sm:$0xf]
        %v721 = vld [vmem:[%s1 + $0x3c] sm:$0xf]
        %v722 = vld [vmem:[%s1 + $0x40] sm:$0xf]
        %v723 = vld [vmem:[%s1 + $0x44] sm:$0xf]
        %v724 = vld [vmem:[%s1 + $0x48] sm:$0xf]
        %v725 = vld [vmem:[%s1 + $0x4c] sm:$0xf]
        %v726 = vld [vmem:[%s1 + $0x50] sm:$0xf]
        %v727 = vld [vmem:[%s1 + $0x54] sm:$0xf]
        %v728 = vld [vmem:[%s1 + $0x58] sm:$0xf]
        %v729 = vld [vmem:[%s1 + $0x5c] sm:$0xf]
        %v730 = vld [vmem:[%s1 + $0x60] sm:$0xf]
        %v731 = vld [vmem:[%s1 + $0x64] sm:$0xf]
        %v732 = vld [vmem:[%s1 + $0x68] sm:$0xf]
        %v733 = vld [vmem:[%s1 + $0x6c] sm:$0xf]
        %v734 = vld [vmem:[%s1 + $0x70] sm:$0xf]
        %v735 = vld [vmem:[%s1 + $0x74] sm:$0xf]
        %v736 = vld [vmem:[%s1 + $0x78] sm:$0xf]
        %v737 = vld [vmem:[%s1 + $0x7c] sm:$0xf]
        %v738 = vld [vmem:[%s1 + $0x80] sm:$0xf]
        %v739 = vld [vmem:[%s1 + $0x84] sm:$0xf]
        %v740 = vld [vmem:[%s1 + $0x88] sm:$0xf]
        %v741 = vld [vmem:[%s1 + $0x8c] sm:$0xf]
        %v742 = vld [vmem:[%s689 + $0x8] sm:$0x1]
        %v743 = vld [vmem:[%s689 + $0x14] sm:$0x1]
        %v744 = vld [vmem:[%s689 + $0x20] sm:$0x1]
        %v745 = vld [vmem:[%s689 + $0x2c] sm:$0x1]
        %v746 = vld [vmem:[%s689 + $0x38] sm:$0x1]
        %v747 = vld [vmem:[%s689 + $0x44] sm:$0x1]
        %v748 = vld [vmem:[%s689 + $0x50] sm:$0x1]
        %v749 = vld [vmem:[%s689 + $0x5c] sm:$0x1]
        %vm750 = vsmask.f32 3328
        %vm751 = vsmask.f32 7440
        %vm752 = vmor %vm750, %vm751
        %v754 = vshrl.u32 %v690, 16
        %v756 = vrot.slane %v754, 4
        %v757 = vshll.u32 %v690, 16
        %v759 = vrot.slane %v757, 5
        %v760 = vor.u32 %v756, %v759
        %v761 = vrot.slane %v760, 4
        %v763 = vshll.u32 %v691, 16
        %v765 = vrot.slane %v763, 5
        %v766 = vsel %vm752, %v761, %v765
        %v767 = vshrl.u32 %v691, 16
        %v769 = vrot.slane %v767, 4
        %v770 = vor.u32 %v769, %v765
        %v771 = vrot.slane %v770, 4
        %v773 = vshll.u32 %v742, 16
        %v775 = vrot.slane %v773, 5
        %v776 = vsel %vm752, %v771, %v775
        %v778 = vshrl.u32 %v692, 16
        %v780 = vrot.slane %v778, 4
        %v781 = vshll.u32 %v692, 16
        %v783 = vrot.slane %v781, 5
        %v784 = vor.u32 %v780, %v783
        %v785 = vrot.slane %v784, 4
        %v787 = vshll.u32 %v693, 16
        %v789 = vrot.slane %v787, 5
        %v790 = vsel %vm752, %v785, %v789
        %v791 = vshrl.u32 %v693, 16
        %v793 = vrot.slane %v791, 4
        %v794 = vor.u32 %v793, %v789
        %v795 = vrot.slane %v794, 4
        %v797 = vshll.u32 %v743, 16
        %v799 = vrot.slane %v797, 5
        %v800 = vsel %vm752, %v795, %v799
        %v802 = vshrl.u32 %v694, 16
        %v804 = vrot.slane %v802, 4
        %v805 = vshll.u32 %v694, 16
        %v807 = vrot.slane %v805, 5
        %v808 = vor.u32 %v804, %v807
        %v809 = vrot.slane %v808, 4
        %v811 = vshll.u32 %v695, 16
        %v813 = vrot.slane %v811, 5
        %v814 = vsel %vm752, %v809, %v813
        %v815 = vshrl.u32 %v695, 16
        %v817 = vrot.slane %v815, 4
        %v818 = vor.u32 %v817, %v813
        %v819 = vrot.slane %v818, 4
        %v821 = vshll.u32 %v744, 16
        %v823 = vrot.slane %v821, 5
        %v824 = vsel %vm752, %v819, %v823
        %v826 = vshrl.u32 %v696, 16
        %v828 = vrot.slane %v826, 4
        %v829 = vshll.u32 %v696, 16
        %v831 = vrot.slane %v829, 5
        %v832 = vor.u32 %v828, %v831
        %v833 = vrot.slane %v832, 4
        %v835 = vshll.u32 %v697, 16
        %v837 = vrot.slane %v835, 5
        %v838 = vsel %vm752, %v833, %v837
        %v839 = vshrl.u32 %v697, 16
        %v841 = vrot.slane %v839, 4
        %v842 = vor.u32 %v841, %v837
        %v843 = vrot.slane %v842, 4
        %v845 = vshll.u32 %v745, 16
        %v847 = vrot.slane %v845, 5
        %v848 = vsel %vm752, %v843, %v847
        %v850 = vshrl.u32 %v698, 16
        %v852 = vrot.slane %v850, 4
        %v853 = vshll.u32 %v698, 16
        %v855 = vrot.slane %v853, 5
        %v856 = vor.u32 %v852, %v855
        %v857 = vrot.slane %v856, 4
        %v859 = vshll.u32 %v699, 16
        %v861 = vrot.slane %v859, 5
        %v862 = vsel %vm752, %v857, %v861
        %v863 = vshrl.u32 %v699, 16
        %v865 = vrot.slane %v863, 4
        %v866 = vor.u32 %v865, %v861
        %v867 = vrot.slane %v866, 4
        %v869 = vshll.u32 %v746, 16
        %v871 = vrot.slane %v869, 5
        %v872 = vsel %vm752, %v867, %v871
        %v874 = vshrl.u32 %v700, 16
        %v876 = vrot.slane %v874, 4
        %v877 = vshll.u32 %v700, 16
        %v879 = vrot.slane %v877, 5
        %v880 = vor.u32 %v876, %v879
        %v881 = vrot.slane %v880, 4
        %v883 = vshll.u32 %v701, 16
        %v885 = vrot.slane %v883, 5
        %v886 = vsel %vm752, %v881, %v885
        %v887 = vshrl.u32 %v701, 16
        %v889 = vrot.slane %v887, 4
        %v890 = vor.u32 %v889, %v885
        %v891 = vrot.slane %v890, 4
        %v893 = vshll.u32 %v747, 16
        %v895 = vrot.slane %v893, 5
        %v896 = vsel %vm752, %v891, %v895
        %v898 = vshrl.u32 %v702, 16
        %v900 = vrot.slane %v898, 4
        %v901 = vshll.u32 %v702, 16
        %v903 = vrot.slane %v901, 5
        %v904 = vor.u32 %v900, %v903
        %v905 = vrot.slane %v904, 4
        %v907 = vshll.u32 %v703, 16
        %v909 = vrot.slane %v907, 5
        %v910 = vsel %vm752, %v905, %v909
        %v911 = vshrl.u32 %v703, 16
        %v913 = vrot.slane %v911, 4
        %v914 = vor.u32 %v913, %v909
        %v915 = vrot.slane %v914, 4
        %v917 = vshll.u32 %v748, 16
        %v919 = vrot.slane %v917, 5
        %v920 = vsel %vm752, %v915, %v919
        %v922 = vshrl.u32 %v704, 16
        %v924 = vrot.slane %v922, 4
        %v925 = vshll.u32 %v704, 16
        %v927 = vrot.slane %v925, 5
        %v928 = vor.u32 %v924, %v927
        %v929 = vrot.slane %v928, 4
        %v931 = vshll.u32 %v705, 16
        %v933 = vrot.slane %v931, 5
        %v934 = vsel %vm752, %v929, %v933
        %v935 = vshrl.u32 %v705, 16
        %v937 = vrot.slane %v935, 4
        %v938 = vor.u32 %v937, %v933
        %v939 = vrot.slane %v938, 4
        %v941 = vshll.u32 %v749, 16
        %v943 = vrot.slane %v941, 5
        %v944 = vsel %vm752, %v939, %v943
        %s945 = scalar_lea.vmem %s1, 144
        %v946 = vld [vmem:[%s945] sm:$0xf]
        %v947 = vld [vmem:[%s945 + $0x4] sm:$0xf]
        %v948 = vld [vmem:[%s945 + $0x8] sm:$0xf]
        %v949 = vld [vmem:[%s945 + $0xc] sm:$0xf]
        %v950 = vld [vmem:[%s945 + $0x10] sm:$0xf]
        %v951 = vld [vmem:[%s945 + $0x14] sm:$0xf]
        %v952 = vld [vmem:[%s945 + $0x18] sm:$0xf]
        %v953 = vld [vmem:[%s945 + $0x1c] sm:$0xf]
        %v954 = vld [vmem:[%s945 + $0x20] sm:$0xf]
        %v955 = vld [vmem:[%s945 + $0x24] sm:$0xf]
        %v956 = vld [vmem:[%s945 + $0x28] sm:$0xf]
        %v957 = vld [vmem:[%s945 + $0x2c] sm:$0xf]
        %v958 = vld [vmem:[%s945 + $0x30] sm:$0xf]
        %v959 = vld [vmem:[%s945 + $0x34] sm:$0xf]
        %v960 = vld [vmem:[%s945 + $0x38] sm:$0xf]
        %v961 = vld [vmem:[%s945 + $0x3c] sm:$0xf]
        %v962 = vld [vmem:[%s945 + $0x40] sm:$0xf]
        %v963 = vld [vmem:[%s945 + $0x44] sm:$0xf]
        %v964 = vld [vmem:[%s945 + $0x48] sm:$0xf]
        %v965 = vld [vmem:[%s945 + $0x4c] sm:$0xf]
        %v966 = vld [vmem:[%s945 + $0x50] sm:$0xf]
        %v967 = vld [vmem:[%s945 + $0x54] sm:$0xf]
        %v968 = vld [vmem:[%s945 + $0x58] sm:$0xf]
        %v969 = vld [vmem:[%s945 + $0x5c] sm:$0xf]
        %v970 = vld [vmem:[%s945 + $0x60] sm:$0xf]
        %v971 = vld [vmem:[%s945 + $0x64] sm:$0xf]
        %v972 = vld [vmem:[%s945 + $0x68] sm:$0xf]
        %v973 = vld [vmem:[%s945 + $0x6c] sm:$0xf]
        %v974 = vld [vmem:[%s945 + $0x70] sm:$0xf]
        %v975 = vld [vmem:[%s945 + $0x74] sm:$0xf]
        %v976 = vld [vmem:[%s945 + $0x78] sm:$0xf]
        %v977 = vld [vmem:[%s945 + $0x7c] sm:$0xf]
        %v978 = vld [vmem:[%s945 + $0x80] sm:$0xf]
        %v979 = vld [vmem:[%s945 + $0x84] sm:$0xf]
        %v980 = vld [vmem:[%s945 + $0x88] sm:$0xf]
        %v981 = vld [vmem:[%s945 + $0x8c] sm:$0xf]
        %v1018 = vunpack.c.l.b16 %v946
        %v1019 = vunpack.c.l.b16 %v947
        %v1020 = vunpack.c.l.b16 %v948
        %v1021 = vunpack.c.l.b16 %v949
        %v1022 = vunpack.c.l.b16 %v950
        %v1023 = vunpack.c.l.b16 %v951
        %v1024 = vunpack.c.l.b16 %v952
        %v1025 = vunpack.c.l.b16 %v953
        %v1026 = vunpack.c.l.b16 %v954
        %v1027 = vunpack.c.l.b16 %v955
        %v1028 = vunpack.c.l.b16 %v956
        %v1029 = vunpack.c.l.b16 %v957
        %v1030 = vunpack.c.l.b16 %v958
        %v1031 = vunpack.c.l.b16 %v959
        %v1032 = vunpack.c.l.b16 %v960
        %v1033 = vunpack.c.l.b16 %v961
        %v1034 = vunpack.c.l.b16 %v962
        %v1035 = vunpack.c.l.b16 %v963
        %v1036 = vunpack.c.l.b16 %v964
        %v1037 = vunpack.c.l.b16 %v965
        %v1038 = vunpack.c.l.b16 %v966
        %v1039 = vunpack.c.l.b16 %v967
        %v1040 = vunpack.c.l.b16 %v968
        %v1041 = vunpack.c.l.b16 %v969
        %v1042 = vunpack.c.l.b16 %v970
        %v1043 = vunpack.c.l.b16 %v971
        %v1044 = vunpack.c.l.b16 %v972
        %v1045 = vunpack.c.l.b16 %v973
        %v1046 = vunpack.c.l.b16 %v974
        %v1047 = vunpack.c.l.b16 %v975
        %v1048 = vunpack.c.l.b16 %v976
        %v1049 = vunpack.c.l.b16 %v977
        %v1050 = vunpack.c.l.b16 %v978
        %v1051 = vunpack.c.l.b16 %v979
        %v1052 = vunpack.c.l.b16 %v980
        %v1053 = vunpack.c.l.b16 %v981
        %v1054 = vpack.c.b16 %v1019, %v1018
        %v1055 = vpack.c.b16 %v1021, %v1020
        %v1056 = vpack.c.b16 %v1023, %v1022
        %v1057 = vpack.c.b16 %v1025, %v1024
        %v1058 = vpack.c.b16 %v1027, %v1026
        %v1059 = vpack.c.b16 %v1029, %v1028
        %v1060 = vpack.c.b16 %v1031, %v1030
        %v1061 = vpack.c.b16 %v1033, %v1032
        %v1062 = vpack.c.b16 %v1035, %v1034
        %v1063 = vpack.c.b16 %v1037, %v1036
        %v1064 = vpack.c.b16 %v1039, %v1038
        %v1065 = vpack.c.b16 %v1041, %v1040
        %v1066 = vpack.c.b16 %v1043, %v1042
        %v1067 = vpack.c.b16 %v1045, %v1044
        %v1068 = vpack.c.b16 %v1047, %v1046
        %v1069 = vpack.c.b16 %v1049, %v1048
        %v1070 = vpack.c.b16 %v1051, %v1050
        %v1071 = vpack.c.b16 %v1053, %v1052
        %v1072 = vunpack.c.l.b16 %v766
        %v1073 = vunpack.c.l.b16 %v776
        %v1074 = vunpack.c.l.b16 %v790
        %v1075 = vunpack.c.l.b16 %v800
        %v1076 = vunpack.c.l.b16 %v814
        %v1077 = vunpack.c.l.b16 %v824
        %v1078 = vunpack.c.l.b16 %v838
        %v1079 = vunpack.c.l.b16 %v848
        %v1080 = vunpack.c.l.b16 %v862
        %v1081 = vunpack.c.l.b16 %v872
        %v1082 = vunpack.c.l.b16 %v886
        %v1083 = vunpack.c.l.b16 %v896
        %v1084 = vunpack.c.l.b16 %v910
        %v1085 = vunpack.c.l.b16 %v920
        %v1086 = vunpack.c.l.b16 %v934
        %v1087 = vunpack.c.l.b16 %v944
        %v1088 = vpack.c.b16 %v1073, %v1072
        %v1089 = vpack.c.b16 %v1075, %v1074
        %v1090 = vpack.c.b16 %v1077, %v1076
        %v1091 = vpack.c.b16 %v1079, %v1078
        %v1092 = vpack.c.b16 %v1081, %v1080
        %v1093 = vpack.c.b16 %v1083, %v1082
        %v1094 = vpack.c.b16 %v1085, %v1084
        %v1095 = vpack.c.b16 %v1087, %v1086
        %v1097 = vsel %vm320, %v1054, 0
        %v1100 = vsel %vm320, %v1055, 0
        %v1103 = vsel %vm320, %v1056, 0
        %v1106 = vsel %vm320, %v1057, 0
        %v1109 = vsel %vm320, %v1058, 0
        %v1112 = vsel %vm320, %v1059, 0
        %v1115 = vsel %vm320, %v1060, 0
        %v1118 = vsel %vm320, %v1061, 0
        %v1121 = vsel %vm320, %v1062, 0
        %v1124 = vsel %vm320, %v1063, 0
        %v1127 = vsel %vm320, %v1064, 0
        %v1130 = vsel %vm320, %v1065, 0
        %v1133 = vsel %vm320, %v1066, 0
        %v1136 = vsel %vm320, %v1067, 0
        %v1139 = vsel %vm320, %v1068, 0
        %v1142 = vsel %vm320, %v1069, 0
        %v1145 = vsel %vm320, %v1070, 0
        %v1148 = vsel %vm320, %v1071, 0
        %v1151 = vsel %vm320, %v1088, 0
        %v1154 = vsel %vm320, %v1089, 0
        %v1157 = vsel %vm320, %v1090, 0
        %v1160 = vsel %vm320, %v1091, 0
        %v1163 = vsel %vm320, %v1092, 0
        %v1166 = vsel %vm320, %v1093, 0
        %v1169 = vsel %vm320, %v1094, 0
        %v1172 = vsel %vm320, %v1095, 0
        %1174 = vmatprep.subr.bf16.mxu0 0
        %1175 = vmatpush1.bf16.xpose.msra.mxu0 %v1151
        %1176 = vmatprep.subr.bf16.mxu0 0
        %1177 = vmatpush1.bf16.xpose.msra.mxu0 %v1154
        %1178 = vmatprep.subr.bf16.mxu0 0
        %1179 = vmatpush1.bf16.xpose.msra.mxu0 %v1157
        %1180 = vmatprep.subr.bf16.mxu0 0
        %1181 = vmatpush1.bf16.xpose.msra.mxu0 %v1160
        %1182 = vmatprep.subr.bf16.mxu0 0
        %1183 = vmatpush1.bf16.xpose.msra.mxu0 %v1163
        %1184 = vmatprep.subr.bf16.mxu0 0
        %1185 = vmatpush1.bf16.xpose.msra.mxu0 %v1166
        %1186 = vmatprep.subr.bf16.mxu0 0
        %1187 = vmatpush1.bf16.xpose.msra.mxu0 %v1169
        %1188 = vmatprep.subr.bf16.mxu0 0
        %1189 = vmatpush1.bf16.xpose.msra.mxu0 %v1172
        %1190 = vmatprep.subr.bf16.mxu0 0
        %1191 = vmatpush1.bf16.xpose.msra.mxu0 0
        %1192 = vmatprep.subr.bf16.mxu0 0
        %1193 = vmatpush1.bf16.xpose.msra.mxu0 0
        %1194 = vmatprep.subr.bf16.mxu0 0
        %1195 = vmatpush1.bf16.xpose.msra.mxu0 0
        %1196 = vmatprep.subr.bf16.mxu0 0
        %1197 = vmatpush1.bf16.xpose.msra.mxu0 0
        %1198 = vmatprep.subr.bf16.mxu0 0
        %1199 = vmatpush1.bf16.xpose.msra.mxu0 0
        %1200 = vmatprep.subr.bf16.mxu0 0
        %1201 = vmatpush1.bf16.xpose.msra.mxu0 0
        %1202 = vmatprep.subr.bf16.mxu0 0
        %1203 = vmatpush1.bf16.xpose.msra.mxu0 0
        %1204 = vmatprep.subr.bf16.mxu0 0
        %1205 = vmatpush1.bf16.xpose.msra.mxu0 0
        %1206 = vmatprep.mubr.bf16.mxu0 0
        %1207 = vmatmul.mubr.bf16.gmra.mrb[0].mxu0 %v1097
        %v1208 = vpop.f32.mrb[0].mxu0
        %v1209 = vadd.f32 0.0, %v1208
        %v1210 = vpop.f32.mrb[0].mxu0
        %v1211 = vpop.f32.mrb[0].mxu0
        %v1212 = vadd.f32 0.0, %v1211
        %v1213 = vpop.f32.mrb[0].mxu0
        %1214 = vmatprep.mubr.bf16.mxu0 0
        %1215 = vmatmul.mubr.bf16.gmra.mrb[0].mxu0 %v1100
        %v1216 = vpop.f32.mrb[0].mxu0
        %v1217 = vadd.f32 0.0, %v1216
        %v1218 = vpop.f32.mrb[0].mxu0
        %v1219 = vpop.f32.mrb[0].mxu0
        %v1220 = vadd.f32 0.0, %v1219
        %v1221 = vpop.f32.mrb[0].mxu0
        %1222 = vmatprep.mubr.bf16.mxu0 0
        %1223 = vmatmul.mubr.bf16.gmra.mrb[0].mxu0 %v1103
        %v1224 = vpop.f32.mrb[0].mxu0
        %v1225 = vadd.f32 0.0, %v1224
        %v1226 = vpop.f32.mrb[0].mxu0
        %v1227 = vpop.f32.mrb[0].mxu0
        %v1228 = vadd.f32 0.0, %v1227
        %v1229 = vpop.f32.mrb[0].mxu0
        %1230 = vmatprep.mubr.bf16.mxu0 0
        %1231 = vmatmul.mubr.bf16.gmra.mrb[0].mxu0 %v1106
        %v1232 = vpop.f32.mrb[0].mxu0
        %v1233 = vadd.f32 0.0, %v1232
        %v1234 = vpop.f32.mrb[0].mxu0
        %v1235 = vpop.f32.mrb[0].mxu0
        %v1236 = vadd.f32 0.0, %v1235
        %v1237 = vpop.f32.mrb[0].mxu0
        %1238 = vmatprep.mubr.bf16.mxu0 0
        %1239 = vmatmul.mubr.bf16.gmra.mrb[0].mxu0 %v1109
        %v1240 = vpop.f32.mrb[0].mxu0
        %v1241 = vadd.f32 0.0, %v1240
        %v1242 = vpop.f32.mrb[0].mxu0
        %v1243 = vpop.f32.mrb[0].mxu0
        %v1244 = vadd.f32 0.0, %v1243
        %v1245 = vpop.f32.mrb[0].mxu0
        %1246 = vmatprep.mubr.bf16.mxu0 0
        %1247 = vmatmul.mubr.bf16.gmra.mrb[0].mxu0 %v1112
        %v1248 = vpop.f32.mrb[0].mxu0
        %v1249 = vadd.f32 0.0, %v1248
        %v1250 = vpop.f32.mrb[0].mxu0
        %v1251 = vpop.f32.mrb[0].mxu0
        %v1252 = vadd.f32 0.0, %v1251
        %v1253 = vpop.f32.mrb[0].mxu0
        %1254 = vmatprep.mubr.bf16.mxu0 0
        %1255 = vmatmul.mubr.bf16.gmra.mrb[0].mxu0 %v1115
        %v1256 = vpop.f32.mrb[0].mxu0
        %v1257 = vadd.f32 0.0, %v1256
        %v1258 = vpop.f32.mrb[0].mxu0
        %v1259 = vpop.f32.mrb[0].mxu0
        %v1260 = vadd.f32 0.0, %v1259
        %v1261 = vpop.f32.mrb[0].mxu0
        %1262 = vmatprep.mubr.bf16.mxu0 0
        %1263 = vmatmul.mubr.bf16.gmra.mrb[0].mxu0 %v1118
        %v1264 = vpop.f32.mrb[0].mxu0
        %v1265 = vadd.f32 0.0, %v1264
        %v1266 = vpop.f32.mrb[0].mxu0
        %v1267 = vpop.f32.mrb[0].mxu0
        %v1268 = vadd.f32 0.0, %v1267
        %v1269 = vpop.f32.mrb[0].mxu0
        %1270 = vmatprep.mubr.bf16.mxu0 0
        %1271 = vmatmul.mubr.bf16.gmra.mrb[0].mxu0 %v1121
        %v1272 = vpop.f32.mrb[0].mxu0
        %v1273 = vadd.f32 0.0, %v1272
        %v1274 = vpop.f32.mrb[0].mxu0
        %v1275 = vpop.f32.mrb[0].mxu0
        %v1276 = vadd.f32 0.0, %v1275
        %v1277 = vpop.f32.mrb[0].mxu0
        %1278 = vmatprep.mubr.bf16.mxu0 0
        %1279 = vmatmul.mubr.bf16.gmra.mrb[0].mxu0 %v1124
        %v1280 = vpop.f32.mrb[0].mxu0
        %v1281 = vadd.f32 0.0, %v1280
        %v1282 = vpop.f32.mrb[0].mxu0
        %v1283 = vpop.f32.mrb[0].mxu0
        %v1284 = vadd.f32 0.0, %v1283
        %v1285 = vpop.f32.mrb[0].mxu0
        %1286 = vmatprep.mubr.bf16.mxu0 0
        %1287 = vmatmul.mubr.bf16.gmra.mrb[0].mxu0 %v1127
        %v1288 = vpop.f32.mrb[0].mxu0
        %v1289 = vadd.f32 0.0, %v1288
        %v1290 = vpop.f32.mrb[0].mxu0
        %v1291 = vpop.f32.mrb[0].mxu0
        %v1292 = vadd.f32 0.0, %v1291
        %v1293 = vpop.f32.mrb[0].mxu0
        %1294 = vmatprep.mubr.bf16.mxu0 0
        %1295 = vmatmul.mubr.bf16.gmra.mrb[0].mxu0 %v1130
        %v1296 = vpop.f32.mrb[0].mxu0
        %v1297 = vadd.f32 0.0, %v1296
        %v1298 = vpop.f32.mrb[0].mxu0
        %v1299 = vpop.f32.mrb[0].mxu0
        %v1300 = vadd.f32 0.0, %v1299
        %v1301 = vpop.f32.mrb[0].mxu0
        %1302 = vmatprep.mubr.bf16.mxu0 0
        %1303 = vmatmul.mubr.bf16.gmra.mrb[0].mxu0 %v1133
        %v1304 = vpop.f32.mrb[0].mxu0
        %v1305 = vadd.f32 0.0, %v1304
        %v1306 = vpop.f32.mrb[0].mxu0
        %v1307 = vpop.f32.mrb[0].mxu0
        %v1308 = vadd.f32 0.0, %v1307
        %v1309 = vpop.f32.mrb[0].mxu0
        %1310 = vmatprep.mubr.bf16.mxu0 0
        %1311 = vmatmul.mubr.bf16.gmra.mrb[0].mxu0 %v1136
        %v1312 = vpop.f32.mrb[0].mxu0
        %v1313 = vadd.f32 0.0, %v1312
        %v1314 = vpop.f32.mrb[0].mxu0
        %v1315 = vpop.f32.mrb[0].mxu0
        %v1316 = vadd.f32 0.0, %v1315
        %v1317 = vpop.f32.mrb[0].mxu0
        %1318 = vmatprep.mubr.bf16.mxu0 0
        %1319 = vmatmul.mubr.bf16.gmra.mrb[0].mxu0 %v1139
        %v1320 = vpop.f32.mrb[0].mxu0
        %v1321 = vadd.f32 0.0, %v1320
        %v1322 = vpop.f32.mrb[0].mxu0
        %v1323 = vpop.f32.mrb[0].mxu0
        %v1324 = vadd.f32 0.0, %v1323
        %v1325 = vpop.f32.mrb[0].mxu0
        %1326 = vmatprep.mubr.bf16.mxu0 0
        %1327 = vmatmul.mubr.bf16.gmra.mrb[0].mxu0 %v1142
        %v1328 = vpop.f32.mrb[0].mxu0
        %v1329 = vadd.f32 0.0, %v1328
        %v1330 = vpop.f32.mrb[0].mxu0
        %v1331 = vpop.f32.mrb[0].mxu0
        %v1332 = vadd.f32 0.0, %v1331
        %v1333 = vpop.f32.mrb[0].mxu0
        %1334 = vmatprep.mubr.bf16.mxu0 0
        %1335 = vmatmul.mubr.bf16.gmra.mrb[0].mxu0 %v1145
        %v1336 = vpop.f32.mrb[0].mxu0
        %v1337 = vadd.f32 0.0, %v1336
        %v1338 = vpop.f32.mrb[0].mxu0
        %v1339 = vpop.f32.mrb[0].mxu0
        %v1340 = vadd.f32 0.0, %v1339
        %v1341 = vpop.f32.mrb[0].mxu0
        %1342 = vmatprep.mubr.bf16.mxu0 0
        %1343 = vmatmul.mubr.bf16.gmra.mrb[0].mxu0 %v1148
        %v1344 = vpop.f32.mrb[0].mxu0
        %v1345 = vadd.f32 0.0, %v1344
        %v1346 = vpop.f32.mrb[0].mxu0
        %v1347 = vpop.f32.mrb[0].mxu0
        %v1348 = vadd.f32 0.0, %v1347
        %v1349 = vpop.f32.mrb[0].mxu0
        %1350 = vdwg.mxu0
        %v1387 = vunpack.c.l.b16 %v706
        %v1388 = vunpack.c.l.b16 %v707
        %v1389 = vunpack.c.l.b16 %v708
        %v1390 = vunpack.c.l.b16 %v709
        %v1391 = vunpack.c.l.b16 %v710
        %v1392 = vunpack.c.l.b16 %v711
        %v1393 = vunpack.c.l.b16 %v712
        %v1394 = vunpack.c.l.b16 %v713
        %v1395 = vunpack.c.l.b16 %v714
        %v1396 = vunpack.c.l.b16 %v715
        %v1397 = vunpack.c.l.b16 %v716
        %v1398 = vunpack.c.l.b16 %v717
        %v1399 = vunpack.c.l.b16 %v718
        %v1400 = vunpack.c.l.b16 %v719
        %v1401 = vunpack.c.l.b16 %v720
        %v1402 = vunpack.c.l.b16 %v721
        %v1403 = vunpack.c.l.b16 %v722
        %v1404 = vunpack.c.l.b16 %v723
        %v1405 = vunpack.c.l.b16 %v724
        %v1406 = vunpack.c.l.b16 %v725
        %v1407 = vunpack.c.l.b16 %v726
        %v1408 = vunpack.c.l.b16 %v727
        %v1409 = vunpack.c.l.b16 %v728
        %v1410 = vunpack.c.l.b16 %v729
        %v1411 = vunpack.c.l.b16 %v730
        %v1412 = vunpack.c.l.b16 %v731
        %v1413 = vunpack.c.l.b16 %v732
        %v1414 = vunpack.c.l.b16 %v733
        %v1415 = vunpack.c.l.b16 %v734
        %v1416 = vunpack.c.l.b16 %v735
        %v1417 = vunpack.c.l.b16 %v736
        %v1418 = vunpack.c.l.b16 %v737
        %v1419 = vunpack.c.l.b16 %v738
        %v1420 = vunpack.c.l.b16 %v739
        %v1421 = vunpack.c.l.b16 %v740
        %v1422 = vunpack.c.l.b16 %v741
        %v1423 = vpack.c.b16 %v1388, %v1387
        %v1424 = vpack.c.b16 %v1390, %v1389
        %v1425 = vpack.c.b16 %v1392, %v1391
        %v1426 = vpack.c.b16 %v1394, %v1393
        %v1427 = vpack.c.b16 %v1396, %v1395
        %v1428 = vpack.c.b16 %v1398, %v1397
        %v1429 = vpack.c.b16 %v1400, %v1399
        %v1430 = vpack.c.b16 %v1402, %v1401
        %v1431 = vpack.c.b16 %v1404, %v1403
        %v1432 = vpack.c.b16 %v1406, %v1405
        %v1433 = vpack.c.b16 %v1408, %v1407
        %v1434 = vpack.c.b16 %v1410, %v1409
        %v1435 = vpack.c.b16 %v1412, %v1411
        %v1436 = vpack.c.b16 %v1414, %v1413
        %v1437 = vpack.c.b16 %v1416, %v1415
        %v1438 = vpack.c.b16 %v1418, %v1417
        %v1439 = vpack.c.b16 %v1420, %v1419
        %v1440 = vpack.c.b16 %v1422, %v1421
        %v1457 = vunpack.c.l.b16 %v690
        %v1458 = vunpack.c.l.b16 %v691
        %v1459 = vunpack.c.l.b16 %v692
        %v1460 = vunpack.c.l.b16 %v693
        %v1461 = vunpack.c.l.b16 %v694
        %v1462 = vunpack.c.l.b16 %v695
        %v1463 = vunpack.c.l.b16 %v696
        %v1464 = vunpack.c.l.b16 %v697
        %v1465 = vunpack.c.l.b16 %v698
        %v1466 = vunpack.c.l.b16 %v699
        %v1467 = vunpack.c.l.b16 %v700
        %v1468 = vunpack.c.l.b16 %v701
        %v1469 = vunpack.c.l.b16 %v702
        %v1470 = vunpack.c.l.b16 %v703
        %v1471 = vunpack.c.l.b16 %v704
        %v1472 = vunpack.c.l.b16 %v705
        %v1473 = vpack.c.b16 %v1458, %v1457
        %v1474 = vpack.c.b16 %v1460, %v1459
        %v1475 = vpack.c.b16 %v1462, %v1461
        %v1476 = vpack.c.b16 %v1464, %v1463
        %v1477 = vpack.c.b16 %v1466, %v1465
        %v1478 = vpack.c.b16 %v1468, %v1467
        %v1479 = vpack.c.b16 %v1470, %v1469
        %v1480 = vpack.c.b16 %v1472, %v1471
        %v1482 = vsel %vm320, %v1423, 0
        %v1485 = vsel %vm320, %v1424, 0
        %v1488 = vsel %vm320, %v1425, 0
        %v1491 = vsel %vm320, %v1426, 0
        %v1494 = vsel %vm320, %v1427, 0
        %v1497 = vsel %vm320, %v1428, 0
        %v1500 = vsel %vm320, %v1429, 0
        %v1503 = vsel %vm320, %v1430, 0
        %v1506 = vsel %vm320, %v1431, 0
        %v1509 = vsel %vm320, %v1432, 0
        %v1512 = vsel %vm320, %v1433, 0
        %v1515 = vsel %vm320, %v1434, 0
        %v1518 = vsel %vm320, %v1435, 0
        %v1521 = vsel %vm320, %v1436, 0
        %v1524 = vsel %vm320, %v1437, 0
        %v1527 = vsel %vm320, %v1438, 0
        %v1530 = vsel %vm320, %v1439, 0
        %v1533 = vsel %vm320, %v1440, 0
        %v1536 = vsel %vm320, %v1473, 0
        %v1539 = vsel %vm320, %v1474, 0
        %v1542 = vsel %vm320, %v1475, 0
        %v1545 = vsel %vm320, %v1476, 0
        %v1548 = vsel %vm320, %v1477, 0
        %v1551 = vsel %vm320, %v1478, 0
        %v1554 = vsel %vm320, %v1479, 0
        %v1557 = vsel %vm320, %v1480, 0
        %1559 = vmatprep.subr.bf16.mxu0 0
        %1560 = vmatpush1.bf16.xpose.msra.mxu0 %v1536
        %1561 = vmatprep.subr.bf16.mxu0 0
        %1562 = vmatpush1.bf16.xpose.msra.mxu0 %v1539
        %1563 = vmatprep.subr.bf16.mxu0 0
        %1564 = vmatpush1.bf16.xpose.msra.mxu0 %v1542
        %1565 = vmatprep.subr.bf16.mxu0 0
        %1566 = vmatpush1.bf16.xpose.msra.mxu0 %v1545
        %1567 = vmatprep.subr.bf16.mxu0 0
        %1568 = vmatpush1.bf16.xpose.msra.mxu0 %v1548
        %1569 = vmatprep.subr.bf16.mxu0 0
        %1570 = vmatpush1.bf16.xpose.msra.mxu0 %v1551
        %1571 = vmatprep.subr.bf16.mxu0 0
        %1572 = vmatpush1.bf16.xpose.msra.mxu0 %v1554
        %1573 = vmatprep.subr.bf16.mxu0 0
        %1574 = vmatpush1.bf16.xpose.msra.mxu0 %v1557
        %1575 = vmatprep.subr.bf16.mxu0 0
        %1576 = vmatpush1.bf16.xpose.msra.mxu0 0
        %1577 = vmatprep.subr.bf16.mxu0 0
        %1578 = vmatpush1.bf16.xpose.msra.mxu0 0
        %1579 = vmatprep.subr.bf16.mxu0 0
        %1580 = vmatpush1.bf16.xpose.msra.mxu0 0
        %1581 = vmatprep.subr.bf16.mxu0 0
        %1582 = vmatpush1.bf16.xpose.msra.mxu0 0
        %1583 = vmatprep.subr.bf16.mxu0 0
        %1584 = vmatpush1.bf16.xpose.msra.mxu0 0
        %1585 = vmatprep.subr.bf16.mxu0 0
        %1586 = vmatpush1.bf16.xpose.msra.mxu0 0
        %1587 = vmatprep.subr.bf16.mxu0 0
        %1588 = vmatpush1.bf16.xpose.msra.mxu0 0
        %1589 = vmatprep.subr.bf16.mxu0 0
        %1590 = vmatpush1.bf16.xpose.msra.mxu0 0
        %1591 = vmatprep.mubr.bf16.mxu0 0
        %1592 = vmatmul.mubr.bf16.gmra.mrb[0].mxu0 %v1482
        %v1593 = vpop.f32.mrb[0].mxu0
        %v1594 = vadd.f32 %v1209, %v1593
        %v1595 = vpop.f32.mrb[0].mxu0
        %v1596 = vpop.f32.mrb[0].mxu0
        %v1597 = vadd.f32 %v1212, %v1596
        %v1598 = vpop.f32.mrb[0].mxu0
        %1599 = vmatprep.mubr.bf16.mxu0 0
        %1600 = vmatmul.mubr.bf16.gmra.mrb[0].mxu0 %v1485
        %v1601 = vpop.f32.mrb[0].mxu0
        %v1602 = vadd.f32 %v1217, %v1601
        %v1603 = vpop.f32.mrb[0].mxu0
        %v1604 = vpop.f32.mrb[0].mxu0
        %v1605 = vadd.f32 %v1220, %v1604
        %v1606 = vpop.f32.mrb[0].mxu0
        %1607 = vmatprep.mubr.bf16.mxu0 0
        %1608 = vmatmul.mubr.bf16.gmra.mrb[0].mxu0 %v1488
        %v1609 = vpop.f32.mrb[0].mxu0
        %v1610 = vadd.f32 %v1225, %v1609
        %v1611 = vpop.f32.mrb[0].mxu0
        %v1612 = vpop.f32.mrb[0].mxu0
        %v1613 = vadd.f32 %v1228, %v1612
        %v1614 = vpop.f32.mrb[0].mxu0
        %1615 = vmatprep.mubr.bf16.mxu0 0
        %1616 = vmatmul.mubr.bf16.gmra.mrb[0].mxu0 %v1491
        %v1617 = vpop.f32.mrb[0].mxu0
        %v1618 = vadd.f32 %v1233, %v1617
        %v1619 = vpop.f32.mrb[0].mxu0
        %v1620 = vpop.f32.mrb[0].mxu0
        %v1621 = vadd.f32 %v1236, %v1620
        %v1622 = vpop.f32.mrb[0].mxu0
        %1623 = vmatprep.mubr.bf16.mxu0 0
        %1624 = vmatmul.mubr.bf16.gmra.mrb[0].mxu0 %v1494
        %v1625 = vpop.f32.mrb[0].mxu0
        %v1626 = vadd.f32 %v1241, %v1625
        %v1627 = vpop.f32.mrb[0].mxu0
        %v1628 = vpop.f32.mrb[0].mxu0
        %v1629 = vadd.f32 %v1244, %v1628
        %v1630 = vpop.f32.mrb[0].mxu0
        %1631 = vmatprep.mubr.bf16.mxu0 0
        %1632 = vmatmul.mubr.bf16.gmra.mrb[0].mxu0 %v1497
        %v1633 = vpop.f32.mrb[0].mxu0
        %v1634 = vadd.f32 %v1249, %v1633
        %v1635 = vpop.f32.mrb[0].mxu0
        %v1636 = vpop.f32.mrb[0].mxu0
        %v1637 = vadd.f32 %v1252, %v1636
        %v1638 = vpop.f32.mrb[0].mxu0
        %1639 = vmatprep.mubr.bf16.mxu0 0
        %1640 = vmatmul.mubr.bf16.gmra.mrb[0].mxu0 %v1500
        %v1641 = vpop.f32.mrb[0].mxu0
        %v1642 = vadd.f32 %v1257, %v1641
        %v1643 = vpop.f32.mrb[0].mxu0
        %v1644 = vpop.f32.mrb[0].mxu0
        %v1645 = vadd.f32 %v1260, %v1644
        %v1646 = vpop.f32.mrb[0].mxu0
        %1647 = vmatprep.mubr.bf16.mxu0 0
        %1648 = vmatmul.mubr.bf16.gmra.mrb[0].mxu0 %v1503
        %v1649 = vpop.f32.mrb[0].mxu0
        %v1650 = vadd.f32 %v1265, %v1649
        %v1651 = vpop.f32.mrb[0].mxu0
        %v1652 = vpop.f32.mrb[0].mxu0
        %v1653 = vadd.f32 %v1268, %v1652
        %v1654 = vpop.f32.mrb[0].mxu0
        %1655 = vmatprep.mubr.bf16.mxu0 0
        %1656 = vmatmul.mubr.bf16.gmra.mrb[0].mxu0 %v1506
        %v1657 = vpop.f32.mrb[0].mxu0
        %v1658 = vadd.f32 %v1273, %v1657
        %v1659 = vpop.f32.mrb[0].mxu0
        %v1660 = vpop.f32.mrb[0].mxu0
        %v1661 = vadd.f32 %v1276, %v1660
        %v1662 = vpop.f32.mrb[0].mxu0
        %1663 = vmatprep.mubr.bf16.mxu0 0
        %1664 = vmatmul.mubr.bf16.gmra.mrb[0].mxu0 %v1509
        %v1665 = vpop.f32.mrb[0].mxu0
        %v1666 = vadd.f32 %v1281, %v1665
        %v1667 = vpop.f32.mrb[0].mxu0
        %v1668 = vpop.f32.mrb[0].mxu0
        %v1669 = vadd.f32 %v1284, %v1668
        %v1670 = vpop.f32.mrb[0].mxu0
        %1671 = vmatprep.mubr.bf16.mxu0 0
        %1672 = vmatmul.mubr.bf16.gmra.mrb[0].mxu0 %v1512
        %v1673 = vpop.f32.mrb[0].mxu0
        %v1674 = vadd.f32 %v1289, %v1673
        %v1675 = vpop.f32.mrb[0].mxu0
        %v1676 = vpop.f32.mrb[0].mxu0
        %v1677 = vadd.f32 %v1292, %v1676
        %v1678 = vpop.f32.mrb[0].mxu0
        %1679 = vmatprep.mubr.bf16.mxu0 0
        %1680 = vmatmul.mubr.bf16.gmra.mrb[0].mxu0 %v1515
        %v1681 = vpop.f32.mrb[0].mxu0
        %v1682 = vadd.f32 %v1297, %v1681
        %v1683 = vpop.f32.mrb[0].mxu0
        %v1684 = vpop.f32.mrb[0].mxu0
        %v1685 = vadd.f32 %v1300, %v1684
        %v1686 = vpop.f32.mrb[0].mxu0
        %1687 = vmatprep.mubr.bf16.mxu0 0
        %1688 = vmatmul.mubr.bf16.gmra.mrb[0].mxu0 %v1518
        %v1689 = vpop.f32.mrb[0].mxu0
        %v1690 = vadd.f32 %v1305, %v1689
        %v1691 = vpop.f32.mrb[0].mxu0
        %v1692 = vpop.f32.mrb[0].mxu0
        %v1693 = vadd.f32 %v1308, %v1692
        %v1694 = vpop.f32.mrb[0].mxu0
        %1695 = vmatprep.mubr.bf16.mxu0 0
        %1696 = vmatmul.mubr.bf16.gmra.mrb[0].mxu0 %v1521
        %v1697 = vpop.f32.mrb[0].mxu0
        %v1698 = vadd.f32 %v1313, %v1697
        %v1699 = vpop.f32.mrb[0].mxu0
        %v1700 = vpop.f32.mrb[0].mxu0
        %v1701 = vadd.f32 %v1316, %v1700
        %v1702 = vpop.f32.mrb[0].mxu0
        %1703 = vmatprep.mubr.bf16.mxu0 0
        %1704 = vmatmul.mubr.bf16.gmra.mrb[0].mxu0 %v1524
        %v1705 = vpop.f32.mrb[0].mxu0
        %v1706 = vadd.f32 %v1321, %v1705
        %v1707 = vpop.f32.mrb[0].mxu0
        %v1708 = vpop.f32.mrb[0].mxu0
        %v1709 = vadd.f32 %v1324, %v1708
        %v1710 = vpop.f32.mrb[0].mxu0
        %1711 = vmatprep.mubr.bf16.mxu0 0
        %1712 = vmatmul.mubr.bf16.gmra.mrb[0].mxu0 %v1527
        %v1713 = vpop.f32.mrb[0].mxu0
        %v1714 = vadd.f32 %v1329, %v1713
        %v1715 = vpop.f32.mrb[0].mxu0
        %v1716 = vpop.f32.mrb[0].mxu0
        %v1717 = vadd.f32 %v1332, %v1716
        %v1718 = vpop.f32.mrb[0].mxu0
        %1719 = vmatprep.mubr.bf16.mxu0 0
        %1720 = vmatmul.mubr.bf16.gmra.mrb[0].mxu0 %v1530
        %v1721 = vpop.f32.mrb[0].mxu0
        %v1722 = vadd.f32 %v1337, %v1721
        %v1723 = vpop.f32.mrb[0].mxu0
        %v1724 = vpop.f32.mrb[0].mxu0
        %v1725 = vadd.f32 %v1340, %v1724
        %v1726 = vpop.f32.mrb[0].mxu0
        %1727 = vmatprep.mubr.bf16.mxu0 0
        %1728 = vmatmul.mubr.bf16.gmra.mrb[0].mxu0 %v1533
        %v1729 = vpop.f32.mrb[0].mxu0
        %v1730 = vadd.f32 %v1345, %v1729
        %v1731 = vpop.f32.mrb[0].mxu0
        %v1732 = vpop.f32.mrb[0].mxu0
        %v1733 = vadd.f32 %v1348, %v1732
        %v1734 = vpop.f32.mrb[0].mxu0
        %1735 = vdwg.mxu0
        %v1736 = vld [vmem:[%s689] sm:$0xe]
        %v1737 = vld [vmem:[%s689 + $0xc] sm:$0xe]
        %v1738 = vld [vmem:[%s689 + $0x18] sm:$0xe]
        %v1739 = vld [vmem:[%s689 + $0x24] sm:$0xe]
        %v1740 = vld [vmem:[%s689 + $0x30] sm:$0xe]
        %v1741 = vld [vmem:[%s689 + $0x3c] sm:$0xe]
        %v1742 = vld [vmem:[%s689 + $0x48] sm:$0xe]
        %v1743 = vld [vmem:[%s689 + $0x54] sm:$0xe]
        %vm1760 = vcmask 1042432
        %vm1761 = vcmask 1046532
        %vm1762 = vmor %vm1760, %vm1761
        %v1763 = vrot.slane %v1736, 5
        %v1764 = vrot.slane %v1763, 4
        %v1765 = vrot.slane %v691, 5
        %v1766 = vsel %vm1762, %v1764, %v1765
        %v1767 = vrot.slane %v1765, 4
        %v1768 = vrot.slane %v742, 5
        %v1769 = vsel %vm1762, %v1767, %v1768
        %v1770 = vrot.slane %v1737, 5
        %v1771 = vrot.slane %v1770, 4
        %v1772 = vrot.slane %v693, 5
        %v1773 = vsel %vm1762, %v1771, %v1772
        %v1774 = vrot.slane %v1772, 4
        %v1775 = vrot.slane %v743, 5
        %v1776 = vsel %vm1762, %v1774, %v1775
        %v1777 = vrot.slane %v1738, 5
        %v1778 = vrot.slane %v1777, 4
        %v1779 = vrot.slane %v695, 5
        %v1780 = vsel %vm1762, %v1778, %v1779
        %v1781 = vrot.slane %v1779, 4
        %v1782 = vrot.slane %v744, 5
        %v1783 = vsel %vm1762, %v1781, %v1782
        %v1784 = vrot.slane %v1739, 5
        %v1785 = vrot.slane %v1784, 4
        %v1786 = vrot.slane %v697, 5
        %v1787 = vsel %vm1762, %v1785, %v1786
        %v1788 = vrot.slane %v1786, 4
        %v1789 = vrot.slane %v745, 5
        %v1790 = vsel %vm1762, %v1788, %v1789
        %v1791 = vrot.slane %v1740, 5
        %v1792 = vrot.slane %v1791, 4
        %v1793 = vrot.slane %v699, 5
        %v1794 = vsel %vm1762, %v1792, %v1793
        %v1795 = vrot.slane %v1793, 4
        %v1796 = vrot.slane %v746, 5
        %v1797 = vsel %vm1762, %v1795, %v1796
        %v1798 = vrot.slane %v1741, 5
        %v1799 = vrot.slane %v1798, 4
        %v1800 = vrot.slane %v701, 5
        %v1801 = vsel %vm1762, %v1799, %v1800
        %v1802 = vrot.slane %v1800, 4
        %v1803 = vrot.slane %v747, 5
        %v1804 = vsel %vm1762, %v1802, %v1803
        %v1805 = vrot.slane %v1742, 5
        %v1806 = vrot.slane %v1805, 4
        %v1807 = vrot.slane %v703, 5
        %v1808 = vsel %vm1762, %v1806, %v1807
        %v1809 = vrot.slane %v1807, 4
        %v1810 = vrot.slane %v748, 5
        %v1811 = vsel %vm1762, %v1809, %v1810
        %v1812 = vrot.slane %v1743, 5
        %v1813 = vrot.slane %v1812, 4
        %v1814 = vrot.slane %v705, 5
        %v1815 = vsel %vm1762, %v1813, %v1814
        %v1816 = vrot.slane %v1814, 4
        %v1817 = vrot.slane %v749, 5
        %v1818 = vsel %vm1762, %v1816, %v1817
        %s1819 = scalar_lea.vmem %s1, 288
        %v1820 = vld [vmem:[%s1819] sm:$0xf]
        %v1821 = vld [vmem:[%s1819 + $0x4] sm:$0xf]
        %v1822 = vld [vmem:[%s1819 + $0x8] sm:$0xf]
        %v1823 = vld [vmem:[%s1819 + $0xc] sm:$0xf]
        %v1824 = vld [vmem:[%s1819 + $0x10] sm:$0xf]
        %v1825 = vld [vmem:[%s1819 + $0x14] sm:$0xf]
        %v1826 = vld [vmem:[%s1819 + $0x18] sm:$0xf]
        %v1827 = vld [vmem:[%s1819 + $0x1c] sm:$0xf]
        %v1828 = vld [vmem:[%s1819 + $0x20] sm:$0xf]
        %v1829 = vld [vmem:[%s1819 + $0x24] sm:$0xf]
        %v1830 = vld [vmem:[%s1819 + $0x28] sm:$0xf]
        %v1831 = vld [vmem:[%s1819 + $0x2c] sm:$0xf]
        %v1832 = vld [vmem:[%s1819 + $0x30] sm:$0xf]
        %v1833 = vld [vmem:[%s1819 + $0x34] sm:$0xf]
        %v1834 = vld [vmem:[%s1819 + $0x38] sm:$0xf]
        %v1835 = vld [vmem:[%s1819 + $0x3c] sm:$0xf]
        %v1836 = vld [vmem:[%s1819 + $0x40] sm:$0xf]
        %v1837 = vld [vmem:[%s1819 + $0x44] sm:$0xf]
        %v1838 = vld [vmem:[%s1819 + $0x48] sm:$0xf]
        %v1839 = vld [vmem:[%s1819 + $0x4c] sm:$0xf]
        %v1840 = vld [vmem:[%s1819 + $0x50] sm:$0xf]
        %v1841 = vld [vmem:[%s1819 + $0x54] sm:$0xf]
        %v1842 = vld [vmem:[%s1819 + $0x58] sm:$0xf]
        %v1843 = vld [vmem:[%s1819 + $0x5c] sm:$0xf]
        %v1844 = vld [vmem:[%s1819 + $0x60] sm:$0xf]
        %v1845 = vld [vmem:[%s1819 + $0x64] sm:$0xf]
        %v1846 = vld [vmem:[%s1819 + $0x68] sm:$0xf]
        %v1847 = vld [vmem:[%s1819 + $0x6c] sm:$0xf]
        %v1848 = vld [vmem:[%s1819 + $0x70] sm:$0xf]
        %v1849 = vld [vmem:[%s1819 + $0x74] sm:$0xf]
        %v1850 = vld [vmem:[%s1819 + $0x78] sm:$0xf]
        %v1851 = vld [vmem:[%s1819 + $0x7c] sm:$0xf]
        %v1852 = vld [vmem:[%s1819 + $0x80] sm:$0xf]
        %v1853 = vld [vmem:[%s1819 + $0x84] sm:$0xf]
        %v1854 = vld [vmem:[%s1819 + $0x88] sm:$0xf]
        %v1855 = vld [vmem:[%s1819 + $0x8c] sm:$0xf]
        %v1892 = vunpack.c.l.b16 %v1820
        %v1893 = vunpack.c.l.b16 %v1821
        %v1894 = vunpack.c.l.b16 %v1822
        %v1895 = vunpack.c.l.b16 %v1823
        %v1896 = vunpack.c.l.b16 %v1824
        %v1897 = vunpack.c.l.b16 %v1825
        %v1898 = vunpack.c.l.b16 %v1826
        %v1899 = vunpack.c.l.b16 %v1827
        %v1900 = vunpack.c.l.b16 %v1828
        %v1901 = vunpack.c.l.b16 %v1829
        %v1902 = vunpack.c.l.b16 %v1830
        %v1903 = vunpack.c.l.b16 %v1831
        %v1904 = vunpack.c.l.b16 %v1832
        %v1905 = vunpack.c.l.b16 %v1833
        %v1906 = vunpack.c.l.b16 %v1834
        %v1907 = vunpack.c.l.b16 %v1835
        %v1908 = vunpack.c.l.b16 %v1836
        %v1909 = vunpack.c.l.b16 %v1837
        %v1910 = vunpack.c.l.b16 %v1838
        %v1911 = vunpack.c.l.b16 %v1839
        %v1912 = vunpack.c.l.b16 %v1840
        %v1913 = vunpack.c.l.b16 %v1841
        %v1914 = vunpack.c.l.b16 %v1842
        %v1915 = vunpack.c.l.b16 %v1843
        %v1916 = vunpack.c.l.b16 %v1844
        %v1917 = vunpack.c.l.b16 %v1845
        %v1918 = vunpack.c.l.b16 %v1846
        %v1919 = vunpack.c.l.b16 %v1847
        %v1920 = vunpack.c.l.b16 %v1848
        %v1921 = vunpack.c.l.b16 %v1849
        %v1922 = vunpack.c.l.b16 %v1850
        %v1923 = vunpack.c.l.b16 %v1851
        %v1924 = vunpack.c.l.b16 %v1852
        %v1925 = vunpack.c.l.b16 %v1853
        %v1926 = vunpack.c.l.b16 %v1854
        %v1927 = vunpack.c.l.b16 %v1855
        %v1928 = vpack.c.b16 %v1893, %v1892
        %v1929 = vpack.c.b16 %v1895, %v1894
        %v1930 = vpack.c.b16 %v1897, %v1896
        %v1931 = vpack.c.b16 %v1899, %v1898
        %v1932 = vpack.c.b16 %v1901, %v1900
        %v1933 = vpack.c.b16 %v1903, %v1902
        %v1934 = vpack.c.b16 %v1905, %v1904
        %v1935 = vpack.c.b16 %v1907, %v1906
        %v1936 = vpack.c.b16 %v1909, %v1908
        %v1937 = vpack.c.b16 %v1911, %v1910
        %v1938 = vpack.c.b16 %v1913, %v1912
        %v1939 = vpack.c.b16 %v1915, %v1914
        %v1940 = vpack.c.b16 %v1917, %v1916
        %v1941 = vpack.c.b16 %v1919, %v1918
        %v1942 = vpack.c.b16 %v1921, %v1920
        %v1943 = vpack.c.b16 %v1923, %v1922
        %v1944 = vpack.c.b16 %v1925, %v1924
        %v1945 = vpack.c.b16 %v1927, %v1926
        %v1946 = vunpack.c.l.b16 %v1766
        %v1947 = vunpack.c.l.b16 %v1769
        %v1948 = vunpack.c.l.b16 %v1773
        %v1949 = vunpack.c.l.b16 %v1776
        %v1950 = vunpack.c.l.b16 %v1780
        %v1951 = vunpack.c.l.b16 %v1783
        %v1952 = vunpack.c.l.b16 %v1787
        %v1953 = vunpack.c.l.b16 %v1790
        %v1954 = vunpack.c.l.b16 %v1794
        %v1955 = vunpack.c.l.b16 %v1797
        %v1956 = vunpack.c.l.b16 %v1801
        %v1957 = vunpack.c.l.b16 %v1804
        %v1958 = vunpack.c.l.b16 %v1808
        %v1959 = vunpack.c.l.b16 %v1811
        %v1960 = vunpack.c.l.b16 %v1815
        %v1961 = vunpack.c.l.b16 %v1818
        %v1962 = vpack.c.b16 %v1947, %v1946
        %v1963 = vpack.c.b16 %v1949, %v1948
        %v1964 = vpack.c.b16 %v1951, %v1950
        %v1965 = vpack.c.b16 %v1953, %v1952
        %v1966 = vpack.c.b16 %v1955, %v1954
        %v1967 = vpack.c.b16 %v1957, %v1956
        %v1968 = vpack.c.b16 %v1959, %v1958
        %v1969 = vpack.c.b16 %v1961, %v1960
        %v1971 = vsel %vm320, %v1928, 0
        %v1974 = vsel %vm320, %v1929, 0
        %v1977 = vsel %vm320, %v1930, 0
        %v1980 = vsel %vm320, %v1931, 0
        %v1983 = vsel %vm320, %v1932, 0
        %v1986 = vsel %vm320, %v1933, 0
        %v1989 = vsel %vm320, %v1934, 0
        %v1992 = vsel %vm320, %v1935, 0
        %v1995 = vsel %vm320, %v1936, 0
        %v1998 = vsel %vm320, %v1937, 0
        %v2001 = vsel %vm320, %v1938, 0
        %v2004 = vsel %vm320, %v1939, 0
        %v2007 = vsel %vm320, %v1940, 0
        %v2010 = vsel %vm320, %v1941, 0
        %v2013 = vsel %vm320, %v1942, 0
        %v2016 = vsel %vm320, %v1943, 0
        %v2019 = vsel %vm320, %v1944, 0
        %v2022 = vsel %vm320, %v1945, 0
        %v2025 = vsel %vm320, %v1962, 0
        %v2028 = vsel %vm320, %v1963, 0
        %v2031 = vsel %vm320, %v1964, 0
        %v2034 = vsel %vm320, %v1965, 0
        %v2037 = vsel %vm320, %v1966, 0
        %v2040 = vsel %vm320, %v1967, 0
        %v2043 = vsel %vm320, %v1968, 0
        %v2046 = vsel %vm320, %v1969, 0
        %2048 = vmatprep.subr.bf16.mxu0 0
        %2049 = vmatpush1.bf16.xpose.msra.mxu0 %v2025
        %2050 = vmatprep.subr.bf16.mxu0 0
        %2051 = vmatpush1.bf16.xpose.msra.mxu0 %v2028
        %2052 = vmatprep.subr.bf16.mxu0 0
        %2053 = vmatpush1.bf16.xpose.msra.mxu0 %v2031
        %2054 = vmatprep.subr.bf16.mxu0 0
        %2055 = vmatpush1.bf16.xpose.msra.mxu0 %v2034
        %2056 = vmatprep.subr.bf16.mxu0 0
        %2057 = vmatpush1.bf16.xpose.msra.mxu0 %v2037
        %2058 = vmatprep.subr.bf16.mxu0 0
        %2059 = vmatpush1.bf16.xpose.msra.mxu0 %v2040
        %2060 = vmatprep.subr.bf16.mxu0 0
        %2061 = vmatpush1.bf16.xpose.msra.mxu0 %v2043
        %2062 = vmatprep.subr.bf16.mxu0 0
        %2063 = vmatpush1.bf16.xpose.msra.mxu0 %v2046
        %2064 = vmatprep.subr.bf16.mxu0 0
        %2065 = vmatpush1.bf16.xpose.msra.mxu0 0
        %2066 = vmatprep.subr.bf16.mxu0 0
        %2067 = vmatpush1.bf16.xpose.msra.mxu0 0
        %2068 = vmatprep.subr.bf16.mxu0 0
        %2069 = vmatpush1.bf16.xpose.msra.mxu0 0
        %2070 = vmatprep.subr.bf16.mxu0 0
        %2071 = vmatpush1.bf16.xpose.msra.mxu0 0
        %2072 = vmatprep.subr.bf16.mxu0 0
        %2073 = vmatpush1.bf16.xpose.msra.mxu0 0
        %2074 = vmatprep.subr.bf16.mxu0 0
        %2075 = vmatpush1.bf16.xpose.msra.mxu0 0
        %2076 = vmatprep.subr.bf16.mxu0 0
        %2077 = vmatpush1.bf16.xpose.msra.mxu0 0
        %2078 = vmatprep.subr.bf16.mxu0 0
        %2079 = vmatpush1.bf16.xpose.msra.mxu0 0
        %2080 = vmatprep.mubr.bf16.mxu0 0
        %2081 = vmatmul.mubr.bf16.gmra.mrb[0].mxu0 %v1971
        %v2082 = vpop.f32.mrb[0].mxu0
        %v2083 = vadd.f32 0.0, %v2082
        %v2084 = vpop.f32.mrb[0].mxu0
        %v2085 = vpop.f32.mrb[0].mxu0
        %v2086 = vadd.f32 0.0, %v2085
        %v2087 = vpop.f32.mrb[0].mxu0
        %2088 = vmatprep.mubr.bf16.mxu0 0
        %2089 = vmatmul.mubr.bf16.gmra.mrb[0].mxu0 %v1974
        %v2090 = vpop.f32.mrb[0].mxu0
        %v2091 = vadd.f32 0.0, %v2090
        %v2092 = vpop.f32.mrb[0].mxu0
        %v2093 = vpop.f32.mrb[0].mxu0
        %v2094 = vadd.f32 0.0, %v2093
        %v2095 = vpop.f32.mrb[0].mxu0
        %2096 = vmatprep.mubr.bf16.mxu0 0
        %2097 = vmatmul.mubr.bf16.gmra.mrb[0].mxu0 %v1977
        %v2098 = vpop.f32.mrb[0].mxu0
        %v2099 = vadd.f32 0.0, %v2098
        %v2100 = vpop.f32.mrb[0].mxu0
        %v2101 = vpop.f32.mrb[0].mxu0
        %v2102 = vadd.f32 0.0, %v2101
        %v2103 = vpop.f32.mrb[0].mxu0
        %2104 = vmatprep.mubr.bf16.mxu0 0
        %2105 = vmatmul.mubr.bf16.gmra.mrb[0].mxu0 %v1980
        %v2106 = vpop.f32.mrb[0].mxu0
        %v2107 = vadd.f32 0.0, %v2106
        %v2108 = vpop.f32.mrb[0].mxu0
        %v2109 = vpop.f32.mrb[0].mxu0
        %v2110 = vadd.f32 0.0, %v2109
        %v2111 = vpop.f32.mrb[0].mxu0
        %2112 = vmatprep.mubr.bf16.mxu0 0
        %2113 = vmatmul.mubr.bf16.gmra.mrb[0].mxu0 %v1983
        %v2114 = vpop.f32.mrb[0].mxu0
        %v2115 = vadd.f32 0.0, %v2114
        %v2116 = vpop.f32.mrb[0].mxu0
        %v2117 = vpop.f32.mrb[0].mxu0
        %v2118 = vadd.f32 0.0, %v2117
        %v2119 = vpop.f32.mrb[0].mxu0
        %2120 = vmatprep.mubr.bf16.mxu0 0
        %2121 = vmatmul.mubr.bf16.gmra.mrb[0].mxu0 %v1986
        %v2122 = vpop.f32.mrb[0].mxu0
        %v2123 = vadd.f32 0.0, %v2122
        %v2124 = vpop.f32.mrb[0].mxu0
        %v2125 = vpop.f32.mrb[0].mxu0
        %v2126 = vadd.f32 0.0, %v2125
        %v2127 = vpop.f32.mrb[0].mxu0
        %2128 = vmatprep.mubr.bf16.mxu0 0
        %2129 = vmatmul.mubr.bf16.gmra.mrb[0].mxu0 %v1989
        %v2130 = vpop.f32.mrb[0].mxu0
        %v2131 = vadd.f32 0.0, %v2130
        %v2132 = vpop.f32.mrb[0].mxu0
        %v2133 = vpop.f32.mrb[0].mxu0
        %v2134 = vadd.f32 0.0, %v2133
        %v2135 = vpop.f32.mrb[0].mxu0
        %2136 = vmatprep.mubr.bf16.mxu0 0
        %2137 = vmatmul.mubr.bf16.gmra.mrb[0].mxu0 %v1992
        %v2138 = vpop.f32.mrb[0].mxu0
        %v2139 = vadd.f32 0.0, %v2138
        %v2140 = vpop.f32.mrb[0].mxu0
        %v2141 = vpop.f32.mrb[0].mxu0
        %v2142 = vadd.f32 0.0, %v2141
        %v2143 = vpop.f32.mrb[0].mxu0
        %2144 = vmatprep.mubr.bf16.mxu0 0
        %2145 = vmatmul.mubr.bf16.gmra.mrb[0].mxu0 %v1995
        %v2146 = vpop.f32.mrb[0].mxu0
        %v2147 = vadd.f32 0.0, %v2146
        %v2148 = vpop.f32.mrb[0].mxu0
        %v2149 = vpop.f32.mrb[0].mxu0
        %v2150 = vadd.f32 0.0, %v2149
        %v2151 = vpop.f32.mrb[0].mxu0
        %2152 = vmatprep.mubr.bf16.mxu0 0
        %2153 = vmatmul.mubr.bf16.gmra.mrb[0].mxu0 %v1998
        %v2154 = vpop.f32.mrb[0].mxu0
        %v2155 = vadd.f32 0.0, %v2154
        %v2156 = vpop.f32.mrb[0].mxu0
        %v2157 = vpop.f32.mrb[0].mxu0
        %v2158 = vadd.f32 0.0, %v2157
        %v2159 = vpop.f32.mrb[0].mxu0
        %2160 = vmatprep.mubr.bf16.mxu0 0
        %2161 = vmatmul.mubr.bf16.gmra.mrb[0].mxu0 %v2001
        %v2162 = vpop.f32.mrb[0].mxu0
        %v2163 = vadd.f32 0.0, %v2162
        %v2164 = vpop.f32.mrb[0].mxu0
        %v2165 = vpop.f32.mrb[0].mxu0
        %v2166 = vadd.f32 0.0, %v2165
        %v2167 = vpop.f32.mrb[0].mxu0
        %2168 = vmatprep.mubr.bf16.mxu0 0
        %2169 = vmatmul.mubr.bf16.gmra.mrb[0].mxu0 %v2004
        %v2170 = vpop.f32.mrb[0].mxu0
        %v2171 = vadd.f32 0.0, %v2170
        %v2172 = vpop.f32.mrb[0].mxu0
        %v2173 = vpop.f32.mrb[0].mxu0
        %v2174 = vadd.f32 0.0, %v2173
        %v2175 = vpop.f32.mrb[0].mxu0
        %2176 = vmatprep.mubr.bf16.mxu0 0
        %2177 = vmatmul.mubr.bf16.gmra.mrb[0].mxu0 %v2007
        %v2178 = vpop.f32.mrb[0].mxu0
        %v2179 = vadd.f32 0.0, %v2178
        %v2180 = vpop.f32.mrb[0].mxu0
        %v2181 = vpop.f32.mrb[0].mxu0
        %v2182 = vadd.f32 0.0, %v2181
        %v2183 = vpop.f32.mrb[0].mxu0
        %2184 = vmatprep.mubr.bf16.mxu0 0
        %2185 = vmatmul.mubr.bf16.gmra.mrb[0].mxu0 %v2010
        %v2186 = vpop.f32.mrb[0].mxu0
        %v2187 = vadd.f32 0.0, %v2186
        %v2188 = vpop.f32.mrb[0].mxu0
        %v2189 = vpop.f32.mrb[0].mxu0
        %v2190 = vadd.f32 0.0, %v2189
        %v2191 = vpop.f32.mrb[0].mxu0
        %2192 = vmatprep.mubr.bf16.mxu0 0
        %2193 = vmatmul.mubr.bf16.gmra.mrb[0].mxu0 %v2013
        %v2194 = vpop.f32.mrb[0].mxu0
        %v2195 = vadd.f32 0.0, %v2194
        %v2196 = vpop.f32.mrb[0].mxu0
        %v2197 = vpop.f32.mrb[0].mxu0
        %v2198 = vadd.f32 0.0, %v2197
        %v2199 = vpop.f32.mrb[0].mxu0
        %2200 = vmatprep.mubr.bf16.mxu0 0
        %2201 = vmatmul.mubr.bf16.gmra.mrb[0].mxu0 %v2016
        %v2202 = vpop.f32.mrb[0].mxu0
        %v2203 = vadd.f32 0.0, %v2202
        %v2204 = vpop.f32.mrb[0].mxu0
        %v2205 = vpop.f32.mrb[0].mxu0
        %v2206 = vadd.f32 0.0, %v2205
        %v2207 = vpop.f32.mrb[0].mxu0
        %2208 = vmatprep.mubr.bf16.mxu0 0
        %2209 = vmatmul.mubr.bf16.gmra.mrb[0].mxu0 %v2019
        %v2210 = vpop.f32.mrb[0].mxu0
        %v2211 = vadd.f32 0.0, %v2210
        %v2212 = vpop.f32.mrb[0].mxu0
        %v2213 = vpop.f32.mrb[0].mxu0
        %v2214 = vadd.f32 0.0, %v2213
        %v2215 = vpop.f32.mrb[0].mxu0
        %2216 = vmatprep.mubr.bf16.mxu0 0
        %2217 = vmatmul.mubr.bf16.gmra.mrb[0].mxu0 %v2022
        %v2218 = vpop.f32.mrb[0].mxu0
        %v2219 = vadd.f32 0.0, %v2218
        %v2220 = vpop.f32.mrb[0].mxu0
        %v2221 = vpop.f32.mrb[0].mxu0
        %v2222 = vadd.f32 0.0, %v2221
        %v2223 = vpop.f32.mrb[0].mxu0
        %2224 = vdwg.mxu0
        %v2225 = vadd.f32 %v1594, %v2083
        %v2226 = vadd.f32 %v1597, %v2086
        %v2227 = vadd.f32 %v1602, %v2091
        %v2228 = vadd.f32 %v1605, %v2094
        %v2229 = vadd.f32 %v1610, %v2099
        %v2230 = vadd.f32 %v1613, %v2102
        %v2231 = vadd.f32 %v1618, %v2107
        %v2232 = vadd.f32 %v1621, %v2110
        %v2233 = vadd.f32 %v1626, %v2115
        %v2234 = vadd.f32 %v1629, %v2118
        %v2235 = vadd.f32 %v1634, %v2123
        %v2236 = vadd.f32 %v1637, %v2126
        %v2237 = vadd.f32 %v1642, %v2131
        %v2238 = vadd.f32 %v1645, %v2134
        %v2239 = vadd.f32 %v1650, %v2139
        %v2240 = vadd.f32 %v1653, %v2142
        %v2241 = vadd.f32 %v1658, %v2147
        %v2242 = vadd.f32 %v1661, %v2150
        %v2243 = vadd.f32 %v1666, %v2155
        %v2244 = vadd.f32 %v1669, %v2158
        %v2245 = vadd.f32 %v1674, %v2163
        %v2246 = vadd.f32 %v1677, %v2166
        %v2247 = vadd.f32 %v1682, %v2171
        %v2248 = vadd.f32 %v1685, %v2174
        %v2249 = vadd.f32 %v1690, %v2179
        %v2250 = vadd.f32 %v1693, %v2182
        %v2251 = vadd.f32 %v1698, %v2187
        %v2252 = vadd.f32 %v1701, %v2190
        %v2253 = vadd.f32 %v1706, %v2195
        %v2254 = vadd.f32 %v1709, %v2198
        %v2255 = vadd.f32 %v1714, %v2203
        %v2256 = vadd.f32 %v1717, %v2206
        %v2257 = vadd.f32 %v1722, %v2211
        %v2258 = vadd.f32 %v1725, %v2214
        %v2259 = vadd.f32 %v1730, %v2219
        %v2260 = vadd.f32 %v1733, %v2222
        %s2261 = sadd.s32 %s211, 1
        %s2262 = smul.u32 %s2261, 3
        %s2263 = smul.addr %s2262, 4
        %s2264 = scalar_lea.vmem %s209, %s2263
        %v2265 = vld [vmem:[%s2264] sm:$0xf]
        %v2266 = vld [vmem:[%s2264 + $0x4] sm:$0xf]
        %v2267 = vld [vmem:[%s2264 + $0xc] sm:$0xf]
        %v2268 = vld [vmem:[%s2264 + $0x10] sm:$0xf]
        %v2269 = vld [vmem:[%s2264 + $0x18] sm:$0xf]
        %v2270 = vld [vmem:[%s2264 + $0x1c] sm:$0xf]
        %v2271 = vld [vmem:[%s2264 + $0x24] sm:$0xf]
        %v2272 = vld [vmem:[%s2264 + $0x28] sm:$0xf]
        %v2273 = vld [vmem:[%s2264 + $0x30] sm:$0xf]
        %v2274 = vld [vmem:[%s2264 + $0x34] sm:$0xf]
        %v2275 = vld [vmem:[%s2264 + $0x3c] sm:$0xf]
        %v2276 = vld [vmem:[%s2264 + $0x40] sm:$0xf]
        %v2277 = vld [vmem:[%s2264 + $0x48] sm:$0xf]
        %v2278 = vld [vmem:[%s2264 + $0x4c] sm:$0xf]
        %v2279 = vld [vmem:[%s2264 + $0x54] sm:$0xf]
        %v2280 = vld [vmem:[%s2264 + $0x58] sm:$0xf]
        %s2281 = scalar_lea.vmem %s1, 432
        %v2282 = vld [vmem:[%s2281] sm:$0xf]
        %v2283 = vld [vmem:[%s2281 + $0x4] sm:$0xf]
        %v2284 = vld [vmem:[%s2281 + $0x8] sm:$0xf]
        %v2285 = vld [vmem:[%s2281 + $0xc] sm:$0xf]
        %v2286 = vld [vmem:[%s2281 + $0x10] sm:$0xf]
        %v2287 = vld [vmem:[%s2281 + $0x14] sm:$0xf]
        %v2288 = vld [vmem:[%s2281 + $0x18] sm:$0xf]
        %v2289 = vld [vmem:[%s2281 + $0x1c] sm:$0xf]
        %v2290 = vld [vmem:[%s2281 + $0x20] sm:$0xf]
        %v2291 = vld [vmem:[%s2281 + $0x24] sm:$0xf]
        %v2292 = vld [vmem:[%s2281 + $0x28] sm:$0xf]
        %v2293 = vld [vmem:[%s2281 + $0x2c] sm:$0xf]
        %v2294 = vld [vmem:[%s2281 + $0x30] sm:$0xf]
        %v2295 = vld [vmem:[%s2281 + $0x34] sm:$0xf]
        %v2296 = vld [vmem:[%s2281 + $0x38] sm:$0xf]
        %v2297 = vld [vmem:[%s2281 + $0x3c] sm:$0xf]
        %v2298 = vld [vmem:[%s2281 + $0x40] sm:$0xf]
        %v2299 = vld [vmem:[%s2281 + $0x44] sm:$0xf]
        %v2300 = vld [vmem:[%s2281 + $0x48] sm:$0xf]
        %v2301 = vld [vmem:[%s2281 + $0x4c] sm:$0xf]
        %v2302 = vld [vmem:[%s2281 + $0x50] sm:$0xf]
        %v2303 = vld [vmem:[%s2281 + $0x54] sm:$0xf]
        %v2304 = vld [vmem:[%s2281 + $0x58] sm:$0xf]
        %v2305 = vld [vmem:[%s2281 + $0x5c] sm:$0xf]
        %v2306 = vld [vmem:[%s2281 + $0x60] sm:$0xf]
        %v2307 = vld [vmem:[%s2281 + $0x64] sm:$0xf]
        %v2308 = vld [vmem:[%s2281 + $0x68] sm:$0xf]
        %v2309 = vld [vmem:[%s2281 + $0x6c] sm:$0xf]
        %v2310 = vld [vmem:[%s2281 + $0x70] sm:$0xf]
        %v2311 = vld [vmem:[%s2281 + $0x74] sm:$0xf]
        %v2312 = vld [vmem:[%s2281 + $0x78] sm:$0xf]
        %v2313 = vld [vmem:[%s2281 + $0x7c] sm:$0xf]
        %v2314 = vld [vmem:[%s2281 + $0x80] sm:$0xf]
        %v2315 = vld [vmem:[%s2281 + $0x84] sm:$0xf]
        %v2316 = vld [vmem:[%s2281 + $0x88] sm:$0xf]
        %v2317 = vld [vmem:[%s2281 + $0x8c] sm:$0xf]
        %v2354 = vunpack.c.l.b16 %v2282
        %v2355 = vunpack.c.l.b16 %v2283
        %v2356 = vunpack.c.l.b16 %v2284
        %v2357 = vunpack.c.l.b16 %v2285
        %v2358 = vunpack.c.l.b16 %v2286
        %v2359 = vunpack.c.l.b16 %v2287
        %v2360 = vunpack.c.l.b16 %v2288
        %v2361 = vunpack.c.l.b16 %v2289
        %v2362 = vunpack.c.l.b16 %v2290
        %v2363 = vunpack.c.l.b16 %v2291
        %v2364 = vunpack.c.l.b16 %v2292
        %v2365 = vunpack.c.l.b16 %v2293
        %v2366 = vunpack.c.l.b16 %v2294
        %v2367 = vunpack.c.l.b16 %v2295
        %v2368 = vunpack.c.l.b16 %v2296
        %v2369 = vunpack.c.l.b16 %v2297
        %v2370 = vunpack.c.l.b16 %v2298
        %v2371 = vunpack.c.l.b16 %v2299
        %v2372 = vunpack.c.l.b16 %v2300
        %v2373 = vunpack.c.l.b16 %v2301
        %v2374 = vunpack.c.l.b16 %v2302
        %v2375 = vunpack.c.l.b16 %v2303
        %v2376 = vunpack.c.l.b16 %v2304
        %v2377 = vunpack.c.l.b16 %v2305
        %v2378 = vunpack.c.l.b16 %v2306
        %v2379 = vunpack.c.l.b16 %v2307
        %v2380 = vunpack.c.l.b16 %v2308
        %v2381 = vunpack.c.l.b16 %v2309
        %v2382 = vunpack.c.l.b16 %v2310
        %v2383 = vunpack.c.l.b16 %v2311
        %v2384 = vunpack.c.l.b16 %v2312
        %v2385 = vunpack.c.l.b16 %v2313
        %v2386 = vunpack.c.l.b16 %v2314
        %v2387 = vunpack.c.l.b16 %v2315
        %v2388 = vunpack.c.l.b16 %v2316
        %v2389 = vunpack.c.l.b16 %v2317
        %v2390 = vpack.c.b16 %v2355, %v2354
        %v2391 = vpack.c.b16 %v2357, %v2356
        %v2392 = vpack.c.b16 %v2359, %v2358
        %v2393 = vpack.c.b16 %v2361, %v2360
        %v2394 = vpack.c.b16 %v2363, %v2362
        %v2395 = vpack.c.b16 %v2365, %v2364
        %v2396 = vpack.c.b16 %v2367, %v2366
        %v2397 = vpack.c.b16 %v2369, %v2368
        %v2398 = vpack.c.b16 %v2371, %v2370
        %v2399 = vpack.c.b16 %v2373, %v2372
        %v2400 = vpack.c.b16 %v2375, %v2374
        %v2401 = vpack.c.b16 %v2377, %v2376
        %v2402 = vpack.c.b16 %v2379, %v2378
        %v2403 = vpack.c.b16 %v2381, %v2380
        %v2404 = vpack.c.b16 %v2383, %v2382
        %v2405 = vpack.c.b16 %v2385, %v2384
        %v2406 = vpack.c.b16 %v2387, %v2386
        %v2407 = vpack.c.b16 %v2389, %v2388
        %v2424 = vunpack.c.l.b16 %v2265
        %v2425 = vunpack.c.l.b16 %v2266
        %v2426 = vunpack.c.l.b16 %v2267
        %v2427 = vunpack.c.l.b16 %v2268
        %v2428 = vunpack.c.l.b16 %v2269
        %v2429 = vunpack.c.l.b16 %v2270
        %v2430 = vunpack.c.l.b16 %v2271
        %v2431 = vunpack.c.l.b16 %v2272
        %v2432 = vunpack.c.l.b16 %v2273
        %v2433 = vunpack.c.l.b16 %v2274
        %v2434 = vunpack.c.l.b16 %v2275
        %v2435 = vunpack.c.l.b16 %v2276
        %v2436 = vunpack.c.l.b16 %v2277
        %v2437 = vunpack.c.l.b16 %v2278
        %v2438 = vunpack.c.l.b16 %v2279
        %v2439 = vunpack.c.l.b16 %v2280
        %v2440 = vpack.c.b16 %v2425, %v2424
        %v2441 = vpack.c.b16 %v2427, %v2426
        %v2442 = vpack.c.b16 %v2429, %v2428
        %v2443 = vpack.c.b16 %v2431, %v2430
        %v2444 = vpack.c.b16 %v2433, %v2432
        %v2445 = vpack.c.b16 %v2435, %v2434
        %v2446 = vpack.c.b16 %v2437, %v2436
        %v2447 = vpack.c.b16 %v2439, %v2438
        %v2449 = vsel %vm320, %v2390, 0
        %v2452 = vsel %vm320, %v2391, 0
        %v2455 = vsel %vm320, %v2392, 0
        %v2458 = vsel %vm320, %v2393, 0
        %v2461 = vsel %vm320, %v2394, 0
        %v2464 = vsel %vm320, %v2395, 0
        %v2467 = vsel %vm320, %v2396, 0
        %v2470 = vsel %vm320, %v2397, 0
        %v2473 = vsel %vm320, %v2398, 0
        %v2476 = vsel %vm320, %v2399, 0
        %v2479 = vsel %vm320, %v2400, 0
        %v2482 = vsel %vm320, %v2401, 0
        %v2485 = vsel %vm320, %v2402, 0
        %v2488 = vsel %vm320, %v2403, 0
        %v2491 = vsel %vm320, %v2404, 0
        %v2494 = vsel %vm320, %v2405, 0
        %v2497 = vsel %vm320, %v2406, 0
        %v2500 = vsel %vm320, %v2407, 0
        %v2503 = vsel %vm320, %v2440, 0
        %v2506 = vsel %vm320, %v2441, 0
        %v2509 = vsel %vm320, %v2442, 0
        %v2512 = vsel %vm320, %v2443, 0
        %v2515 = vsel %vm320, %v2444, 0
        %v2518 = vsel %vm320, %v2445, 0
        %v2521 = vsel %vm320, %v2446, 0
        %v2524 = vsel %vm320, %v2447, 0
        %2526 = vmatprep.subr.bf16.mxu0 0
        %2527 = vmatpush1.bf16.xpose.msra.mxu0 %v2503
        %2528 = vmatprep.subr.bf16.mxu0 0
        %2529 = vmatpush1.bf16.xpose.msra.mxu0 %v2506
        %2530 = vmatprep.subr.bf16.mxu0 0
        %2531 = vmatpush1.bf16.xpose.msra.mxu0 %v2509
        %2532 = vmatprep.subr.bf16.mxu0 0
        %2533 = vmatpush1.bf16.xpose.msra.mxu0 %v2512
        %2534 = vmatprep.subr.bf16.mxu0 0
        %2535 = vmatpush1.bf16.xpose.msra.mxu0 %v2515
        %2536 = vmatprep.subr.bf16.mxu0 0
        %2537 = vmatpush1.bf16.xpose.msra.mxu0 %v2518
        %2538 = vmatprep.subr.bf16.mxu0 0
        %2539 = vmatpush1.bf16.xpose.msra.mxu0 %v2521
        %2540 = vmatprep.subr.bf16.mxu0 0
        %2541 = vmatpush1.bf16.xpose.msra.mxu0 %v2524
        %2542 = vmatprep.subr.bf16.mxu0 0
        %2543 = vmatpush1.bf16.xpose.msra.mxu0 0
        %2544 = vmatprep.subr.bf16.mxu0 0
        %2545 = vmatpush1.bf16.xpose.msra.mxu0 0
        %2546 = vmatprep.subr.bf16.mxu0 0
        %2547 = vmatpush1.bf16.xpose.msra.mxu0 0
        %2548 = vmatprep.subr.bf16.mxu0 0
        %2549 = vmatpush1.bf16.xpose.msra.mxu0 0
        %2550 = vmatprep.subr.bf16.mxu0 0
        %2551 = vmatpush1.bf16.xpose.msra.mxu0 0
        %2552 = vmatprep.subr.bf16.mxu0 0
        %2553 = vmatpush1.bf16.xpose.msra.mxu0 0
        %2554 = vmatprep.subr.bf16.mxu0 0
        %2555 = vmatpush1.bf16.xpose.msra.mxu0 0
        %2556 = vmatprep.subr.bf16.mxu0 0
        %2557 = vmatpush1.bf16.xpose.msra.mxu0 0
        %2558 = vmatprep.mubr.bf16.mxu0 0
        %2559 = vmatmul.mubr.bf16.gmra.mrb[0].mxu0 %v2449
        %v2560 = vpop.f32.mrb[0].mxu0
        %v2561 = vadd.f32 0.0, %v2560
        %v2562 = vpop.f32.mrb[0].mxu0
        %v2563 = vpop.f32.mrb[0].mxu0
        %v2564 = vadd.f32 0.0, %v2563
        %v2565 = vpop.f32.mrb[0].mxu0
        %2566 = vmatprep.mubr.bf16.mxu0 0
        %2567 = vmatmul.mubr.bf16.gmra.mrb[0].mxu0 %v2452
        %v2568 = vpop.f32.mrb[0].mxu0
        %v2569 = vadd.f32 0.0, %v2568
        %v2570 = vpop.f32.mrb[0].mxu0
        %v2571 = vpop.f32.mrb[0].mxu0
        %v2572 = vadd.f32 0.0, %v2571
        %v2573 = vpop.f32.mrb[0].mxu0
        %2574 = vmatprep.mubr.bf16.mxu0 0
        %2575 = vmatmul.mubr.bf16.gmra.mrb[0].mxu0 %v2455
        %v2576 = vpop.f32.mrb[0].mxu0
        %v2577 = vadd.f32 0.0, %v2576
        %v2578 = vpop.f32.mrb[0].mxu0
        %v2579 = vpop.f32.mrb[0].mxu0
        %v2580 = vadd.f32 0.0, %v2579
        %v2581 = vpop.f32.mrb[0].mxu0
        %2582 = vmatprep.mubr.bf16.mxu0 0
        %2583 = vmatmul.mubr.bf16.gmra.mrb[0].mxu0 %v2458
        %v2584 = vpop.f32.mrb[0].mxu0
        %v2585 = vadd.f32 0.0, %v2584
        %v2586 = vpop.f32.mrb[0].mxu0
        %v2587 = vpop.f32.mrb[0].mxu0
        %v2588 = vadd.f32 0.0, %v2587
        %v2589 = vpop.f32.mrb[0].mxu0
        %2590 = vmatprep.mubr.bf16.mxu0 0
        %2591 = vmatmul.mubr.bf16.gmra.mrb[0].mxu0 %v2461
        %v2592 = vpop.f32.mrb[0].mxu0
        %v2593 = vadd.f32 0.0, %v2592
        %v2594 = vpop.f32.mrb[0].mxu0
        %v2595 = vpop.f32.mrb[0].mxu0
        %v2596 = vadd.f32 0.0, %v2595
        %v2597 = vpop.f32.mrb[0].mxu0
        %2598 = vmatprep.mubr.bf16.mxu0 0
        %2599 = vmatmul.mubr.bf16.gmra.mrb[0].mxu0 %v2464
        %v2600 = vpop.f32.mrb[0].mxu0
        %v2601 = vadd.f32 0.0, %v2600
        %v2602 = vpop.f32.mrb[0].mxu0
        %v2603 = vpop.f32.mrb[0].mxu0
        %v2604 = vadd.f32 0.0, %v2603
        %v2605 = vpop.f32.mrb[0].mxu0
        %2606 = vmatprep.mubr.bf16.mxu0 0
        %2607 = vmatmul.mubr.bf16.gmra.mrb[0].mxu0 %v2467
        %v2608 = vpop.f32.mrb[0].mxu0
        %v2609 = vadd.f32 0.0, %v2608
        %v2610 = vpop.f32.mrb[0].mxu0
        %v2611 = vpop.f32.mrb[0].mxu0
        %v2612 = vadd.f32 0.0, %v2611
        %v2613 = vpop.f32.mrb[0].mxu0
        %2614 = vmatprep.mubr.bf16.mxu0 0
        %2615 = vmatmul.mubr.bf16.gmra.mrb[0].mxu0 %v2470
        %v2616 = vpop.f32.mrb[0].mxu0
        %v2617 = vadd.f32 0.0, %v2616
        %v2618 = vpop.f32.mrb[0].mxu0
        %v2619 = vpop.f32.mrb[0].mxu0
        %v2620 = vadd.f32 0.0, %v2619
        %v2621 = vpop.f32.mrb[0].mxu0
        %2622 = vmatprep.mubr.bf16.mxu0 0
        %2623 = vmatmul.mubr.bf16.gmra.mrb[0].mxu0 %v2473
        %v2624 = vpop.f32.mrb[0].mxu0
        %v2625 = vadd.f32 0.0, %v2624
        %v2626 = vpop.f32.mrb[0].mxu0
        %v2627 = vpop.f32.mrb[0].mxu0
        %v2628 = vadd.f32 0.0, %v2627
        %v2629 = vpop.f32.mrb[0].mxu0
        %2630 = vmatprep.mubr.bf16.mxu0 0
        %2631 = vmatmul.mubr.bf16.gmra.mrb[0].mxu0 %v2476
        %v2632 = vpop.f32.mrb[0].mxu0
        %v2633 = vadd.f32 0.0, %v2632
        %v2634 = vpop.f32.mrb[0].mxu0
        %v2635 = vpop.f32.mrb[0].mxu0
        %v2636 = vadd.f32 0.0, %v2635
        %v2637 = vpop.f32.mrb[0].mxu0
        %2638 = vmatprep.mubr.bf16.mxu0 0
        %2639 = vmatmul.mubr.bf16.gmra.mrb[0].mxu0 %v2479
        %v2640 = vpop.f32.mrb[0].mxu0
        %v2641 = vadd.f32 0.0, %v2640
        %v2642 = vpop.f32.mrb[0].mxu0
        %v2643 = vpop.f32.mrb[0].mxu0
        %v2644 = vadd.f32 0.0, %v2643
        %v2645 = vpop.f32.mrb[0].mxu0
        %2646 = vmatprep.mubr.bf16.mxu0 0
        %2647 = vmatmul.mubr.bf16.gmra.mrb[0].mxu0 %v2482
        %v2648 = vpop.f32.mrb[0].mxu0
        %v2649 = vadd.f32 0.0, %v2648
        %v2650 = vpop.f32.mrb[0].mxu0
        %v2651 = vpop.f32.mrb[0].mxu0
        %v2652 = vadd.f32 0.0, %v2651
        %v2653 = vpop.f32.mrb[0].mxu0
        %2654 = vmatprep.mubr.bf16.mxu0 0
        %2655 = vmatmul.mubr.bf16.gmra.mrb[0].mxu0 %v2485
        %v2656 = vpop.f32.mrb[0].mxu0
        %v2657 = vadd.f32 0.0, %v2656
        %v2658 = vpop.f32.mrb[0].mxu0
        %v2659 = vpop.f32.mrb[0].mxu0
        %v2660 = vadd.f32 0.0, %v2659
        %v2661 = vpop.f32.mrb[0].mxu0
        %2662 = vmatprep.mubr.bf16.mxu0 0
        %2663 = vmatmul.mubr.bf16.gmra.mrb[0].mxu0 %v2488
        %v2664 = vpop.f32.mrb[0].mxu0
        %v2665 = vadd.f32 0.0, %v2664
        %v2666 = vpop.f32.mrb[0].mxu0
        %v2667 = vpop.f32.mrb[0].mxu0
        %v2668 = vadd.f32 0.0, %v2667
        %v2669 = vpop.f32.mrb[0].mxu0
        %2670 = vmatprep.mubr.bf16.mxu0 0
        %2671 = vmatmul.mubr.bf16.gmra.mrb[0].mxu0 %v2491
        %v2672 = vpop.f32.mrb[0].mxu0
        %v2673 = vadd.f32 0.0, %v2672
        %v2674 = vpop.f32.mrb[0].mxu0
        %v2675 = vpop.f32.mrb[0].mxu0
        %v2676 = vadd.f32 0.0, %v2675
        %v2677 = vpop.f32.mrb[0].mxu0
        %2678 = vmatprep.mubr.bf16.mxu0 0
        %2679 = vmatmul.mubr.bf16.gmra.mrb[0].mxu0 %v2494
        %v2680 = vpop.f32.mrb[0].mxu0
        %v2681 = vadd.f32 0.0, %v2680
        %v2682 = vpop.f32.mrb[0].mxu0
        %v2683 = vpop.f32.mrb[0].mxu0
        %v2684 = vadd.f32 0.0, %v2683
        %v2685 = vpop.f32.mrb[0].mxu0
        %2686 = vmatprep.mubr.bf16.mxu0 0
        %2687 = vmatmul.mubr.bf16.gmra.mrb[0].mxu0 %v2497
        %v2688 = vpop.f32.mrb[0].mxu0
        %v2689 = vadd.f32 0.0, %v2688
        %v2690 = vpop.f32.mrb[0].mxu0
        %v2691 = vpop.f32.mrb[0].mxu0
        %v2692 = vadd.f32 0.0, %v2691
        %v2693 = vpop.f32.mrb[0].mxu0
        %2694 = vmatprep.mubr.bf16.mxu0 0
        %2695 = vmatmul.mubr.bf16.gmra.mrb[0].mxu0 %v2500
        %v2696 = vpop.f32.mrb[0].mxu0
        %v2697 = vadd.f32 0.0, %v2696
        %v2698 = vpop.f32.mrb[0].mxu0
        %v2699 = vpop.f32.mrb[0].mxu0
        %v2700 = vadd.f32 0.0, %v2699
        %v2701 = vpop.f32.mrb[0].mxu0
        %2702 = vdwg.mxu0
        %v2703 = vadd.f32 %v2225, %v2561
        %v2704 = vadd.f32 %v2226, %v2564
        %v2705 = vadd.f32 %v2227, %v2569
        %v2706 = vadd.f32 %v2228, %v2572
        %v2707 = vadd.f32 %v2229, %v2577
        %v2708 = vadd.f32 %v2230, %v2580
        %v2709 = vadd.f32 %v2231, %v2585
        %v2710 = vadd.f32 %v2232, %v2588
        %v2711 = vadd.f32 %v2233, %v2593
        %v2712 = vadd.f32 %v2234, %v2596
        %v2713 = vadd.f32 %v2235, %v2601
        %v2714 = vadd.f32 %v2236, %v2604
        %v2715 = vadd.f32 %v2237, %v2609
        %v2716 = vadd.f32 %v2238, %v2612
        %v2717 = vadd.f32 %v2239, %v2617
        %v2718 = vadd.f32 %v2240, %v2620
        %v2719 = vadd.f32 %v2241, %v2625
        %v2720 = vadd.f32 %v2242, %v2628
        %v2721 = vadd.f32 %v2243, %v2633
        %v2722 = vadd.f32 %v2244, %v2636
        %v2723 = vadd.f32 %v2245, %v2641
        %v2724 = vadd.f32 %v2246, %v2644
        %v2725 = vadd.f32 %v2247, %v2649
        %v2726 = vadd.f32 %v2248, %v2652
        %v2727 = vadd.f32 %v2249, %v2657
        %v2728 = vadd.f32 %v2250, %v2660
        %v2729 = vadd.f32 %v2251, %v2665
        %v2730 = vadd.f32 %v2252, %v2668
        %v2731 = vadd.f32 %v2253, %v2673
        %v2732 = vadd.f32 %v2254, %v2676
        %v2733 = vadd.f32 %v2255, %v2681
        %v2734 = vadd.f32 %v2256, %v2684
        %v2735 = vadd.f32 %v2257, %v2689
        %v2736 = vadd.f32 %v2258, %v2692
        %v2737 = vadd.f32 %v2259, %v2697
        %v2738 = vadd.f32 %v2260, %v2700
        %v2739 = vld [vmem:[%s2264] sm:$0xf]
        %v2740 = vld [vmem:[%s2264 + $0x4] sm:$0xf]
        %v2741 = vld [vmem:[%s2264 + $0x8] sm:$0x1]
        %v2742 = vld [vmem:[%s2264 + $0xc] sm:$0xf]
        %v2743 = vld [vmem:[%s2264 + $0x10] sm:$0xf]
        %v2744 = vld [vmem:[%s2264 + $0x14] sm:$0x1]
        %v2745 = vld [vmem:[%s2264 + $0x18] sm:$0xf]
        %v2746 = vld [vmem:[%s2264 + $0x1c] sm:$0xf]
        %v2747 = vld [vmem:[%s2264 + $0x20] sm:$0x1]
        %v2748 = vld [vmem:[%s2264 + $0x24] sm:$0xf]
        %v2749 = vld [vmem:[%s2264 + $0x28] sm:$0xf]
        %v2750 = vld [vmem:[%s2264 + $0x2c] sm:$0x1]
        %v2751 = vld [vmem:[%s2264 + $0x30] sm:$0xf]
        %v2752 = vld [vmem:[%s2264 + $0x34] sm:$0xf]
        %v2753 = vld [vmem:[%s2264 + $0x38] sm:$0x1]
        %v2754 = vld [vmem:[%s2264 + $0x3c] sm:$0xf]
        %v2755 = vld [vmem:[%s2264 + $0x40] sm:$0xf]
        %v2756 = vld [vmem:[%s2264 + $0x44] sm:$0x1]
        %v2757 = vld [vmem:[%s2264 + $0x48] sm:$0xf]
        %v2758 = vld [vmem:[%s2264 + $0x4c] sm:$0xf]
        %v2759 = vld [vmem:[%s2264 + $0x50] sm:$0x1]
        %v2760 = vld [vmem:[%s2264 + $0x54] sm:$0xf]
        %v2761 = vld [vmem:[%s2264 + $0x58] sm:$0xf]
        %v2762 = vld [vmem:[%s2264 + $0x5c] sm:$0x1]
        %v2764 = vshrl.u32 %v2739, 16
        %v2766 = vrot.slane %v2764, 4
        %v2767 = vshll.u32 %v2739, 16
        %v2769 = vrot.slane %v2767, 5
        %v2770 = vor.u32 %v2766, %v2769
        %v2771 = vrot.slane %v2770, 4
        %v2773 = vshll.u32 %v2740, 16
        %v2775 = vrot.slane %v2773, 5
        %v2776 = vsel %vm752, %v2771, %v2775
        %v2777 = vshrl.u32 %v2740, 16
        %v2779 = vrot.slane %v2777, 4
        %v2780 = vor.u32 %v2779, %v2775
        %v2781 = vrot.slane %v2780, 4
        %v2783 = vshll.u32 %v2741, 16
        %v2785 = vrot.slane %v2783, 5
        %v2786 = vsel %vm752, %v2781, %v2785
        %v2788 = vshrl.u32 %v2742, 16
        %v2790 = vrot.slane %v2788, 4
        %v2791 = vshll.u32 %v2742, 16
        %v2793 = vrot.slane %v2791, 5
        %v2794 = vor.u32 %v2790, %v2793
        %v2795 = vrot.slane %v2794, 4
        %v2797 = vshll.u32 %v2743, 16
        %v2799 = vrot.slane %v2797, 5
        %v2800 = vsel %vm752, %v2795, %v2799
        %v2801 = vshrl.u32 %v2743, 16
        %v2803 = vrot.slane %v2801, 4
        %v2804 = vor.u32 %v2803, %v2799
        %v2805 = vrot.slane %v2804, 4
        %v2807 = vshll.u32 %v2744, 16
        %v2809 = vrot.slane %v2807, 5
        %v2810 = vsel %vm752, %v2805, %v2809
        %v2812 = vshrl.u32 %v2745, 16
        %v2814 = vrot.slane %v2812, 4
        %v2815 = vshll.u32 %v2745, 16
        %v2817 = vrot.slane %v2815, 5
        %v2818 = vor.u32 %v2814, %v2817
        %v2819 = vrot.slane %v2818, 4
        %v2821 = vshll.u32 %v2746, 16
        %v2823 = vrot.slane %v2821, 5
        %v2824 = vsel %vm752, %v2819, %v2823
        %v2825 = vshrl.u32 %v2746, 16
        %v2827 = vrot.slane %v2825, 4
        %v2828 = vor.u32 %v2827, %v2823
        %v2829 = vrot.slane %v2828, 4
        %v2831 = vshll.u32 %v2747, 16
        %v2833 = vrot.slane %v2831, 5
        %v2834 = vsel %vm752, %v2829, %v2833
        %v2836 = vshrl.u32 %v2748, 16
        %v2838 = vrot.slane %v2836, 4
        %v2839 = vshll.u32 %v2748, 16
        %v2841 = vrot.slane %v2839, 5
        %v2842 = vor.u32 %v2838, %v2841
        %v2843 = vrot.slane %v2842, 4
        %v2845 = vshll.u32 %v2749, 16
        %v2847 = vrot.slane %v2845, 5
        %v2848 = vsel %vm752, %v2843, %v2847
        %v2849 = vshrl.u32 %v2749, 16
        %v2851 = vrot.slane %v2849, 4
        %v2852 = vor.u32 %v2851, %v2847
        %v2853 = vrot.slane %v2852, 4
        %v2855 = vshll.u32 %v2750, 16
        %v2857 = vrot.slane %v2855, 5
        %v2858 = vsel %vm752, %v2853, %v2857
        %v2860 = vshrl.u32 %v2751, 16
        %v2862 = vrot.slane %v2860, 4
        %v2863 = vshll.u32 %v2751, 16
        %v2865 = vrot.slane %v2863, 5
        %v2866 = vor.u32 %v2862, %v2865
        %v2867 = vrot.slane %v2866, 4
        %v2869 = vshll.u32 %v2752, 16
        %v2871 = vrot.slane %v2869, 5
        %v2872 = vsel %vm752, %v2867, %v2871
        %v2873 = vshrl.u32 %v2752, 16
        %v2875 = vrot.slane %v2873, 4
        %v2876 = vor.u32 %v2875, %v2871
        %v2877 = vrot.slane %v2876, 4
        %v2879 = vshll.u32 %v2753, 16
        %v2881 = vrot.slane %v2879, 5
        %v2882 = vsel %vm752, %v2877, %v2881
        %v2884 = vshrl.u32 %v2754, 16
        %v2886 = vrot.slane %v2884, 4
        %v2887 = vshll.u32 %v2754, 16
        %v2889 = vrot.slane %v2887, 5
        %v2890 = vor.u32 %v2886, %v2889
        %v2891 = vrot.slane %v2890, 4
        %v2893 = vshll.u32 %v2755, 16
        %v2895 = vrot.slane %v2893, 5
        %v2896 = vsel %vm752, %v2891, %v2895
        %v2897 = vshrl.u32 %v2755, 16
        %v2899 = vrot.slane %v2897, 4
        %v2900 = vor.u32 %v2899, %v2895
        %v2901 = vrot.slane %v2900, 4
        %v2903 = vshll.u32 %v2756, 16
        %v2905 = vrot.slane %v2903, 5
        %v2906 = vsel %vm752, %v2901, %v2905
        %v2908 = vshrl.u32 %v2757, 16
        %v2910 = vrot.slane %v2908, 4
        %v2911 = vshll.u32 %v2757, 16
        %v2913 = vrot.slane %v2911, 5
        %v2914 = vor.u32 %v2910, %v2913
        %v2915 = vrot.slane %v2914, 4
        %v2917 = vshll.u32 %v2758, 16
        %v2919 = vrot.slane %v2917, 5
        %v2920 = vsel %vm752, %v2915, %v2919
        %v2921 = vshrl.u32 %v2758, 16
        %v2923 = vrot.slane %v2921, 4
        %v2924 = vor.u32 %v2923, %v2919
        %v2925 = vrot.slane %v2924, 4
        %v2927 = vshll.u32 %v2759, 16
        %v2929 = vrot.slane %v2927, 5
        %v2930 = vsel %vm752, %v2925, %v2929
        %v2932 = vshrl.u32 %v2760, 16
        %v2934 = vrot.slane %v2932, 4
        %v2935 = vshll.u32 %v2760, 16
        %v2937 = vrot.slane %v2935, 5
        %v2938 = vor.u32 %v2934, %v2937
        %v2939 = vrot.slane %v2938, 4
        %v2941 = vshll.u32 %v2761, 16
        %v2943 = vrot.slane %v2941, 5
        %v2944 = vsel %vm752, %v2939, %v2943
        %v2945 = vshrl.u32 %v2761, 16
        %v2947 = vrot.slane %v2945, 4
        %v2948 = vor.u32 %v2947, %v2943
        %v2949 = vrot.slane %v2948, 4
        %v2951 = vshll.u32 %v2762, 16
        %v2953 = vrot.slane %v2951, 5
        %v2954 = vsel %vm752, %v2949, %v2953
        %s2955 = scalar_lea.vmem %s1, 576
        %v2956 = vld [vmem:[%s2955] sm:$0xf]
        %v2957 = vld [vmem:[%s2955 + $0x4] sm:$0xf]
        %v2958 = vld [vmem:[%s2955 + $0x8] sm:$0xf]
        %v2959 = vld [vmem:[%s2955 + $0xc] sm:$0xf]
        %v2960 = vld [vmem:[%s2955 + $0x10] sm:$0xf]
        %v2961 = vld [vmem:[%s2955 + $0x14] sm:$0xf]
        %v2962 = vld [vmem:[%s2955 + $0x18] sm:$0xf]
        %v2963 = vld [vmem:[%s2955 + $0x1c] sm:$0xf]
        %v2964 = vld [vmem:[%s2955 + $0x20] sm:$0xf]
        %v2965 = vld [vmem:[%s2955 + $0x24] sm:$0xf]
        %v2966 = vld [vmem:[%s2955 + $0x28] sm:$0xf]
        %v2967 = vld [vmem:[%s2955 + $0x2c] sm:$0xf]
        %v2968 = vld [vmem:[%s2955 + $0x30] sm:$0xf]
        %v2969 = vld [vmem:[%s2955 + $0x34] sm:$0xf]
        %v2970 = vld [vmem:[%s2955 + $0x38] sm:$0xf]
        %v2971 = vld [vmem:[%s2955 + $0x3c] sm:$0xf]
        %v2972 = vld [vmem:[%s2955 + $0x40] sm:$0xf]
        %v2973 = vld [vmem:[%s2955 + $0x44] sm:$0xf]
        %v2974 = vld [vmem:[%s2955 + $0x48] sm:$0xf]
        %v2975 = vld [vmem:[%s2955 + $0x4c] sm:$0xf]
        %v2976 = vld [vmem:[%s2955 + $0x50] sm:$0xf]
        %v2977 = vld [vmem:[%s2955 + $0x54] sm:$0xf]
        %v2978 = vld [vmem:[%s2955 + $0x58] sm:$0xf]
        %v2979 = vld [vmem:[%s2955 + $0x5c] sm:$0xf]
        %v2980 = vld [vmem:[%s2955 + $0x60] sm:$0xf]
        %v2981 = vld [vmem:[%s2955 + $0x64] sm:$0xf]
        %v2982 = vld [vmem:[%s2955 + $0x68] sm:$0xf]
        %v2983 = vld [vmem:[%s2955 + $0x6c] sm:$0xf]
        %v2984 = vld [vmem:[%s2955 + $0x70] sm:$0xf]
        %v2985 = vld [vmem:[%s2955 + $0x74] sm:$0xf]
        %v2986 = vld [vmem:[%s2955 + $0x78] sm:$0xf]
        %v2987 = vld [vmem:[%s2955 + $0x7c] sm:$0xf]
        %v2988 = vld [vmem:[%s2955 + $0x80] sm:$0xf]
        %v2989 = vld [vmem:[%s2955 + $0x84] sm:$0xf]
        %v2990 = vld [vmem:[%s2955 + $0x88] sm:$0xf]
        %v2991 = vld [vmem:[%s2955 + $0x8c] sm:$0xf]
        %v3028 = vunpack.c.l.b16 %v2956
        %v3029 = vunpack.c.l.b16 %v2957
        %v3030 = vunpack.c.l.b16 %v2958
        %v3031 = vunpack.c.l.b16 %v2959
        %v3032 = vunpack.c.l.b16 %v2960
        %v3033 = vunpack.c.l.b16 %v2961
        %v3034 = vunpack.c.l.b16 %v2962
        %v3035 = vunpack.c.l.b16 %v2963
        %v3036 = vunpack.c.l.b16 %v2964
        %v3037 = vunpack.c.l.b16 %v2965
        %v3038 = vunpack.c.l.b16 %v2966
        %v3039 = vunpack.c.l.b16 %v2967
        %v3040 = vunpack.c.l.b16 %v2968
        %v3041 = vunpack.c.l.b16 %v2969
        %v3042 = vunpack.c.l.b16 %v2970
        %v3043 = vunpack.c.l.b16 %v2971
        %v3044 = vunpack.c.l.b16 %v2972
        %v3045 = vunpack.c.l.b16 %v2973
        %v3046 = vunpack.c.l.b16 %v2974
        %v3047 = vunpack.c.l.b16 %v2975
        %v3048 = vunpack.c.l.b16 %v2976
        %v3049 = vunpack.c.l.b16 %v2977
        %v3050 = vunpack.c.l.b16 %v2978
        %v3051 = vunpack.c.l.b16 %v2979
        %v3052 = vunpack.c.l.b16 %v2980
        %v3053 = vunpack.c.l.b16 %v2981
        %v3054 = vunpack.c.l.b16 %v2982
        %v3055 = vunpack.c.l.b16 %v2983
        %v3056 = vunpack.c.l.b16 %v2984
        %v3057 = vunpack.c.l.b16 %v2985
        %v3058 = vunpack.c.l.b16 %v2986
        %v3059 = vunpack.c.l.b16 %v2987
        %v3060 = vunpack.c.l.b16 %v2988
        %v3061 = vunpack.c.l.b16 %v2989
        %v3062 = vunpack.c.l.b16 %v2990
        %v3063 = vunpack.c.l.b16 %v2991
        %v3064 = vpack.c.b16 %v3029, %v3028
        %v3065 = vpack.c.b16 %v3031, %v3030
        %v3066 = vpack.c.b16 %v3033, %v3032
        %v3067 = vpack.c.b16 %v3035, %v3034
        %v3068 = vpack.c.b16 %v3037, %v3036
        %v3069 = vpack.c.b16 %v3039, %v3038
        %v3070 = vpack.c.b16 %v3041, %v3040
        %v3071 = vpack.c.b16 %v3043, %v3042
        %v3072 = vpack.c.b16 %v3045, %v3044
        %v3073 = vpack.c.b16 %v3047, %v3046
        %v3074 = vpack.c.b16 %v3049, %v3048
        %v3075 = vpack.c.b16 %v3051, %v3050
        %v3076 = vpack.c.b16 %v3053, %v3052
        %v3077 = vpack.c.b16 %v3055, %v3054
        %v3078 = vpack.c.b16 %v3057, %v3056
        %v3079 = vpack.c.b16 %v3059, %v3058
        %v3080 = vpack.c.b16 %v3061, %v3060
        %v3081 = vpack.c.b16 %v3063, %v3062
        %v3082 = vunpack.c.l.b16 %v2776
        %v3083 = vunpack.c.l.b16 %v2786
        %v3084 = vunpack.c.l.b16 %v2800
        %v3085 = vunpack.c.l.b16 %v2810
        %v3086 = vunpack.c.l.b16 %v2824
        %v3087 = vunpack.c.l.b16 %v2834
        %v3088 = vunpack.c.l.b16 %v2848
        %v3089 = vunpack.c.l.b16 %v2858
        %v3090 = vunpack.c.l.b16 %v2872
        %v3091 = vunpack.c.l.b16 %v2882
        %v3092 = vunpack.c.l.b16 %v2896
        %v3093 = vunpack.c.l.b16 %v2906
        %v3094 = vunpack.c.l.b16 %v2920
        %v3095 = vunpack.c.l.b16 %v2930
        %v3096 = vunpack.c.l.b16 %v2944
        %v3097 = vunpack.c.l.b16 %v2954
        %v3098 = vpack.c.b16 %v3083, %v3082
        %v3099 = vpack.c.b16 %v3085, %v3084
        %v3100 = vpack.c.b16 %v3087, %v3086
        %v3101 = vpack.c.b16 %v3089, %v3088
        %v3102 = vpack.c.b16 %v3091, %v3090
        %v3103 = vpack.c.b16 %v3093, %v3092
        %v3104 = vpack.c.b16 %v3095, %v3094
        %v3105 = vpack.c.b16 %v3097, %v3096
        %v3107 = vsel %vm320, %v3064, 0
        %v3110 = vsel %vm320, %v3065, 0
        %v3113 = vsel %vm320, %v3066, 0
        %v3116 = vsel %vm320, %v3067, 0
        %v3119 = vsel %vm320, %v3068, 0
        %v3122 = vsel %vm320, %v3069, 0
        %v3125 = vsel %vm320, %v3070, 0
        %v3128 = vsel %vm320, %v3071, 0
        %v3131 = vsel %vm320, %v3072, 0
        %v3134 = vsel %vm320, %v3073, 0
        %v3137 = vsel %vm320, %v3074, 0
        %v3140 = vsel %vm320, %v3075, 0
        %v3143 = vsel %vm320, %v3076, 0
        %v3146 = vsel %vm320, %v3077, 0
        %v3149 = vsel %vm320, %v3078, 0
        %v3152 = vsel %vm320, %v3079, 0
        %v3155 = vsel %vm320, %v3080, 0
        %v3158 = vsel %vm320, %v3081, 0
        %v3161 = vsel %vm320, %v3098, 0
        %v3164 = vsel %vm320, %v3099, 0
        %v3167 = vsel %vm320, %v3100, 0
        %v3170 = vsel %vm320, %v3101, 0
        %v3173 = vsel %vm320, %v3102, 0
        %v3176 = vsel %vm320, %v3103, 0
        %v3179 = vsel %vm320, %v3104, 0
        %v3182 = vsel %vm320, %v3105, 0
        %3184 = vmatprep.subr.bf16.mxu0 0
        %3185 = vmatpush1.bf16.xpose.msra.mxu0 %v3161
        %3186 = vmatprep.subr.bf16.mxu0 0
        %3187 = vmatpush1.bf16.xpose.msra.mxu0 %v3164
        %3188 = vmatprep.subr.bf16.mxu0 0
        %3189 = vmatpush1.bf16.xpose.msra.mxu0 %v3167
        %3190 = vmatprep.subr.bf16.mxu0 0
        %3191 = vmatpush1.bf16.xpose.msra.mxu0 %v3170
        %3192 = vmatprep.subr.bf16.mxu0 0
        %3193 = vmatpush1.bf16.xpose.msra.mxu0 %v3173
        %3194 = vmatprep.subr.bf16.mxu0 0
        %3195 = vmatpush1.bf16.xpose.msra.mxu0 %v3176
        %3196 = vmatprep.subr.bf16.mxu0 0
        %3197 = vmatpush1.bf16.xpose.msra.mxu0 %v3179
        %3198 = vmatprep.subr.bf16.mxu0 0
        %3199 = vmatpush1.bf16.xpose.msra.mxu0 %v3182
        %3200 = vmatprep.subr.bf16.mxu0 0
        %3201 = vmatpush1.bf16.xpose.msra.mxu0 0
        %3202 = vmatprep.subr.bf16.mxu0 0
        %3203 = vmatpush1.bf16.xpose.msra.mxu0 0
        %3204 = vmatprep.subr.bf16.mxu0 0
        %3205 = vmatpush1.bf16.xpose.msra.mxu0 0
        %3206 = vmatprep.subr.bf16.mxu0 0
        %3207 = vmatpush1.bf16.xpose.msra.mxu0 0
        %3208 = vmatprep.subr.bf16.mxu0 0
        %3209 = vmatpush1.bf16.xpose.msra.mxu0 0
        %3210 = vmatprep.subr.bf16.mxu0 0
        %3211 = vmatpush1.bf16.xpose.msra.mxu0 0
        %3212 = vmatprep.subr.bf16.mxu0 0
        %3213 = vmatpush1.bf16.xpose.msra.mxu0 0
        %3214 = vmatprep.subr.bf16.mxu0 0
        %3215 = vmatpush1.bf16.xpose.msra.mxu0 0
        %3216 = vmatprep.mubr.bf16.mxu0 0
        %3217 = vmatmul.mubr.bf16.gmra.mrb[0].mxu0 %v3107
        %v3218 = vpop.f32.mrb[0].mxu0
        %v3219 = vadd.f32 0.0, %v3218
        %v3220 = vpop.f32.mrb[0].mxu0
        %v3221 = vpop.f32.mrb[0].mxu0
        %v3222 = vadd.f32 0.0, %v3221
        %v3223 = vpop.f32.mrb[0].mxu0
        %3224 = vmatprep.mubr.bf16.mxu0 0
        %3225 = vmatmul.mubr.bf16.gmra.mrb[0].mxu0 %v3110
        %v3226 = vpop.f32.mrb[0].mxu0
        %v3227 = vadd.f32 0.0, %v3226
        %v3228 = vpop.f32.mrb[0].mxu0
        %v3229 = vpop.f32.mrb[0].mxu0
        %v3230 = vadd.f32 0.0, %v3229
        %v3231 = vpop.f32.mrb[0].mxu0
        %3232 = vmatprep.mubr.bf16.mxu0 0
        %3233 = vmatmul.mubr.bf16.gmra.mrb[0].mxu0 %v3113
        %v3234 = vpop.f32.mrb[0].mxu0
        %v3235 = vadd.f32 0.0, %v3234
        %v3236 = vpop.f32.mrb[0].mxu0
        %v3237 = vpop.f32.mrb[0].mxu0
        %v3238 = vadd.f32 0.0, %v3237
        %v3239 = vpop.f32.mrb[0].mxu0
        %3240 = vmatprep.mubr.bf16.mxu0 0
        %3241 = vmatmul.mubr.bf16.gmra.mrb[0].mxu0 %v3116
        %v3242 = vpop.f32.mrb[0].mxu0
        %v3243 = vadd.f32 0.0, %v3242
        %v3244 = vpop.f32.mrb[0].mxu0
        %v3245 = vpop.f32.mrb[0].mxu0
        %v3246 = vadd.f32 0.0, %v3245
        %v3247 = vpop.f32.mrb[0].mxu0
        %3248 = vmatprep.mubr.bf16.mxu0 0
        %3249 = vmatmul.mubr.bf16.gmra.mrb[0].mxu0 %v3119
        %v3250 = vpop.f32.mrb[0].mxu0
        %v3251 = vadd.f32 0.0, %v3250
        %v3252 = vpop.f32.mrb[0].mxu0
        %v3253 = vpop.f32.mrb[0].mxu0
        %v3254 = vadd.f32 0.0, %v3253
        %v3255 = vpop.f32.mrb[0].mxu0
        %3256 = vmatprep.mubr.bf16.mxu0 0
        %3257 = vmatmul.mubr.bf16.gmra.mrb[0].mxu0 %v3122
        %v3258 = vpop.f32.mrb[0].mxu0
        %v3259 = vadd.f32 0.0, %v3258
        %v3260 = vpop.f32.mrb[0].mxu0
        %v3261 = vpop.f32.mrb[0].mxu0
        %v3262 = vadd.f32 0.0, %v3261
        %v3263 = vpop.f32.mrb[0].mxu0
        %3264 = vmatprep.mubr.bf16.mxu0 0
        %3265 = vmatmul.mubr.bf16.gmra.mrb[0].mxu0 %v3125
        %v3266 = vpop.f32.mrb[0].mxu0
        %v3267 = vadd.f32 0.0, %v3266
        %v3268 = vpop.f32.mrb[0].mxu0
        %v3269 = vpop.f32.mrb[0].mxu0
        %v3270 = vadd.f32 0.0, %v3269
        %v3271 = vpop.f32.mrb[0].mxu0
        %3272 = vmatprep.mubr.bf16.mxu0 0
        %3273 = vmatmul.mubr.bf16.gmra.mrb[0].mxu0 %v3128
        %v3274 = vpop.f32.mrb[0].mxu0
        %v3275 = vadd.f32 0.0, %v3274
        %v3276 = vpop.f32.mrb[0].mxu0
        %v3277 = vpop.f32.mrb[0].mxu0
        %v3278 = vadd.f32 0.0, %v3277
        %v3279 = vpop.f32.mrb[0].mxu0
        %3280 = vmatprep.mubr.bf16.mxu0 0
        %3281 = vmatmul.mubr.bf16.gmra.mrb[0].mxu0 %v3131
        %v3282 = vpop.f32.mrb[0].mxu0
        %v3283 = vadd.f32 0.0, %v3282
        %v3284 = vpop.f32.mrb[0].mxu0
        %v3285 = vpop.f32.mrb[0].mxu0
        %v3286 = vadd.f32 0.0, %v3285
        %v3287 = vpop.f32.mrb[0].mxu0
        %3288 = vmatprep.mubr.bf16.mxu0 0
        %3289 = vmatmul.mubr.bf16.gmra.mrb[0].mxu0 %v3134
        %v3290 = vpop.f32.mrb[0].mxu0
        %v3291 = vadd.f32 0.0, %v3290
        %v3292 = vpop.f32.mrb[0].mxu0
        %v3293 = vpop.f32.mrb[0].mxu0
        %v3294 = vadd.f32 0.0, %v3293
        %v3295 = vpop.f32.mrb[0].mxu0
        %3296 = vmatprep.mubr.bf16.mxu0 0
        %3297 = vmatmul.mubr.bf16.gmra.mrb[0].mxu0 %v3137
        %v3298 = vpop.f32.mrb[0].mxu0
        %v3299 = vadd.f32 0.0, %v3298
        %v3300 = vpop.f32.mrb[0].mxu0
        %v3301 = vpop.f32.mrb[0].mxu0
        %v3302 = vadd.f32 0.0, %v3301
        %v3303 = vpop.f32.mrb[0].mxu0
        %3304 = vmatprep.mubr.bf16.mxu0 0
        %3305 = vmatmul.mubr.bf16.gmra.mrb[0].mxu0 %v3140
        %v3306 = vpop.f32.mrb[0].mxu0
        %v3307 = vadd.f32 0.0, %v3306
        %v3308 = vpop.f32.mrb[0].mxu0
        %v3309 = vpop.f32.mrb[0].mxu0
        %v3310 = vadd.f32 0.0, %v3309
        %v3311 = vpop.f32.mrb[0].mxu0
        %3312 = vmatprep.mubr.bf16.mxu0 0
        %3313 = vmatmul.mubr.bf16.gmra.mrb[0].mxu0 %v3143
        %v3314 = vpop.f32.mrb[0].mxu0
        %v3315 = vadd.f32 0.0, %v3314
        %v3316 = vpop.f32.mrb[0].mxu0
        %v3317 = vpop.f32.mrb[0].mxu0
        %v3318 = vadd.f32 0.0, %v3317
        %v3319 = vpop.f32.mrb[0].mxu0
        %3320 = vmatprep.mubr.bf16.mxu0 0
        %3321 = vmatmul.mubr.bf16.gmra.mrb[0].mxu0 %v3146
        %v3322 = vpop.f32.mrb[0].mxu0
        %v3323 = vadd.f32 0.0, %v3322
        %v3324 = vpop.f32.mrb[0].mxu0
        %v3325 = vpop.f32.mrb[0].mxu0
        %v3326 = vadd.f32 0.0, %v3325
        %v3327 = vpop.f32.mrb[0].mxu0
        %3328 = vmatprep.mubr.bf16.mxu0 0
        %3329 = vmatmul.mubr.bf16.gmra.mrb[0].mxu0 %v3149
        %v3330 = vpop.f32.mrb[0].mxu0
        %v3331 = vadd.f32 0.0, %v3330
        %v3332 = vpop.f32.mrb[0].mxu0
        %v3333 = vpop.f32.mrb[0].mxu0
        %v3334 = vadd.f32 0.0, %v3333
        %v3335 = vpop.f32.mrb[0].mxu0
        %3336 = vmatprep.mubr.bf16.mxu0 0
        %3337 = vmatmul.mubr.bf16.gmra.mrb[0].mxu0 %v3152
        %v3338 = vpop.f32.mrb[0].mxu0
        %v3339 = vadd.f32 0.0, %v3338
        %v3340 = vpop.f32.mrb[0].mxu0
        %v3341 = vpop.f32.mrb[0].mxu0
        %v3342 = vadd.f32 0.0, %v3341
        %v3343 = vpop.f32.mrb[0].mxu0
        %3344 = vmatprep.mubr.bf16.mxu0 0
        %3345 = vmatmul.mubr.bf16.gmra.mrb[0].mxu0 %v3155
        %v3346 = vpop.f32.mrb[0].mxu0
        %v3347 = vadd.f32 0.0, %v3346
        %v3348 = vpop.f32.mrb[0].mxu0
        %v3349 = vpop.f32.mrb[0].mxu0
        %v3350 = vadd.f32 0.0, %v3349
        %v3351 = vpop.f32.mrb[0].mxu0
        %3352 = vmatprep.mubr.bf16.mxu0 0
        %3353 = vmatmul.mubr.bf16.gmra.mrb[0].mxu0 %v3158
        %v3354 = vpop.f32.mrb[0].mxu0
        %v3355 = vadd.f32 0.0, %v3354
        %v3356 = vpop.f32.mrb[0].mxu0
        %v3357 = vpop.f32.mrb[0].mxu0
        %v3358 = vadd.f32 0.0, %v3357
        %v3359 = vpop.f32.mrb[0].mxu0
        %3360 = vdwg.mxu0
        %v3361 = vadd.f32 %v2703, %v3219
        %v3362 = vadd.f32 %v2704, %v3222
        %v3363 = vadd.f32 %v2705, %v3227
        %v3364 = vadd.f32 %v2706, %v3230
        %v3365 = vadd.f32 %v2707, %v3235
        %v3366 = vadd.f32 %v2708, %v3238
        %v3367 = vadd.f32 %v2709, %v3243
        %v3368 = vadd.f32 %v2710, %v3246
        %v3369 = vadd.f32 %v2711, %v3251
        %v3370 = vadd.f32 %v2712, %v3254
        %v3371 = vadd.f32 %v2713, %v3259
        %v3372 = vadd.f32 %v2714, %v3262
        %v3373 = vadd.f32 %v2715, %v3267
        %v3374 = vadd.f32 %v2716, %v3270
        %v3375 = vadd.f32 %v2717, %v3275
        %v3376 = vadd.f32 %v2718, %v3278
        %v3377 = vadd.f32 %v2719, %v3283
        %v3378 = vadd.f32 %v2720, %v3286
        %v3379 = vadd.f32 %v2721, %v3291
        %v3380 = vadd.f32 %v2722, %v3294
        %v3381 = vadd.f32 %v2723, %v3299
        %v3382 = vadd.f32 %v2724, %v3302
        %v3383 = vadd.f32 %v2725, %v3307
        %v3384 = vadd.f32 %v2726, %v3310
        %v3385 = vadd.f32 %v2727, %v3315
        %v3386 = vadd.f32 %v2728, %v3318
        %v3387 = vadd.f32 %v2729, %v3323
        %v3388 = vadd.f32 %v2730, %v3326
        %v3389 = vadd.f32 %v2731, %v3331
        %v3390 = vadd.f32 %v2732, %v3334
        %v3391 = vadd.f32 %v2733, %v3339
        %v3392 = vadd.f32 %v2734, %v3342
        %v3393 = vadd.f32 %v2735, %v3347
        %v3394 = vadd.f32 %v2736, %v3350
        %v3395 = vadd.f32 %v2737, %v3355
        %v3396 = vadd.f32 %v2738, %v3358
        %v3397 = vld [vmem:[%s2264] sm:$0xe]
        %v3398 = vld [vmem:[%s2264 + $0xc] sm:$0xe]
        %v3399 = vld [vmem:[%s2264 + $0x18] sm:$0xe]
        %v3400 = vld [vmem:[%s2264 + $0x24] sm:$0xe]
        %v3401 = vld [vmem:[%s2264 + $0x30] sm:$0xe]
        %v3402 = vld [vmem:[%s2264 + $0x3c] sm:$0xe]
        %v3403 = vld [vmem:[%s2264 + $0x48] sm:$0xe]
        %v3404 = vld [vmem:[%s2264 + $0x54] sm:$0xe]
        %v3429 = vrot.slane %v3397, 5
        %v3430 = vrot.slane %v3429, 4
        %v3431 = vrot.slane %v2740, 5
        %v3432 = vsel %vm1762, %v3430, %v3431
        %v3433 = vrot.slane %v3431, 4
        %v3434 = vrot.slane %v2741, 5
        %v3435 = vsel %vm1762, %v3433, %v3434
        %v3436 = vrot.slane %v3398, 5
        %v3437 = vrot.slane %v3436, 4
        %v3438 = vrot.slane %v2743, 5
        %v3439 = vsel %vm1762, %v3437, %v3438
        %v3440 = vrot.slane %v3438, 4
        %v3441 = vrot.slane %v2744, 5
        %v3442 = vsel %vm1762, %v3440, %v3441
        %v3443 = vrot.slane %v3399, 5
        %v3444 = vrot.slane %v3443, 4
        %v3445 = vrot.slane %v2746, 5
        %v3446 = vsel %vm1762, %v3444, %v3445
        %v3447 = vrot.slane %v3445, 4
        %v3448 = vrot.slane %v2747, 5
        %v3449 = vsel %vm1762, %v3447, %v3448
        %v3450 = vrot.slane %v3400, 5
        %v3451 = vrot.slane %v3450, 4
        %v3452 = vrot.slane %v2749, 5
        %v3453 = vsel %vm1762, %v3451, %v3452
        %v3454 = vrot.slane %v3452, 4
        %v3455 = vrot.slane %v2750, 5
        %v3456 = vsel %vm1762, %v3454, %v3455
        %v3457 = vrot.slane %v3401, 5
        %v3458 = vrot.slane %v3457, 4
        %v3459 = vrot.slane %v2752, 5
        %v3460 = vsel %vm1762, %v3458, %v3459
        %v3461 = vrot.slane %v3459, 4
        %v3462 = vrot.slane %v2753, 5
        %v3463 = vsel %vm1762, %v3461, %v3462
        %v3464 = vrot.slane %v3402, 5
        %v3465 = vrot.slane %v3464, 4
        %v3466 = vrot.slane %v2755, 5
        %v3467 = vsel %vm1762, %v3465, %v3466
        %v3468 = vrot.slane %v3466, 4
        %v3469 = vrot.slane %v2756, 5
        %v3470 = vsel %vm1762, %v3468, %v3469
        %v3471 = vrot.slane %v3403, 5
        %v3472 = vrot.slane %v3471, 4
        %v3473 = vrot.slane %v2758, 5
        %v3474 = vsel %vm1762, %v3472, %v3473
        %v3475 = vrot.slane %v3473, 4
        %v3476 = vrot.slane %v2759, 5
        %v3477 = vsel %vm1762, %v3475, %v3476
        %v3478 = vrot.slane %v3404, 5
        %v3479 = vrot.slane %v3478, 4
        %v3480 = vrot.slane %v2761, 5
        %v3481 = vsel %vm1762, %v3479, %v3480
        %v3482 = vrot.slane %v3480, 4
        %v3483 = vrot.slane %v2762, 5
        %v3484 = vsel %vm1762, %v3482, %v3483
        %s3485 = scalar_lea.vmem %s1, 720
        %v3486 = vld [vmem:[%s3485] sm:$0xf]
        %v3487 = vld [vmem:[%s3485 + $0x4] sm:$0xf]
        %v3488 = vld [vmem:[%s3485 + $0x8] sm:$0xf]
        %v3489 = vld [vmem:[%s3485 + $0xc] sm:$0xf]
        %v3490 = vld [vmem:[%s3485 + $0x10] sm:$0xf]
        %v3491 = vld [vmem:[%s3485 + $0x14] sm:$0xf]
        %v3492 = vld [vmem:[%s3485 + $0x18] sm:$0xf]
        %v3493 = vld [vmem:[%s3485 + $0x1c] sm:$0xf]
        %v3494 = vld [vmem:[%s3485 + $0x20] sm:$0xf]
        %v3495 = vld [vmem:[%s3485 + $0x24] sm:$0xf]
        %v3496 = vld [vmem:[%s3485 + $0x28] sm:$0xf]
        %v3497 = vld [vmem:[%s3485 + $0x2c] sm:$0xf]
        %v3498 = vld [vmem:[%s3485 + $0x30] sm:$0xf]
        %v3499 = vld [vmem:[%s3485 + $0x34] sm:$0xf]
        %v3500 = vld [vmem:[%s3485 + $0x38] sm:$0xf]
        %v3501 = vld [vmem:[%s3485 + $0x3c] sm:$0xf]
        %v3502 = vld [vmem:[%s3485 + $0x40] sm:$0xf]
        %v3503 = vld [vmem:[%s3485 + $0x44] sm:$0xf]
        %v3504 = vld [vmem:[%s3485 + $0x48] sm:$0xf]
        %v3505 = vld [vmem:[%s3485 + $0x4c] sm:$0xf]
        %v3506 = vld [vmem:[%s3485 + $0x50] sm:$0xf]
        %v3507 = vld [vmem:[%s3485 + $0x54] sm:$0xf]
        %v3508 = vld [vmem:[%s3485 + $0x58] sm:$0xf]
        %v3509 = vld [vmem:[%s3485 + $0x5c] sm:$0xf]
        %v3510 = vld [vmem:[%s3485 + $0x60] sm:$0xf]
        %v3511 = vld [vmem:[%s3485 + $0x64] sm:$0xf]
        %v3512 = vld [vmem:[%s3485 + $0x68] sm:$0xf]
        %v3513 = vld [vmem:[%s3485 + $0x6c] sm:$0xf]
        %v3514 = vld [vmem:[%s3485 + $0x70] sm:$0xf]
        %v3515 = vld [vmem:[%s3485 + $0x74] sm:$0xf]
        %v3516 = vld [vmem:[%s3485 + $0x78] sm:$0xf]
        %v3517 = vld [vmem:[%s3485 + $0x7c] sm:$0xf]
        %v3518 = vld [vmem:[%s3485 + $0x80] sm:$0xf]
        %v3519 = vld [vmem:[%s3485 + $0x84] sm:$0xf]
        %v3520 = vld [vmem:[%s3485 + $0x88] sm:$0xf]
        %v3521 = vld [vmem:[%s3485 + $0x8c] sm:$0xf]
        %v3558 = vunpack.c.l.b16 %v3486
        %v3559 = vunpack.c.l.b16 %v3487
        %v3560 = vunpack.c.l.b16 %v3488
        %v3561 = vunpack.c.l.b16 %v3489
        %v3562 = vunpack.c.l.b16 %v3490
        %v3563 = vunpack.c.l.b16 %v3491
        %v3564 = vunpack.c.l.b16 %v3492
        %v3565 = vunpack.c.l.b16 %v3493
        %v3566 = vunpack.c.l.b16 %v3494
        %v3567 = vunpack.c.l.b16 %v3495
        %v3568 = vunpack.c.l.b16 %v3496
        %v3569 = vunpack.c.l.b16 %v3497
        %v3570 = vunpack.c.l.b16 %v3498
        %v3571 = vunpack.c.l.b16 %v3499
        %v3572 = vunpack.c.l.b16 %v3500
        %v3573 = vunpack.c.l.b16 %v3501
        %v3574 = vunpack.c.l.b16 %v3502
        %v3575 = vunpack.c.l.b16 %v3503
        %v3576 = vunpack.c.l.b16 %v3504
        %v3577 = vunpack.c.l.b16 %v3505
        %v3578 = vunpack.c.l.b16 %v3506
        %v3579 = vunpack.c.l.b16 %v3507
        %v3580 = vunpack.c.l.b16 %v3508
        %v3581 = vunpack.c.l.b16 %v3509
        %v3582 = vunpack.c.l.b16 %v3510
        %v3583 = vunpack.c.l.b16 %v3511
        %v3584 = vunpack.c.l.b16 %v3512
        %v3585 = vunpack.c.l.b16 %v3513
        %v3586 = vunpack.c.l.b16 %v3514
        %v3587 = vunpack.c.l.b16 %v3515
        %v3588 = vunpack.c.l.b16 %v3516
        %v3589 = vunpack.c.l.b16 %v3517
        %v3590 = vunpack.c.l.b16 %v3518
        %v3591 = vunpack.c.l.b16 %v3519
        %v3592 = vunpack.c.l.b16 %v3520
        %v3593 = vunpack.c.l.b16 %v3521
        %v3594 = vpack.c.b16 %v3559, %v3558
        %v3595 = vpack.c.b16 %v3561, %v3560
        %v3596 = vpack.c.b16 %v3563, %v3562
        %v3597 = vpack.c.b16 %v3565, %v3564
        %v3598 = vpack.c.b16 %v3567, %v3566
        %v3599 = vpack.c.b16 %v3569, %v3568
        %v3600 = vpack.c.b16 %v3571, %v3570
        %v3601 = vpack.c.b16 %v3573, %v3572
        %v3602 = vpack.c.b16 %v3575, %v3574
        %v3603 = vpack.c.b16 %v3577, %v3576
        %v3604 = vpack.c.b16 %v3579, %v3578
        %v3605 = vpack.c.b16 %v3581, %v3580
        %v3606 = vpack.c.b16 %v3583, %v3582
        %v3607 = vpack.c.b16 %v3585, %v3584
        %v3608 = vpack.c.b16 %v3587, %v3586
        %v3609 = vpack.c.b16 %v3589, %v3588
        %v3610 = vpack.c.b16 %v3591, %v3590
        %v3611 = vpack.c.b16 %v3593, %v3592
        %v3612 = vunpack.c.l.b16 %v3432
        %v3613 = vunpack.c.l.b16 %v3435
        %v3614 = vunpack.c.l.b16 %v3439
        %v3615 = vunpack.c.l.b16 %v3442
        %v3616 = vunpack.c.l.b16 %v3446
        %v3617 = vunpack.c.l.b16 %v3449
        %v3618 = vunpack.c.l.b16 %v3453
        %v3619 = vunpack.c.l.b16 %v3456
        %v3620 = vunpack.c.l.b16 %v3460
        %v3621 = vunpack.c.l.b16 %v3463
        %v3622 = vunpack.c.l.b16 %v3467
        %v3623 = vunpack.c.l.b16 %v3470
        %v3624 = vunpack.c.l.b16 %v3474
        %v3625 = vunpack.c.l.b16 %v3477
        %v3626 = vunpack.c.l.b16 %v3481
        %v3627 = vunpack.c.l.b16 %v3484
        %v3628 = vpack.c.b16 %v3613, %v3612
        %v3629 = vpack.c.b16 %v3615, %v3614
        %v3630 = vpack.c.b16 %v3617, %v3616
        %v3631 = vpack.c.b16 %v3619, %v3618
        %v3632 = vpack.c.b16 %v3621, %v3620
        %v3633 = vpack.c.b16 %v3623, %v3622
        %v3634 = vpack.c.b16 %v3625, %v3624
        %v3635 = vpack.c.b16 %v3627, %v3626
        %v3637 = vsel %vm320, %v3594, 0
        %v3640 = vsel %vm320, %v3595, 0
        %v3643 = vsel %vm320, %v3596, 0
        %v3646 = vsel %vm320, %v3597, 0
        %v3649 = vsel %vm320, %v3598, 0
        %v3652 = vsel %vm320, %v3599, 0
        %v3655 = vsel %vm320, %v3600, 0
        %v3658 = vsel %vm320, %v3601, 0
        %v3661 = vsel %vm320, %v3602, 0
        %v3664 = vsel %vm320, %v3603, 0
        %v3667 = vsel %vm320, %v3604, 0
        %v3670 = vsel %vm320, %v3605, 0
        %v3673 = vsel %vm320, %v3606, 0
        %v3676 = vsel %vm320, %v3607, 0
        %v3679 = vsel %vm320, %v3608, 0
        %v3682 = vsel %vm320, %v3609, 0
        %v3685 = vsel %vm320, %v3610, 0
        %v3688 = vsel %vm320, %v3611, 0
        %v3691 = vsel %vm320, %v3628, 0
        %v3694 = vsel %vm320, %v3629, 0
        %v3697 = vsel %vm320, %v3630, 0
        %v3700 = vsel %vm320, %v3631, 0
        %v3703 = vsel %vm320, %v3632, 0
        %v3706 = vsel %vm320, %v3633, 0
        %v3709 = vsel %vm320, %v3634, 0
        %v3712 = vsel %vm320, %v3635, 0
        %3714 = vmatprep.subr.bf16.mxu0 0
        %3715 = vmatpush1.bf16.xpose.msra.mxu0 %v3691
        %3716 = vmatprep.subr.bf16.mxu0 0
        %3717 = vmatpush1.bf16.xpose.msra.mxu0 %v3694
        %3718 = vmatprep.subr.bf16.mxu0 0
        %3719 = vmatpush1.bf16.xpose.msra.mxu0 %v3697
        %3720 = vmatprep.subr.bf16.mxu0 0
        %3721 = vmatpush1.bf16.xpose.msra.mxu0 %v3700
        %3722 = vmatprep.subr.bf16.mxu0 0
        %3723 = vmatpush1.bf16.xpose.msra.mxu0 %v3703
        %3724 = vmatprep.subr.bf16.mxu0 0
        %3725 = vmatpush1.bf16.xpose.msra.mxu0 %v3706
        %3726 = vmatprep.subr.bf16.mxu0 0
        %3727 = vmatpush1.bf16.xpose.msra.mxu0 %v3709
        %3728 = vmatprep.subr.bf16.mxu0 0
        %3729 = vmatpush1.bf16.xpose.msra.mxu0 %v3712
        %3730 = vmatprep.subr.bf16.mxu0 0
        %3731 = vmatpush1.bf16.xpose.msra.mxu0 0
        %3732 = vmatprep.subr.bf16.mxu0 0
        %3733 = vmatpush1.bf16.xpose.msra.mxu0 0
        %3734 = vmatprep.subr.bf16.mxu0 0
        %3735 = vmatpush1.bf16.xpose.msra.mxu0 0
        %3736 = vmatprep.subr.bf16.mxu0 0
        %3737 = vmatpush1.bf16.xpose.msra.mxu0 0
        %3738 = vmatprep.subr.bf16.mxu0 0
        %3739 = vmatpush1.bf16.xpose.msra.mxu0 0
        %3740 = vmatprep.subr.bf16.mxu0 0
        %3741 = vmatpush1.bf16.xpose.msra.mxu0 0
        %3742 = vmatprep.subr.bf16.mxu0 0
        %3743 = vmatpush1.bf16.xpose.msra.mxu0 0
        %3744 = vmatprep.subr.bf16.mxu0 0
        %3745 = vmatpush1.bf16.xpose.msra.mxu0 0
        %3746 = vmatprep.mubr.bf16.mxu0 0
        %3747 = vmatmul.mubr.bf16.gmra.mrb[0].mxu0 %v3637
        %v3748 = vpop.f32.mrb[0].mxu0
        %v3749 = vadd.f32 0.0, %v3748
        %v3750 = vpop.f32.mrb[0].mxu0
        %v3751 = vpop.f32.mrb[0].mxu0
        %v3752 = vadd.f32 0.0, %v3751
        %v3753 = vpop.f32.mrb[0].mxu0
        %3754 = vmatprep.mubr.bf16.mxu0 0
        %3755 = vmatmul.mubr.bf16.gmra.mrb[0].mxu0 %v3640
        %v3756 = vpop.f32.mrb[0].mxu0
        %v3757 = vadd.f32 0.0, %v3756
        %v3758 = vpop.f32.mrb[0].mxu0
        %v3759 = vpop.f32.mrb[0].mxu0
        %v3760 = vadd.f32 0.0, %v3759
        %v3761 = vpop.f32.mrb[0].mxu0
        %3762 = vmatprep.mubr.bf16.mxu0 0
        %3763 = vmatmul.mubr.bf16.gmra.mrb[0].mxu0 %v3643
        %v3764 = vpop.f32.mrb[0].mxu0
        %v3765 = vadd.f32 0.0, %v3764
        %v3766 = vpop.f32.mrb[0].mxu0
        %v3767 = vpop.f32.mrb[0].mxu0
        %v3768 = vadd.f32 0.0, %v3767
        %v3769 = vpop.f32.mrb[0].mxu0
        %3770 = vmatprep.mubr.bf16.mxu0 0
        %3771 = vmatmul.mubr.bf16.gmra.mrb[0].mxu0 %v3646
        %v3772 = vpop.f32.mrb[0].mxu0
        %v3773 = vadd.f32 0.0, %v3772
        %v3774 = vpop.f32.mrb[0].mxu0
        %v3775 = vpop.f32.mrb[0].mxu0
        %v3776 = vadd.f32 0.0, %v3775
        %v3777 = vpop.f32.mrb[0].mxu0
        %3778 = vmatprep.mubr.bf16.mxu0 0
        %3779 = vmatmul.mubr.bf16.gmra.mrb[0].mxu0 %v3649
        %v3780 = vpop.f32.mrb[0].mxu0
        %v3781 = vadd.f32 0.0, %v3780
        %v3782 = vpop.f32.mrb[0].mxu0
        %v3783 = vpop.f32.mrb[0].mxu0
        %v3784 = vadd.f32 0.0, %v3783
        %v3785 = vpop.f32.mrb[0].mxu0
        %3786 = vmatprep.mubr.bf16.mxu0 0
        %3787 = vmatmul.mubr.bf16.gmra.mrb[0].mxu0 %v3652
        %v3788 = vpop.f32.mrb[0].mxu0
        %v3789 = vadd.f32 0.0, %v3788
        %v3790 = vpop.f32.mrb[0].mxu0
        %v3791 = vpop.f32.mrb[0].mxu0
        %v3792 = vadd.f32 0.0, %v3791
        %v3793 = vpop.f32.mrb[0].mxu0
        %3794 = vmatprep.mubr.bf16.mxu0 0
        %3795 = vmatmul.mubr.bf16.gmra.mrb[0].mxu0 %v3655
        %v3796 = vpop.f32.mrb[0].mxu0
        %v3797 = vadd.f32 0.0, %v3796
        %v3798 = vpop.f32.mrb[0].mxu0
        %v3799 = vpop.f32.mrb[0].mxu0
        %v3800 = vadd.f32 0.0, %v3799
        %v3801 = vpop.f32.mrb[0].mxu0
        %3802 = vmatprep.mubr.bf16.mxu0 0
        %3803 = vmatmul.mubr.bf16.gmra.mrb[0].mxu0 %v3658
        %v3804 = vpop.f32.mrb[0].mxu0
        %v3805 = vadd.f32 0.0, %v3804
        %v3806 = vpop.f32.mrb[0].mxu0
        %v3807 = vpop.f32.mrb[0].mxu0
        %v3808 = vadd.f32 0.0, %v3807
        %v3809 = vpop.f32.mrb[0].mxu0
        %3810 = vmatprep.mubr.bf16.mxu0 0
        %3811 = vmatmul.mubr.bf16.gmra.mrb[0].mxu0 %v3661
        %v3812 = vpop.f32.mrb[0].mxu0
        %v3813 = vadd.f32 0.0, %v3812
        %v3814 = vpop.f32.mrb[0].mxu0
        %v3815 = vpop.f32.mrb[0].mxu0
        %v3816 = vadd.f32 0.0, %v3815
        %v3817 = vpop.f32.mrb[0].mxu0
        %3818 = vmatprep.mubr.bf16.mxu0 0
        %3819 = vmatmul.mubr.bf16.gmra.mrb[0].mxu0 %v3664
        %v3820 = vpop.f32.mrb[0].mxu0
        %v3821 = vadd.f32 0.0, %v3820
        %v3822 = vpop.f32.mrb[0].mxu0
        %v3823 = vpop.f32.mrb[0].mxu0
        %v3824 = vadd.f32 0.0, %v3823
        %v3825 = vpop.f32.mrb[0].mxu0
        %3826 = vmatprep.mubr.bf16.mxu0 0
        %3827 = vmatmul.mubr.bf16.gmra.mrb[0].mxu0 %v3667
        %v3828 = vpop.f32.mrb[0].mxu0
        %v3829 = vadd.f32 0.0, %v3828
        %v3830 = vpop.f32.mrb[0].mxu0
        %v3831 = vpop.f32.mrb[0].mxu0
        %v3832 = vadd.f32 0.0, %v3831
        %v3833 = vpop.f32.mrb[0].mxu0
        %3834 = vmatprep.mubr.bf16.mxu0 0
        %3835 = vmatmul.mubr.bf16.gmra.mrb[0].mxu0 %v3670
        %v3836 = vpop.f32.mrb[0].mxu0
        %v3837 = vadd.f32 0.0, %v3836
        %v3838 = vpop.f32.mrb[0].mxu0
        %v3839 = vpop.f32.mrb[0].mxu0
        %v3840 = vadd.f32 0.0, %v3839
        %v3841 = vpop.f32.mrb[0].mxu0
        %3842 = vmatprep.mubr.bf16.mxu0 0
        %3843 = vmatmul.mubr.bf16.gmra.mrb[0].mxu0 %v3673
        %v3844 = vpop.f32.mrb[0].mxu0
        %v3845 = vadd.f32 0.0, %v3844
        %v3846 = vpop.f32.mrb[0].mxu0
        %v3847 = vpop.f32.mrb[0].mxu0
        %v3848 = vadd.f32 0.0, %v3847
        %v3849 = vpop.f32.mrb[0].mxu0
        %3850 = vmatprep.mubr.bf16.mxu0 0
        %3851 = vmatmul.mubr.bf16.gmra.mrb[0].mxu0 %v3676
        %v3852 = vpop.f32.mrb[0].mxu0
        %v3853 = vadd.f32 0.0, %v3852
        %v3854 = vpop.f32.mrb[0].mxu0
        %v3855 = vpop.f32.mrb[0].mxu0
        %v3856 = vadd.f32 0.0, %v3855
        %v3857 = vpop.f32.mrb[0].mxu0
        %3858 = vmatprep.mubr.bf16.mxu0 0
        %3859 = vmatmul.mubr.bf16.gmra.mrb[0].mxu0 %v3679
        %v3860 = vpop.f32.mrb[0].mxu0
        %v3861 = vadd.f32 0.0, %v3860
        %v3862 = vpop.f32.mrb[0].mxu0
        %v3863 = vpop.f32.mrb[0].mxu0
        %v3864 = vadd.f32 0.0, %v3863
        %v3865 = vpop.f32.mrb[0].mxu0
        %3866 = vmatprep.mubr.bf16.mxu0 0
        %3867 = vmatmul.mubr.bf16.gmra.mrb[0].mxu0 %v3682
        %v3868 = vpop.f32.mrb[0].mxu0
        %v3869 = vadd.f32 0.0, %v3868
        %v3870 = vpop.f32.mrb[0].mxu0
        %v3871 = vpop.f32.mrb[0].mxu0
        %v3872 = vadd.f32 0.0, %v3871
        %v3873 = vpop.f32.mrb[0].mxu0
        %3874 = vmatprep.mubr.bf16.mxu0 0
        %3875 = vmatmul.mubr.bf16.gmra.mrb[0].mxu0 %v3685
        %v3876 = vpop.f32.mrb[0].mxu0
        %v3877 = vadd.f32 0.0, %v3876
        %v3878 = vpop.f32.mrb[0].mxu0
        %v3879 = vpop.f32.mrb[0].mxu0
        %v3880 = vadd.f32 0.0, %v3879
        %v3881 = vpop.f32.mrb[0].mxu0
        %3882 = vmatprep.mubr.bf16.mxu0 0
        %3883 = vmatmul.mubr.bf16.gmra.mrb[0].mxu0 %v3688
        %v3884 = vpop.f32.mrb[0].mxu0
        %v3885 = vadd.f32 0.0, %v3884
        %v3886 = vpop.f32.mrb[0].mxu0
        %v3887 = vpop.f32.mrb[0].mxu0
        %v3888 = vadd.f32 0.0, %v3887
        %v3889 = vpop.f32.mrb[0].mxu0
        %3890 = vdwg.mxu0
        %v3891 = vadd.f32 %v3361, %v3749
        %v3892 = vadd.f32 %v3362, %v3752
        %v3893 = vadd.f32 %v3363, %v3757
        %v3894 = vadd.f32 %v3364, %v3760
        %v3895 = vadd.f32 %v3365, %v3765
        %v3896 = vadd.f32 %v3366, %v3768
        %v3897 = vadd.f32 %v3367, %v3773
        %v3898 = vadd.f32 %v3368, %v3776
        %v3899 = vadd.f32 %v3369, %v3781
        %v3900 = vadd.f32 %v3370, %v3784
        %v3901 = vadd.f32 %v3371, %v3789
        %v3902 = vadd.f32 %v3372, %v3792
        %v3903 = vadd.f32 %v3373, %v3797
        %v3904 = vadd.f32 %v3374, %v3800
        %v3905 = vadd.f32 %v3375, %v3805
        %v3906 = vadd.f32 %v3376, %v3808
        %v3907 = vadd.f32 %v3377, %v3813
        %v3908 = vadd.f32 %v3378, %v3816
        %v3909 = vadd.f32 %v3379, %v3821
        %v3910 = vadd.f32 %v3380, %v3824
        %v3911 = vadd.f32 %v3381, %v3829
        %v3912 = vadd.f32 %v3382, %v3832
        %v3913 = vadd.f32 %v3383, %v3837
        %v3914 = vadd.f32 %v3384, %v3840
        %v3915 = vadd.f32 %v3385, %v3845
        %v3916 = vadd.f32 %v3386, %v3848
        %v3917 = vadd.f32 %v3387, %v3853
        %v3918 = vadd.f32 %v3388, %v3856
        %v3919 = vadd.f32 %v3389, %v3861
        %v3920 = vadd.f32 %v3390, %v3864
        %v3921 = vadd.f32 %v3391, %v3869
        %v3922 = vadd.f32 %v3392, %v3872
        %v3923 = vadd.f32 %v3393, %v3877
        %v3924 = vadd.f32 %v3394, %v3880
        %v3925 = vadd.f32 %v3395, %v3885
        %v3926 = vadd.f32 %v3396, %v3888
        %s3927 = sadd.s32 %s211, 2
        %s3928 = smul.u32 %s3927, 3
        %s3929 = smul.addr %s3928, 4
        %s3930 = scalar_lea.vmem %s209, %s3929
        %v3931 = vld [vmem:[%s3930] sm:$0xf]
        %v3932 = vld [vmem:[%s3930 + $0x4] sm:$0xf]
        %v3933 = vld [vmem:[%s3930 + $0xc] sm:$0xf]
        %v3934 = vld [vmem:[%s3930 + $0x10] sm:$0xf]
        %v3935 = vld [vmem:[%s3930 + $0x18] sm:$0xf]
        %v3936 = vld [vmem:[%s3930 + $0x1c] sm:$0xf]
        %v3937 = vld [vmem:[%s3930 + $0x24] sm:$0xf]
        %v3938 = vld [vmem:[%s3930 + $0x28] sm:$0xf]
        %v3939 = vld [vmem:[%s3930 + $0x30] sm:$0xf]
        %v3940 = vld [vmem:[%s3930 + $0x34] sm:$0xf]
        %v3941 = vld [vmem:[%s3930 + $0x3c] sm:$0xf]
        %v3942 = vld [vmem:[%s3930 + $0x40] sm:$0xf]
        %v3943 = vld [vmem:[%s3930 + $0x48] sm:$0xf]
        %v3944 = vld [vmem:[%s3930 + $0x4c] sm:$0xf]
        %v3945 = vld [vmem:[%s3930 + $0x54] sm:$0xf]
        %v3946 = vld [vmem:[%s3930 + $0x58] sm:$0xf]
        %s3947 = scalar_lea.vmem %s1, 864
        %v3948 = vld [vmem:[%s3947] sm:$0xf]
        %v3949 = vld [vmem:[%s3947 + $0x4] sm:$0xf]
        %v3950 = vld [vmem:[%s3947 + $0x8] sm:$0xf]
        %v3951 = vld [vmem:[%s3947 + $0xc] sm:$0xf]
        %v3952 = vld [vmem:[%s3947 + $0x10] sm:$0xf]
        %v3953 = vld [vmem:[%s3947 + $0x14] sm:$0xf]
        %v3954 = vld [vmem:[%s3947 + $0x18] sm:$0xf]
        %v3955 = vld [vmem:[%s3947 + $0x1c] sm:$0xf]
        %v3956 = vld [vmem:[%s3947 + $0x20] sm:$0xf]
        %v3957 = vld [vmem:[%s3947 + $0x24] sm:$0xf]
        %v3958 = vld [vmem:[%s3947 + $0x28] sm:$0xf]
        %v3959 = vld [vmem:[%s3947 + $0x2c] sm:$0xf]
        %v3960 = vld [vmem:[%s3947 + $0x30] sm:$0xf]
        %v3961 = vld [vmem:[%s3947 + $0x34] sm:$0xf]
        %v3962 = vld [vmem:[%s3947 + $0x38] sm:$0xf]
        %v3963 = vld [vmem:[%s3947 + $0x3c] sm:$0xf]
        %v3964 = vld [vmem:[%s3947 + $0x40] sm:$0xf]
        %v3965 = vld [vmem:[%s3947 + $0x44] sm:$0xf]
        %v3966 = vld [vmem:[%s3947 + $0x48] sm:$0xf]
        %v3967 = vld [vmem:[%s3947 + $0x4c] sm:$0xf]
        %v3968 = vld [vmem:[%s3947 + $0x50] sm:$0xf]
        %v3969 = vld [vmem:[%s3947 + $0x54] sm:$0xf]
        %v3970 = vld [vmem:[%s3947 + $0x58] sm:$0xf]
        %v3971 = vld [vmem:[%s3947 + $0x5c] sm:$0xf]
        %v3972 = vld [vmem:[%s3947 + $0x60] sm:$0xf]
        %v3973 = vld [vmem:[%s3947 + $0x64] sm:$0xf]
        %v3974 = vld [vmem:[%s3947 + $0x68] sm:$0xf]
        %v3975 = vld [vmem:[%s3947 + $0x6c] sm:$0xf]
        %v3976 = vld [vmem:[%s3947 + $0x70] sm:$0xf]
        %v3977 = vld [vmem:[%s3947 + $0x74] sm:$0xf]
        %v3978 = vld [vmem:[%s3947 + $0x78] sm:$0xf]
        %v3979 = vld [vmem:[%s3947 + $0x7c] sm:$0xf]
        %v3980 = vld [vmem:[%s3947 + $0x80] sm:$0xf]
        %v3981 = vld [vmem:[%s3947 + $0x84] sm:$0xf]
        %v3982 = vld [vmem:[%s3947 + $0x88] sm:$0xf]
        %v3983 = vld [vmem:[%s3947 + $0x8c] sm:$0xf]
        %v4020 = vunpack.c.l.b16 %v3948
        %v4021 = vunpack.c.l.b16 %v3949
        %v4022 = vunpack.c.l.b16 %v3950
        %v4023 = vunpack.c.l.b16 %v3951
        %v4024 = vunpack.c.l.b16 %v3952
        %v4025 = vunpack.c.l.b16 %v3953
        %v4026 = vunpack.c.l.b16 %v3954
        %v4027 = vunpack.c.l.b16 %v3955
        %v4028 = vunpack.c.l.b16 %v3956
        %v4029 = vunpack.c.l.b16 %v3957
        %v4030 = vunpack.c.l.b16 %v3958
        %v4031 = vunpack.c.l.b16 %v3959
        %v4032 = vunpack.c.l.b16 %v3960
        %v4033 = vunpack.c.l.b16 %v3961
        %v4034 = vunpack.c.l.b16 %v3962
        %v4035 = vunpack.c.l.b16 %v3963
        %v4036 = vunpack.c.l.b16 %v3964
        %v4037 = vunpack.c.l.b16 %v3965
        %v4038 = vunpack.c.l.b16 %v3966
        %v4039 = vunpack.c.l.b16 %v3967
        %v4040 = vunpack.c.l.b16 %v3968
        %v4041 = vunpack.c.l.b16 %v3969
        %v4042 = vunpack.c.l.b16 %v3970
        %v4043 = vunpack.c.l.b16 %v3971
        %v4044 = vunpack.c.l.b16 %v3972
        %v4045 = vunpack.c.l.b16 %v3973
        %v4046 = vunpack.c.l.b16 %v3974
        %v4047 = vunpack.c.l.b16 %v3975
        %v4048 = vunpack.c.l.b16 %v3976
        %v4049 = vunpack.c.l.b16 %v3977
        %v4050 = vunpack.c.l.b16 %v3978
        %v4051 = vunpack.c.l.b16 %v3979
        %v4052 = vunpack.c.l.b16 %v3980
        %v4053 = vunpack.c.l.b16 %v3981
        %v4054 = vunpack.c.l.b16 %v3982
        %v4055 = vunpack.c.l.b16 %v3983
        %v4056 = vpack.c.b16 %v4021, %v4020
        %v4057 = vpack.c.b16 %v4023, %v4022
        %v4058 = vpack.c.b16 %v4025, %v4024
        %v4059 = vpack.c.b16 %v4027, %v4026
        %v4060 = vpack.c.b16 %v4029, %v4028
        %v4061 = vpack.c.b16 %v4031, %v4030
        %v4062 = vpack.c.b16 %v4033, %v4032
        %v4063 = vpack.c.b16 %v4035, %v4034
        %v4064 = vpack.c.b16 %v4037, %v4036
        %v4065 = vpack.c.b16 %v4039, %v4038
        %v4066 = vpack.c.b16 %v4041, %v4040
        %v4067 = vpack.c.b16 %v4043, %v4042
        %v4068 = vpack.c.b16 %v4045, %v4044
        %v4069 = vpack.c.b16 %v4047, %v4046
        %v4070 = vpack.c.b16 %v4049, %v4048
        %v4071 = vpack.c.b16 %v4051, %v4050
        %v4072 = vpack.c.b16 %v4053, %v4052
        %v4073 = vpack.c.b16 %v4055, %v4054
        %v4090 = vunpack.c.l.b16 %v3931
        %v4091 = vunpack.c.l.b16 %v3932
        %v4092 = vunpack.c.l.b16 %v3933
        %v4093 = vunpack.c.l.b16 %v3934
        %v4094 = vunpack.c.l.b16 %v3935
        %v4095 = vunpack.c.l.b16 %v3936
        %v4096 = vunpack.c.l.b16 %v3937
        %v4097 = vunpack.c.l.b16 %v3938
        %v4098 = vunpack.c.l.b16 %v3939
        %v4099 = vunpack.c.l.b16 %v3940
        %v4100 = vunpack.c.l.b16 %v3941
        %v4101 = vunpack.c.l.b16 %v3942
        %v4102 = vunpack.c.l.b16 %v3943
        %v4103 = vunpack.c.l.b16 %v3944
        %v4104 = vunpack.c.l.b16 %v3945
        %v4105 = vunpack.c.l.b16 %v3946
        %v4106 = vpack.c.b16 %v4091, %v4090
        %v4107 = vpack.c.b16 %v4093, %v4092
        %v4108 = vpack.c.b16 %v4095, %v4094
        %v4109 = vpack.c.b16 %v4097, %v4096
        %v4110 = vpack.c.b16 %v4099, %v4098
        %v4111 = vpack.c.b16 %v4101, %v4100
        %v4112 = vpack.c.b16 %v4103, %v4102
        %v4113 = vpack.c.b16 %v4105, %v4104
        %v4115 = vsel %vm320, %v4056, 0
        %v4118 = vsel %vm320, %v4057, 0
        %v4121 = vsel %vm320, %v4058, 0
        %v4124 = vsel %vm320, %v4059, 0
        %v4127 = vsel %vm320, %v4060, 0
        %v4130 = vsel %vm320, %v4061, 0
        %v4133 = vsel %vm320, %v4062, 0
        %v4136 = vsel %vm320, %v4063, 0
        %v4139 = vsel %vm320, %v4064, 0
        %v4142 = vsel %vm320, %v4065, 0
        %v4145 = vsel %vm320, %v4066, 0
        %v4148 = vsel %vm320, %v4067, 0
        %v4151 = vsel %vm320, %v4068, 0
        %v4154 = vsel %vm320, %v4069, 0
        %v4157 = vsel %vm320, %v4070, 0
        %v4160 = vsel %vm320, %v4071, 0
        %v4163 = vsel %vm320, %v4072, 0
        %v4166 = vsel %vm320, %v4073, 0
        %v4169 = vsel %vm320, %v4106, 0
        %v4172 = vsel %vm320, %v4107, 0
        %v4175 = vsel %vm320, %v4108, 0
        %v4178 = vsel %vm320, %v4109, 0
        %v4181 = vsel %vm320, %v4110, 0
        %v4184 = vsel %vm320, %v4111, 0
        %v4187 = vsel %vm320, %v4112, 0
        %v4190 = vsel %vm320, %v4113, 0
        %4192 = vmatprep.subr.bf16.mxu0 0
        %4193 = vmatpush1.bf16.xpose.msra.mxu0 %v4169
        %4194 = vmatprep.subr.bf16.mxu0 0
        %4195 = vmatpush1.bf16.xpose.msra.mxu0 %v4172
        %4196 = vmatprep.subr.bf16.mxu0 0
        %4197 = vmatpush1.bf16.xpose.msra.mxu0 %v4175
        %4198 = vmatprep.subr.bf16.mxu0 0
        %4199 = vmatpush1.bf16.xpose.msra.mxu0 %v4178
        %4200 = vmatprep.subr.bf16.mxu0 0
        %4201 = vmatpush1.bf16.xpose.msra.mxu0 %v4181
        %4202 = vmatprep.subr.bf16.mxu0 0
        %4203 = vmatpush1.bf16.xpose.msra.mxu0 %v4184
        %4204 = vmatprep.subr.bf16.mxu0 0
        %4205 = vmatpush1.bf16.xpose.msra.mxu0 %v4187
        %4206 = vmatprep.subr.bf16.mxu0 0
        %4207 = vmatpush1.bf16.xpose.msra.mxu0 %v4190
        %4208 = vmatprep.subr.bf16.mxu0 0
        %4209 = vmatpush1.bf16.xpose.msra.mxu0 0
        %4210 = vmatprep.subr.bf16.mxu0 0
        %4211 = vmatpush1.bf16.xpose.msra.mxu0 0
        %4212 = vmatprep.subr.bf16.mxu0 0
        %4213 = vmatpush1.bf16.xpose.msra.mxu0 0
        %4214 = vmatprep.subr.bf16.mxu0 0
        %4215 = vmatpush1.bf16.xpose.msra.mxu0 0
        %4216 = vmatprep.subr.bf16.mxu0 0
        %4217 = vmatpush1.bf16.xpose.msra.mxu0 0
        %4218 = vmatprep.subr.bf16.mxu0 0
        %4219 = vmatpush1.bf16.xpose.msra.mxu0 0
        %4220 = vmatprep.subr.bf16.mxu0 0
        %4221 = vmatpush1.bf16.xpose.msra.mxu0 0
        %4222 = vmatprep.subr.bf16.mxu0 0
        %4223 = vmatpush1.bf16.xpose.msra.mxu0 0
        %4224 = vmatprep.mubr.bf16.mxu0 0
        %4225 = vmatmul.mubr.bf16.gmra.mrb[0].mxu0 %v4115
        %v4226 = vpop.f32.mrb[0].mxu0
        %v4227 = vadd.f32 0.0, %v4226
        %v4228 = vpop.f32.mrb[0].mxu0
        %v4229 = vpop.f32.mrb[0].mxu0
        %v4230 = vadd.f32 0.0, %v4229
        %v4231 = vpop.f32.mrb[0].mxu0
        %4232 = vmatprep.mubr.bf16.mxu0 0
        %4233 = vmatmul.mubr.bf16.gmra.mrb[0].mxu0 %v4118
        %v4234 = vpop.f32.mrb[0].mxu0
        %v4235 = vadd.f32 0.0, %v4234
        %v4236 = vpop.f32.mrb[0].mxu0
        %v4237 = vpop.f32.mrb[0].mxu0
        %v4238 = vadd.f32 0.0, %v4237
        %v4239 = vpop.f32.mrb[0].mxu0
        %4240 = vmatprep.mubr.bf16.mxu0 0
        %4241 = vmatmul.mubr.bf16.gmra.mrb[0].mxu0 %v4121
        %v4242 = vpop.f32.mrb[0].mxu0
        %v4243 = vadd.f32 0.0, %v4242
        %v4244 = vpop.f32.mrb[0].mxu0
        %v4245 = vpop.f32.mrb[0].mxu0
        %v4246 = vadd.f32 0.0, %v4245
        %v4247 = vpop.f32.mrb[0].mxu0
        %4248 = vmatprep.mubr.bf16.mxu0 0
        %4249 = vmatmul.mubr.bf16.gmra.mrb[0].mxu0 %v4124
        %v4250 = vpop.f32.mrb[0].mxu0
        %v4251 = vadd.f32 0.0, %v4250
        %v4252 = vpop.f32.mrb[0].mxu0
        %v4253 = vpop.f32.mrb[0].mxu0
        %v4254 = vadd.f32 0.0, %v4253
        %v4255 = vpop.f32.mrb[0].mxu0
        %4256 = vmatprep.mubr.bf16.mxu0 0
        %4257 = vmatmul.mubr.bf16.gmra.mrb[0].mxu0 %v4127
        %v4258 = vpop.f32.mrb[0].mxu0
        %v4259 = vadd.f32 0.0, %v4258
        %v4260 = vpop.f32.mrb[0].mxu0
        %v4261 = vpop.f32.mrb[0].mxu0
        %v4262 = vadd.f32 0.0, %v4261
        %v4263 = vpop.f32.mrb[0].mxu0
        %4264 = vmatprep.mubr.bf16.mxu0 0
        %4265 = vmatmul.mubr.bf16.gmra.mrb[0].mxu0 %v4130
        %v4266 = vpop.f32.mrb[0].mxu0
        %v4267 = vadd.f32 0.0, %v4266
        %v4268 = vpop.f32.mrb[0].mxu0
        %v4269 = vpop.f32.mrb[0].mxu0
        %v4270 = vadd.f32 0.0, %v4269
        %v4271 = vpop.f32.mrb[0].mxu0
        %4272 = vmatprep.mubr.bf16.mxu0 0
        %4273 = vmatmul.mubr.bf16.gmra.mrb[0].mxu0 %v4133
        %v4274 = vpop.f32.mrb[0].mxu0
        %v4275 = vadd.f32 0.0, %v4274
        %v4276 = vpop.f32.mrb[0].mxu0
        %v4277 = vpop.f32.mrb[0].mxu0
        %v4278 = vadd.f32 0.0, %v4277
        %v4279 = vpop.f32.mrb[0].mxu0
        %4280 = vmatprep.mubr.bf16.mxu0 0
        %4281 = vmatmul.mubr.bf16.gmra.mrb[0].mxu0 %v4136
        %v4282 = vpop.f32.mrb[0].mxu0
        %v4283 = vadd.f32 0.0, %v4282
        %v4284 = vpop.f32.mrb[0].mxu0
        %v4285 = vpop.f32.mrb[0].mxu0
        %v4286 = vadd.f32 0.0, %v4285
        %v4287 = vpop.f32.mrb[0].mxu0
        %4288 = vmatprep.mubr.bf16.mxu0 0
        %4289 = vmatmul.mubr.bf16.gmra.mrb[0].mxu0 %v4139
        %v4290 = vpop.f32.mrb[0].mxu0
        %v4291 = vadd.f32 0.0, %v4290
        %v4292 = vpop.f32.mrb[0].mxu0
        %v4293 = vpop.f32.mrb[0].mxu0
        %v4294 = vadd.f32 0.0, %v4293
        %v4295 = vpop.f32.mrb[0].mxu0
        %4296 = vmatprep.mubr.bf16.mxu0 0
        %4297 = vmatmul.mubr.bf16.gmra.mrb[0].mxu0 %v4142
        %v4298 = vpop.f32.mrb[0].mxu0
        %v4299 = vadd.f32 0.0, %v4298
        %v4300 = vpop.f32.mrb[0].mxu0
        %v4301 = vpop.f32.mrb[0].mxu0
        %v4302 = vadd.f32 0.0, %v4301
        %v4303 = vpop.f32.mrb[0].mxu0
        %4304 = vmatprep.mubr.bf16.mxu0 0
        %4305 = vmatmul.mubr.bf16.gmra.mrb[0].mxu0 %v4145
        %v4306 = vpop.f32.mrb[0].mxu0
        %v4307 = vadd.f32 0.0, %v4306
        %v4308 = vpop.f32.mrb[0].mxu0
        %v4309 = vpop.f32.mrb[0].mxu0
        %v4310 = vadd.f32 0.0, %v4309
        %v4311 = vpop.f32.mrb[0].mxu0
        %4312 = vmatprep.mubr.bf16.mxu0 0
        %4313 = vmatmul.mubr.bf16.gmra.mrb[0].mxu0 %v4148
        %v4314 = vpop.f32.mrb[0].mxu0
        %v4315 = vadd.f32 0.0, %v4314
        %v4316 = vpop.f32.mrb[0].mxu0
        %v4317 = vpop.f32.mrb[0].mxu0
        %v4318 = vadd.f32 0.0, %v4317
        %v4319 = vpop.f32.mrb[0].mxu0
        %4320 = vmatprep.mubr.bf16.mxu0 0
        %4321 = vmatmul.mubr.bf16.gmra.mrb[0].mxu0 %v4151
        %v4322 = vpop.f32.mrb[0].mxu0
        %v4323 = vadd.f32 0.0, %v4322
        %v4324 = vpop.f32.mrb[0].mxu0
        %v4325 = vpop.f32.mrb[0].mxu0
        %v4326 = vadd.f32 0.0, %v4325
        %v4327 = vpop.f32.mrb[0].mxu0
        %4328 = vmatprep.mubr.bf16.mxu0 0
        %4329 = vmatmul.mubr.bf16.gmra.mrb[0].mxu0 %v4154
        %v4330 = vpop.f32.mrb[0].mxu0
        %v4331 = vadd.f32 0.0, %v4330
        %v4332 = vpop.f32.mrb[0].mxu0
        %v4333 = vpop.f32.mrb[0].mxu0
        %v4334 = vadd.f32 0.0, %v4333
        %v4335 = vpop.f32.mrb[0].mxu0
        %4336 = vmatprep.mubr.bf16.mxu0 0
        %4337 = vmatmul.mubr.bf16.gmra.mrb[0].mxu0 %v4157
        %v4338 = vpop.f32.mrb[0].mxu0
        %v4339 = vadd.f32 0.0, %v4338
        %v4340 = vpop.f32.mrb[0].mxu0
        %v4341 = vpop.f32.mrb[0].mxu0
        %v4342 = vadd.f32 0.0, %v4341
        %v4343 = vpop.f32.mrb[0].mxu0
        %4344 = vmatprep.mubr.bf16.mxu0 0
        %4345 = vmatmul.mubr.bf16.gmra.mrb[0].mxu0 %v4160
        %v4346 = vpop.f32.mrb[0].mxu0
        %v4347 = vadd.f32 0.0, %v4346
        %v4348 = vpop.f32.mrb[0].mxu0
        %v4349 = vpop.f32.mrb[0].mxu0
        %v4350 = vadd.f32 0.0, %v4349
        %v4351 = vpop.f32.mrb[0].mxu0
        %4352 = vmatprep.mubr.bf16.mxu0 0
        %4353 = vmatmul.mubr.bf16.gmra.mrb[0].mxu0 %v4163
        %v4354 = vpop.f32.mrb[0].mxu0
        %v4355 = vadd.f32 0.0, %v4354
        %v4356 = vpop.f32.mrb[0].mxu0
        %v4357 = vpop.f32.mrb[0].mxu0
        %v4358 = vadd.f32 0.0, %v4357
        %v4359 = vpop.f32.mrb[0].mxu0
        %4360 = vmatprep.mubr.bf16.mxu0 0
        %4361 = vmatmul.mubr.bf16.gmra.mrb[0].mxu0 %v4166
        %v4362 = vpop.f32.mrb[0].mxu0
        %v4363 = vadd.f32 0.0, %v4362
        %v4364 = vpop.f32.mrb[0].mxu0
        %v4365 = vpop.f32.mrb[0].mxu0
        %v4366 = vadd.f32 0.0, %v4365
        %v4367 = vpop.f32.mrb[0].mxu0
        %4368 = vdwg.mxu0
        %v4369 = vadd.f32 %v3891, %v4227
        %v4370 = vadd.f32 %v3892, %v4230
        %v4371 = vadd.f32 %v3893, %v4235
        %v4372 = vadd.f32 %v3894, %v4238
        %v4373 = vadd.f32 %v3895, %v4243
        %v4374 = vadd.f32 %v3896, %v4246
        %v4375 = vadd.f32 %v3897, %v4251
        %v4376 = vadd.f32 %v3898, %v4254
        %v4377 = vadd.f32 %v3899, %v4259
        %v4378 = vadd.f32 %v3900, %v4262
        %v4379 = vadd.f32 %v3901, %v4267
        %v4380 = vadd.f32 %v3902, %v4270
        %v4381 = vadd.f32 %v3903, %v4275
        %v4382 = vadd.f32 %v3904, %v4278
        %v4383 = vadd.f32 %v3905, %v4283
        %v4384 = vadd.f32 %v3906, %v4286
        %v4385 = vadd.f32 %v3907, %v4291
        %v4386 = vadd.f32 %v3908, %v4294
        %v4387 = vadd.f32 %v3909, %v4299
        %v4388 = vadd.f32 %v3910, %v4302
        %v4389 = vadd.f32 %v3911, %v4307
        %v4390 = vadd.f32 %v3912, %v4310
        %v4391 = vadd.f32 %v3913, %v4315
        %v4392 = vadd.f32 %v3914, %v4318
        %v4393 = vadd.f32 %v3915, %v4323
        %v4394 = vadd.f32 %v3916, %v4326
        %v4395 = vadd.f32 %v3917, %v4331
        %v4396 = vadd.f32 %v3918, %v4334
        %v4397 = vadd.f32 %v3919, %v4339
        %v4398 = vadd.f32 %v3920, %v4342
        %v4399 = vadd.f32 %v3921, %v4347
        %v4400 = vadd.f32 %v3922, %v4350
        %v4401 = vadd.f32 %v3923, %v4355
        %v4402 = vadd.f32 %v3924, %v4358
        %v4403 = vadd.f32 %v3925, %v4363
        %v4404 = vadd.f32 %v3926, %v4366
        %v4405 = vld [vmem:[%s3930] sm:$0xf]
        %v4406 = vld [vmem:[%s3930 + $0x4] sm:$0xf]
        %v4407 = vld [vmem:[%s3930 + $0x8] sm:$0x1]
        %v4408 = vld [vmem:[%s3930 + $0xc] sm:$0xf]
        %v4409 = vld [vmem:[%s3930 + $0x10] sm:$0xf]
        %v4410 = vld [vmem:[%s3930 + $0x14] sm:$0x1]
        %v4411 = vld [vmem:[%s3930 + $0x18] sm:$0xf]
        %v4412 = vld [vmem:[%s3930 + $0x1c] sm:$0xf]
        %v4413 = vld [vmem:[%s3930 + $0x20] sm:$0x1]
        %v4414 = vld [vmem:[%s3930 + $0x24] sm:$0xf]
        %v4415 = vld [vmem:[%s3930 + $0x28] sm:$0xf]
        %v4416 = vld [vmem:[%s3930 + $0x2c] sm:$0x1]
        %v4417 = vld [vmem:[%s3930 + $0x30] sm:$0xf]
        %v4418 = vld [vmem:[%s3930 + $0x34] sm:$0xf]
        %v4419 = vld [vmem:[%s3930 + $0x38] sm:$0x1]
        %v4420 = vld [vmem:[%s3930 + $0x3c] sm:$0xf]
        %v4421 = vld [vmem:[%s3930 + $0x40] sm:$0xf]
        %v4422 = vld [vmem:[%s3930 + $0x44] sm:$0x1]
        %v4423 = vld [vmem:[%s3930 + $0x48] sm:$0xf]
        %v4424 = vld [vmem:[%s3930 + $0x4c] sm:$0xf]
        %v4425 = vld [vmem:[%s3930 + $0x50] sm:$0x1]
        %v4426 = vld [vmem:[%s3930 + $0x54] sm:$0xf]
        %v4427 = vld [vmem:[%s3930 + $0x58] sm:$0xf]
        %v4428 = vld [vmem:[%s3930 + $0x5c] sm:$0x1]
        %v4430 = vshrl.u32 %v4405, 16
        %v4432 = vrot.slane %v4430, 4
        %v4433 = vshll.u32 %v4405, 16
        %v4435 = vrot.slane %v4433, 5
        %v4436 = vor.u32 %v4432, %v4435
        %v4437 = vrot.slane %v4436, 4
        %v4439 = vshll.u32 %v4406, 16
        %v4441 = vrot.slane %v4439, 5
        %v4442 = vsel %vm752, %v4437, %v4441
        %v4443 = vshrl.u32 %v4406, 16
        %v4445 = vrot.slane %v4443, 4
        %v4446 = vor.u32 %v4445, %v4441
        %v4447 = vrot.slane %v4446, 4
        %v4449 = vshll.u32 %v4407, 16
        %v4451 = vrot.slane %v4449, 5
        %v4452 = vsel %vm752, %v4447, %v4451
        %v4454 = vshrl.u32 %v4408, 16
        %v4456 = vrot.slane %v4454, 4
        %v4457 = vshll.u32 %v4408, 16
        %v4459 = vrot.slane %v4457, 5
        %v4460 = vor.u32 %v4456, %v4459
        %v4461 = vrot.slane %v4460, 4
        %v4463 = vshll.u32 %v4409, 16
        %v4465 = vrot.slane %v4463, 5
        %v4466 = vsel %vm752, %v4461, %v4465
        %v4467 = vshrl.u32 %v4409, 16
        %v4469 = vrot.slane %v4467, 4
        %v4470 = vor.u32 %v4469, %v4465
        %v4471 = vrot.slane %v4470, 4
        %v4473 = vshll.u32 %v4410, 16
        %v4475 = vrot.slane %v4473, 5
        %v4476 = vsel %vm752, %v4471, %v4475
        %v4478 = vshrl.u32 %v4411, 16
        %v4480 = vrot.slane %v4478, 4
        %v4481 = vshll.u32 %v4411, 16
        %v4483 = vrot.slane %v4481, 5
        %v4484 = vor.u32 %v4480, %v4483
        %v4485 = vrot.slane %v4484, 4
        %v4487 = vshll.u32 %v4412, 16
        %v4489 = vrot.slane %v4487, 5
        %v4490 = vsel %vm752, %v4485, %v4489
        %v4491 = vshrl.u32 %v4412, 16
        %v4493 = vrot.slane %v4491, 4
        %v4494 = vor.u32 %v4493, %v4489
        %v4495 = vrot.slane %v4494, 4
        %v4497 = vshll.u32 %v4413, 16
        %v4499 = vrot.slane %v4497, 5
        %v4500 = vsel %vm752, %v4495, %v4499
        %v4502 = vshrl.u32 %v4414, 16
        %v4504 = vrot.slane %v4502, 4
        %v4505 = vshll.u32 %v4414, 16
        %v4507 = vrot.slane %v4505, 5
        %v4508 = vor.u32 %v4504, %v4507
        %v4509 = vrot.slane %v4508, 4
        %v4511 = vshll.u32 %v4415, 16
        %v4513 = vrot.slane %v4511, 5
        %v4514 = vsel %vm752, %v4509, %v4513
        %v4515 = vshrl.u32 %v4415, 16
        %v4517 = vrot.slane %v4515, 4
        %v4518 = vor.u32 %v4517, %v4513
        %v4519 = vrot.slane %v4518, 4
        %v4521 = vshll.u32 %v4416, 16
        %v4523 = vrot.slane %v4521, 5
        %v4524 = vsel %vm752, %v4519, %v4523
        %v4526 = vshrl.u32 %v4417, 16
        %v4528 = vrot.slane %v4526, 4
        %v4529 = vshll.u32 %v4417, 16
        %v4531 = vrot.slane %v4529, 5
        %v4532 = vor.u32 %v4528, %v4531
        %v4533 = vrot.slane %v4532, 4
        %v4535 = vshll.u32 %v4418, 16
        %v4537 = vrot.slane %v4535, 5
        %v4538 = vsel %vm752, %v4533, %v4537
        %v4539 = vshrl.u32 %v4418, 16
        %v4541 = vrot.slane %v4539, 4
        %v4542 = vor.u32 %v4541, %v4537
        %v4543 = vrot.slane %v4542, 4
        %v4545 = vshll.u32 %v4419, 16
        %v4547 = vrot.slane %v4545, 5
        %v4548 = vsel %vm752, %v4543, %v4547
        %v4550 = vshrl.u32 %v4420, 16
        %v4552 = vrot.slane %v4550, 4
        %v4553 = vshll.u32 %v4420, 16
        %v4555 = vrot.slane %v4553, 5
        %v4556 = vor.u32 %v4552, %v4555
        %v4557 = vrot.slane %v4556, 4
        %v4559 = vshll.u32 %v4421, 16
        %v4561 = vrot.slane %v4559, 5
        %v4562 = vsel %vm752, %v4557, %v4561
        %v4563 = vshrl.u32 %v4421, 16
        %v4565 = vrot.slane %v4563, 4
        %v4566 = vor.u32 %v4565, %v4561
        %v4567 = vrot.slane %v4566, 4
        %v4569 = vshll.u32 %v4422, 16
        %v4571 = vrot.slane %v4569, 5
        %v4572 = vsel %vm752, %v4567, %v4571
        %v4574 = vshrl.u32 %v4423, 16
        %v4576 = vrot.slane %v4574, 4
        %v4577 = vshll.u32 %v4423, 16
        %v4579 = vrot.slane %v4577, 5
        %v4580 = vor.u32 %v4576, %v4579
        %v4581 = vrot.slane %v4580, 4
        %v4583 = vshll.u32 %v4424, 16
        %v4585 = vrot.slane %v4583, 5
        %v4586 = vsel %vm752, %v4581, %v4585
        %v4587 = vshrl.u32 %v4424, 16
        %v4589 = vrot.slane %v4587, 4
        %v4590 = vor.u32 %v4589, %v4585
        %v4591 = vrot.slane %v4590, 4
        %v4593 = vshll.u32 %v4425, 16
        %v4595 = vrot.slane %v4593, 5
        %v4596 = vsel %vm752, %v4591, %v4595
        %v4598 = vshrl.u32 %v4426, 16
        %v4600 = vrot.slane %v4598, 4
        %v4601 = vshll.u32 %v4426, 16
        %v4603 = vrot.slane %v4601, 5
        %v4604 = vor.u32 %v4600, %v4603
        %v4605 = vrot.slane %v4604, 4
        %v4607 = vshll.u32 %v4427, 16
        %v4609 = vrot.slane %v4607, 5
        %v4610 = vsel %vm752, %v4605, %v4609
        %v4611 = vshrl.u32 %v4427, 16
        %v4613 = vrot.slane %v4611, 4
        %v4614 = vor.u32 %v4613, %v4609
        %v4615 = vrot.slane %v4614, 4
        %v4617 = vshll.u32 %v4428, 16
        %v4619 = vrot.slane %v4617, 5
        %v4620 = vsel %vm752, %v4615, %v4619
        %s4621 = scalar_lea.vmem %s1, 1008
        %v4622 = vld [vmem:[%s4621] sm:$0xf]
        %v4623 = vld [vmem:[%s4621 + $0x4] sm:$0xf]
        %v4624 = vld [vmem:[%s4621 + $0x8] sm:$0xf]
        %v4625 = vld [vmem:[%s4621 + $0xc] sm:$0xf]
        %v4626 = vld [vmem:[%s4621 + $0x10] sm:$0xf]
        %v4627 = vld [vmem:[%s4621 + $0x14] sm:$0xf]
        %v4628 = vld [vmem:[%s4621 + $0x18] sm:$0xf]
        %v4629 = vld [vmem:[%s4621 + $0x1c] sm:$0xf]
        %v4630 = vld [vmem:[%s4621 + $0x20] sm:$0xf]
        %v4631 = vld [vmem:[%s4621 + $0x24] sm:$0xf]
        %v4632 = vld [vmem:[%s4621 + $0x28] sm:$0xf]
        %v4633 = vld [vmem:[%s4621 + $0x2c] sm:$0xf]
        %v4634 = vld [vmem:[%s4621 + $0x30] sm:$0xf]
        %v4635 = vld [vmem:[%s4621 + $0x34] sm:$0xf]
        %v4636 = vld [vmem:[%s4621 + $0x38] sm:$0xf]
        %v4637 = vld [vmem:[%s4621 + $0x3c] sm:$0xf]
        %v4638 = vld [vmem:[%s4621 + $0x40] sm:$0xf]
        %v4639 = vld [vmem:[%s4621 + $0x44] sm:$0xf]
        %v4640 = vld [vmem:[%s4621 + $0x48] sm:$0xf]
        %v4641 = vld [vmem:[%s4621 + $0x4c] sm:$0xf]
        %v4642 = vld [vmem:[%s4621 + $0x50] sm:$0xf]
        %v4643 = vld [vmem:[%s4621 + $0x54] sm:$0xf]
        %v4644 = vld [vmem:[%s4621 + $0x58] sm:$0xf]
        %v4645 = vld [vmem:[%s4621 + $0x5c] sm:$0xf]
        %v4646 = vld [vmem:[%s4621 + $0x60] sm:$0xf]
        %v4647 = vld [vmem:[%s4621 + $0x64] sm:$0xf]
        %v4648 = vld [vmem:[%s4621 + $0x68] sm:$0xf]
        %v4649 = vld [vmem:[%s4621 + $0x6c] sm:$0xf]
        %v4650 = vld [vmem:[%s4621 + $0x70] sm:$0xf]
        %v4651 = vld [vmem:[%s4621 + $0x74] sm:$0xf]
        %v4652 = vld [vmem:[%s4621 + $0x78] sm:$0xf]
        %v4653 = vld [vmem:[%s4621 + $0x7c] sm:$0xf]
        %v4654 = vld [vmem:[%s4621 + $0x80] sm:$0xf]
        %v4655 = vld [vmem:[%s4621 + $0x84] sm:$0xf]
        %v4656 = vld [vmem:[%s4621 + $0x88] sm:$0xf]
        %v4657 = vld [vmem:[%s4621 + $0x8c] sm:$0xf]
        %v4694 = vunpack.c.l.b16 %v4622
        %v4695 = vunpack.c.l.b16 %v4623
        %v4696 = vunpack.c.l.b16 %v4624
        %v4697 = vunpack.c.l.b16 %v4625
        %v4698 = vunpack.c.l.b16 %v4626
        %v4699 = vunpack.c.l.b16 %v4627
        %v4700 = vunpack.c.l.b16 %v4628
        %v4701 = vunpack.c.l.b16 %v4629
        %v4702 = vunpack.c.l.b16 %v4630
        %v4703 = vunpack.c.l.b16 %v4631
        %v4704 = vunpack.c.l.b16 %v4632
        %v4705 = vunpack.c.l.b16 %v4633
        %v4706 = vunpack.c.l.b16 %v4634
        %v4707 = vunpack.c.l.b16 %v4635
        %v4708 = vunpack.c.l.b16 %v4636
        %v4709 = vunpack.c.l.b16 %v4637
        %v4710 = vunpack.c.l.b16 %v4638
        %v4711 = vunpack.c.l.b16 %v4639
        %v4712 = vunpack.c.l.b16 %v4640
        %v4713 = vunpack.c.l.b16 %v4641
        %v4714 = vunpack.c.l.b16 %v4642
        %v4715 = vunpack.c.l.b16 %v4643
        %v4716 = vunpack.c.l.b16 %v4644
        %v4717 = vunpack.c.l.b16 %v4645
        %v4718 = vunpack.c.l.b16 %v4646
        %v4719 = vunpack.c.l.b16 %v4647
        %v4720 = vunpack.c.l.b16 %v4648
        %v4721 = vunpack.c.l.b16 %v4649
        %v4722 = vunpack.c.l.b16 %v4650
        %v4723 = vunpack.c.l.b16 %v4651
        %v4724 = vunpack.c.l.b16 %v4652
        %v4725 = vunpack.c.l.b16 %v4653
        %v4726 = vunpack.c.l.b16 %v4654
        %v4727 = vunpack.c.l.b16 %v4655
        %v4728 = vunpack.c.l.b16 %v4656
        %v4729 = vunpack.c.l.b16 %v4657
        %v4730 = vpack.c.b16 %v4695, %v4694
        %v4731 = vpack.c.b16 %v4697, %v4696
        %v4732 = vpack.c.b16 %v4699, %v4698
        %v4733 = vpack.c.b16 %v4701, %v4700
        %v4734 = vpack.c.b16 %v4703, %v4702
        %v4735 = vpack.c.b16 %v4705, %v4704
        %v4736 = vpack.c.b16 %v4707, %v4706
        %v4737 = vpack.c.b16 %v4709, %v4708
        %v4738 = vpack.c.b16 %v4711, %v4710
        %v4739 = vpack.c.b16 %v4713, %v4712
        %v4740 = vpack.c.b16 %v4715, %v4714
        %v4741 = vpack.c.b16 %v4717, %v4716
        %v4742 = vpack.c.b16 %v4719, %v4718
        %v4743 = vpack.c.b16 %v4721, %v4720
        %v4744 = vpack.c.b16 %v4723, %v4722
        %v4745 = vpack.c.b16 %v4725, %v4724
        %v4746 = vpack.c.b16 %v4727, %v4726
        %v4747 = vpack.c.b16 %v4729, %v4728
        %v4748 = vunpack.c.l.b16 %v4442
        %v4749 = vunpack.c.l.b16 %v4452
        %v4750 = vunpack.c.l.b16 %v4466
        %v4751 = vunpack.c.l.b16 %v4476
        %v4752 = vunpack.c.l.b16 %v4490
        %v4753 = vunpack.c.l.b16 %v4500
        %v4754 = vunpack.c.l.b16 %v4514
        %v4755 = vunpack.c.l.b16 %v4524
        %v4756 = vunpack.c.l.b16 %v4538
        %v4757 = vunpack.c.l.b16 %v4548
        %v4758 = vunpack.c.l.b16 %v4562
        %v4759 = vunpack.c.l.b16 %v4572
        %v4760 = vunpack.c.l.b16 %v4586
        %v4761 = vunpack.c.l.b16 %v4596
        %v4762 = vunpack.c.l.b16 %v4610
        %v4763 = vunpack.c.l.b16 %v4620
        %v4764 = vpack.c.b16 %v4749, %v4748
        %v4765 = vpack.c.b16 %v4751, %v4750
        %v4766 = vpack.c.b16 %v4753, %v4752
        %v4767 = vpack.c.b16 %v4755, %v4754
        %v4768 = vpack.c.b16 %v4757, %v4756
        %v4769 = vpack.c.b16 %v4759, %v4758
        %v4770 = vpack.c.b16 %v4761, %v4760
        %v4771 = vpack.c.b16 %v4763, %v4762
        %v4773 = vsel %vm320, %v4730, 0
        %v4776 = vsel %vm320, %v4731, 0
        %v4779 = vsel %vm320, %v4732, 0
        %v4782 = vsel %vm320, %v4733, 0
        %v4785 = vsel %vm320, %v4734, 0
        %v4788 = vsel %vm320, %v4735, 0
        %v4791 = vsel %vm320, %v4736, 0
        %v4794 = vsel %vm320, %v4737, 0
        %v4797 = vsel %vm320, %v4738, 0
        %v4800 = vsel %vm320, %v4739, 0
        %v4803 = vsel %vm320, %v4740, 0
        %v4806 = vsel %vm320, %v4741, 0
        %v4809 = vsel %vm320, %v4742, 0
        %v4812 = vsel %vm320, %v4743, 0
        %v4815 = vsel %vm320, %v4744, 0
        %v4818 = vsel %vm320, %v4745, 0
        %v4821 = vsel %vm320, %v4746, 0
        %v4824 = vsel %vm320, %v4747, 0
        %v4827 = vsel %vm320, %v4764, 0
        %v4830 = vsel %vm320, %v4765, 0
        %v4833 = vsel %vm320, %v4766, 0
        %v4836 = vsel %vm320, %v4767, 0
        %v4839 = vsel %vm320, %v4768, 0
        %v4842 = vsel %vm320, %v4769, 0
        %v4845 = vsel %vm320, %v4770, 0
        %v4848 = vsel %vm320, %v4771, 0
        %4850 = vmatprep.subr.bf16.mxu0 0
        %4851 = vmatpush1.bf16.xpose.msra.mxu0 %v4827
        %4852 = vmatprep.subr.bf16.mxu0 0
        %4853 = vmatpush1.bf16.xpose.msra.mxu0 %v4830
        %4854 = vmatprep.subr.bf16.mxu0 0
        %4855 = vmatpush1.bf16.xpose.msra.mxu0 %v4833
        %4856 = vmatprep.subr.bf16.mxu0 0
        %4857 = vmatpush1.bf16.xpose.msra.mxu0 %v4836
        %4858 = vmatprep.subr.bf16.mxu0 0
        %4859 = vmatpush1.bf16.xpose.msra.mxu0 %v4839
        %4860 = vmatprep.subr.bf16.mxu0 0
        %4861 = vmatpush1.bf16.xpose.msra.mxu0 %v4842
        %4862 = vmatprep.subr.bf16.mxu0 0
        %4863 = vmatpush1.bf16.xpose.msra.mxu0 %v4845
        %4864 = vmatprep.subr.bf16.mxu0 0
        %4865 = vmatpush1.bf16.xpose.msra.mxu0 %v4848
        %4866 = vmatprep.subr.bf16.mxu0 0
        %4867 = vmatpush1.bf16.xpose.msra.mxu0 0
        %4868 = vmatprep.subr.bf16.mxu0 0
        %4869 = vmatpush1.bf16.xpose.msra.mxu0 0
        %4870 = vmatprep.subr.bf16.mxu0 0
        %4871 = vmatpush1.bf16.xpose.msra.mxu0 0
        %4872 = vmatprep.subr.bf16.mxu0 0
        %4873 = vmatpush1.bf16.xpose.msra.mxu0 0
        %4874 = vmatprep.subr.bf16.mxu0 0
        %4875 = vmatpush1.bf16.xpose.msra.mxu0 0
        %4876 = vmatprep.subr.bf16.mxu0 0
        %4877 = vmatpush1.bf16.xpose.msra.mxu0 0
        %4878 = vmatprep.subr.bf16.mxu0 0
        %4879 = vmatpush1.bf16.xpose.msra.mxu0 0
        %4880 = vmatprep.subr.bf16.mxu0 0
        %4881 = vmatpush1.bf16.xpose.msra.mxu0 0
        %4882 = vmatprep.mubr.bf16.mxu0 0
        %4883 = vmatmul.mubr.bf16.gmra.mrb[0].mxu0 %v4773
        %v4884 = vpop.f32.mrb[0].mxu0
        %v4885 = vadd.f32 0.0, %v4884
        %v4886 = vpop.f32.mrb[0].mxu0
        %v4887 = vpop.f32.mrb[0].mxu0
        %v4888 = vadd.f32 0.0, %v4887
        %v4889 = vpop.f32.mrb[0].mxu0
        %4890 = vmatprep.mubr.bf16.mxu0 0
        %4891 = vmatmul.mubr.bf16.gmra.mrb[0].mxu0 %v4776
        %v4892 = vpop.f32.mrb[0].mxu0
        %v4893 = vadd.f32 0.0, %v4892
        %v4894 = vpop.f32.mrb[0].mxu0
        %v4895 = vpop.f32.mrb[0].mxu0
        %v4896 = vadd.f32 0.0, %v4895
        %v4897 = vpop.f32.mrb[0].mxu0
        %4898 = vmatprep.mubr.bf16.mxu0 0
        %4899 = vmatmul.mubr.bf16.gmra.mrb[0].mxu0 %v4779
        %v4900 = vpop.f32.mrb[0].mxu0
        %v4901 = vadd.f32 0.0, %v4900
        %v4902 = vpop.f32.mrb[0].mxu0
        %v4903 = vpop.f32.mrb[0].mxu0
        %v4904 = vadd.f32 0.0, %v4903
        %v4905 = vpop.f32.mrb[0].mxu0
        %4906 = vmatprep.mubr.bf16.mxu0 0
        %4907 = vmatmul.mubr.bf16.gmra.mrb[0].mxu0 %v4782
        %v4908 = vpop.f32.mrb[0].mxu0
        %v4909 = vadd.f32 0.0, %v4908
        %v4910 = vpop.f32.mrb[0].mxu0
        %v4911 = vpop.f32.mrb[0].mxu0
        %v4912 = vadd.f32 0.0, %v4911
        %v4913 = vpop.f32.mrb[0].mxu0
        %4914 = vmatprep.mubr.bf16.mxu0 0
        %4915 = vmatmul.mubr.bf16.gmra.mrb[0].mxu0 %v4785
        %v4916 = vpop.f32.mrb[0].mxu0
        %v4917 = vadd.f32 0.0, %v4916
        %v4918 = vpop.f32.mrb[0].mxu0
        %v4919 = vpop.f32.mrb[0].mxu0
        %v4920 = vadd.f32 0.0, %v4919
        %v4921 = vpop.f32.mrb[0].mxu0
        %4922 = vmatprep.mubr.bf16.mxu0 0
        %4923 = vmatmul.mubr.bf16.gmra.mrb[0].mxu0 %v4788
        %v4924 = vpop.f32.mrb[0].mxu0
        %v4925 = vadd.f32 0.0, %v4924
        %v4926 = vpop.f32.mrb[0].mxu0
        %v4927 = vpop.f32.mrb[0].mxu0
        %v4928 = vadd.f32 0.0, %v4927
        %v4929 = vpop.f32.mrb[0].mxu0
        %4930 = vmatprep.mubr.bf16.mxu0 0
        %4931 = vmatmul.mubr.bf16.gmra.mrb[0].mxu0 %v4791
        %v4932 = vpop.f32.mrb[0].mxu0
        %v4933 = vadd.f32 0.0, %v4932
        %v4934 = vpop.f32.mrb[0].mxu0
        %v4935 = vpop.f32.mrb[0].mxu0
        %v4936 = vadd.f32 0.0, %v4935
        %v4937 = vpop.f32.mrb[0].mxu0
        %4938 = vmatprep.mubr.bf16.mxu0 0
        %4939 = vmatmul.mubr.bf16.gmra.mrb[0].mxu0 %v4794
        %v4940 = vpop.f32.mrb[0].mxu0
        %v4941 = vadd.f32 0.0, %v4940
        %v4942 = vpop.f32.mrb[0].mxu0
        %v4943 = vpop.f32.mrb[0].mxu0
        %v4944 = vadd.f32 0.0, %v4943
        %v4945 = vpop.f32.mrb[0].mxu0
        %4946 = vmatprep.mubr.bf16.mxu0 0
        %4947 = vmatmul.mubr.bf16.gmra.mrb[0].mxu0 %v4797
        %v4948 = vpop.f32.mrb[0].mxu0
        %v4949 = vadd.f32 0.0, %v4948
        %v4950 = vpop.f32.mrb[0].mxu0
        %v4951 = vpop.f32.mrb[0].mxu0
        %v4952 = vadd.f32 0.0, %v4951
        %v4953 = vpop.f32.mrb[0].mxu0
        %4954 = vmatprep.mubr.bf16.mxu0 0
        %4955 = vmatmul.mubr.bf16.gmra.mrb[0].mxu0 %v4800
        %v4956 = vpop.f32.mrb[0].mxu0
        %v4957 = vadd.f32 0.0, %v4956
        %v4958 = vpop.f32.mrb[0].mxu0
        %v4959 = vpop.f32.mrb[0].mxu0
        %v4960 = vadd.f32 0.0, %v4959
        %v4961 = vpop.f32.mrb[0].mxu0
        %4962 = vmatprep.mubr.bf16.mxu0 0
        %4963 = vmatmul.mubr.bf16.gmra.mrb[0].mxu0 %v4803
        %v4964 = vpop.f32.mrb[0].mxu0
        %v4965 = vadd.f32 0.0, %v4964
        %v4966 = vpop.f32.mrb[0].mxu0
        %v4967 = vpop.f32.mrb[0].mxu0
        %v4968 = vadd.f32 0.0, %v4967
        %v4969 = vpop.f32.mrb[0].mxu0
        %4970 = vmatprep.mubr.bf16.mxu0 0
        %4971 = vmatmul.mubr.bf16.gmra.mrb[0].mxu0 %v4806
        %v4972 = vpop.f32.mrb[0].mxu0
        %v4973 = vadd.f32 0.0, %v4972
        %v4974 = vpop.f32.mrb[0].mxu0
        %v4975 = vpop.f32.mrb[0].mxu0
        %v4976 = vadd.f32 0.0, %v4975
        %v4977 = vpop.f32.mrb[0].mxu0
        %4978 = vmatprep.mubr.bf16.mxu0 0
        %4979 = vmatmul.mubr.bf16.gmra.mrb[0].mxu0 %v4809
        %v4980 = vpop.f32.mrb[0].mxu0
        %v4981 = vadd.f32 0.0, %v4980
        %v4982 = vpop.f32.mrb[0].mxu0
        %v4983 = vpop.f32.mrb[0].mxu0
        %v4984 = vadd.f32 0.0, %v4983
        %v4985 = vpop.f32.mrb[0].mxu0
        %4986 = vmatprep.mubr.bf16.mxu0 0
        %4987 = vmatmul.mubr.bf16.gmra.mrb[0].mxu0 %v4812
        %v4988 = vpop.f32.mrb[0].mxu0
        %v4989 = vadd.f32 0.0, %v4988
        %v4990 = vpop.f32.mrb[0].mxu0
        %v4991 = vpop.f32.mrb[0].mxu0
        %v4992 = vadd.f32 0.0, %v4991
        %v4993 = vpop.f32.mrb[0].mxu0
        %4994 = vmatprep.mubr.bf16.mxu0 0
        %4995 = vmatmul.mubr.bf16.gmra.mrb[0].mxu0 %v4815
        %v4996 = vpop.f32.mrb[0].mxu0
        %v4997 = vadd.f32 0.0, %v4996
        %v4998 = vpop.f32.mrb[0].mxu0
        %v4999 = vpop.f32.mrb[0].mxu0
        %v5000 = vadd.f32 0.0, %v4999
        %v5001 = vpop.f32.mrb[0].mxu0
        %5002 = vmatprep.mubr.bf16.mxu0 0
        %5003 = vmatmul.mubr.bf16.gmra.mrb[0].mxu0 %v4818
        %v5004 = vpop.f32.mrb[0].mxu0
        %v5005 = vadd.f32 0.0, %v5004
        %v5006 = vpop.f32.mrb[0].mxu0
        %v5007 = vpop.f32.mrb[0].mxu0
        %v5008 = vadd.f32 0.0, %v5007
        %v5009 = vpop.f32.mrb[0].mxu0
        %5010 = vmatprep.mubr.bf16.mxu0 0
        %5011 = vmatmul.mubr.bf16.gmra.mrb[0].mxu0 %v4821
        %v5012 = vpop.f32.mrb[0].mxu0
        %v5013 = vadd.f32 0.0, %v5012
        %v5014 = vpop.f32.mrb[0].mxu0
        %v5015 = vpop.f32.mrb[0].mxu0
        %v5016 = vadd.f32 0.0, %v5015
        %v5017 = vpop.f32.mrb[0].mxu0
        %5018 = vmatprep.mubr.bf16.mxu0 0
        %5019 = vmatmul.mubr.bf16.gmra.mrb[0].mxu0 %v4824
        %v5020 = vpop.f32.mrb[0].mxu0
        %v5021 = vadd.f32 0.0, %v5020
        %v5022 = vpop.f32.mrb[0].mxu0
        %v5023 = vpop.f32.mrb[0].mxu0
        %v5024 = vadd.f32 0.0, %v5023
        %v5025 = vpop.f32.mrb[0].mxu0
        %5026 = vdwg.mxu0
        %v5027 = vadd.f32 %v4369, %v4885
        %v5028 = vadd.f32 %v4370, %v4888
        %v5029 = vadd.f32 %v4371, %v4893
        %v5030 = vadd.f32 %v4372, %v4896
        %v5031 = vadd.f32 %v4373, %v4901
        %v5032 = vadd.f32 %v4374, %v4904
        %v5033 = vadd.f32 %v4375, %v4909
        %v5034 = vadd.f32 %v4376, %v4912
        %v5035 = vadd.f32 %v4377, %v4917
        %v5036 = vadd.f32 %v4378, %v4920
        %v5037 = vadd.f32 %v4379, %v4925
        %v5038 = vadd.f32 %v4380, %v4928
        %v5039 = vadd.f32 %v4381, %v4933
        %v5040 = vadd.f32 %v4382, %v4936
        %v5041 = vadd.f32 %v4383, %v4941
        %v5042 = vadd.f32 %v4384, %v4944
        %v5043 = vadd.f32 %v4385, %v4949
        %v5044 = vadd.f32 %v4386, %v4952
        %v5045 = vadd.f32 %v4387, %v4957
        %v5046 = vadd.f32 %v4388, %v4960
        %v5047 = vadd.f32 %v4389, %v4965
        %v5048 = vadd.f32 %v4390, %v4968
        %v5049 = vadd.f32 %v4391, %v4973
        %v5050 = vadd.f32 %v4392, %v4976
        %v5051 = vadd.f32 %v4393, %v4981
        %v5052 = vadd.f32 %v4394, %v4984
        %v5053 = vadd.f32 %v4395, %v4989
        %v5054 = vadd.f32 %v4396, %v4992
        %v5055 = vadd.f32 %v4397, %v4997
        %v5056 = vadd.f32 %v4398, %v5000
        %v5057 = vadd.f32 %v4399, %v5005
        %v5058 = vadd.f32 %v4400, %v5008
        %v5059 = vadd.f32 %v4401, %v5013
        %v5060 = vadd.f32 %v4402, %v5016
        %v5061 = vadd.f32 %v4403, %v5021
        %v5062 = vadd.f32 %v4404, %v5024
        %v5063 = vld [vmem:[%s3930] sm:$0xe]
        %v5064 = vld [vmem:[%s3930 + $0xc] sm:$0xe]
        %v5065 = vld [vmem:[%s3930 + $0x18] sm:$0xe]
        %v5066 = vld [vmem:[%s3930 + $0x24] sm:$0xe]
        %v5067 = vld [vmem:[%s3930 + $0x30] sm:$0xe]
        %v5068 = vld [vmem:[%s3930 + $0x3c] sm:$0xe]
        %v5069 = vld [vmem:[%s3930 + $0x48] sm:$0xe]
        %v5070 = vld [vmem:[%s3930 + $0x54] sm:$0xe]
        %v5095 = vrot.slane %v5063, 5
        %v5096 = vrot.slane %v5095, 4
        %v5097 = vrot.slane %v4406, 5
        %v5098 = vsel %vm1762, %v5096, %v5097
        %v5099 = vrot.slane %v5097, 4
        %v5100 = vrot.slane %v4407, 5
        %v5101 = vsel %vm1762, %v5099, %v5100
        %v5102 = vrot.slane %v5064, 5
        %v5103 = vrot.slane %v5102, 4
        %v5104 = vrot.slane %v4409, 5
        %v5105 = vsel %vm1762, %v5103, %v5104
        %v5106 = vrot.slane %v5104, 4
        %v5107 = vrot.slane %v4410, 5
        %v5108 = vsel %vm1762, %v5106, %v5107
        %v5109 = vrot.slane %v5065, 5
        %v5110 = vrot.slane %v5109, 4
        %v5111 = vrot.slane %v4412, 5
        %v5112 = vsel %vm1762, %v5110, %v5111
        %v5113 = vrot.slane %v5111, 4
        %v5114 = vrot.slane %v4413, 5
        %v5115 = vsel %vm1762, %v5113, %v5114
        %v5116 = vrot.slane %v5066, 5
        %v5117 = vrot.slane %v5116, 4
        %v5118 = vrot.slane %v4415, 5
        %v5119 = vsel %vm1762, %v5117, %v5118
        %v5120 = vrot.slane %v5118, 4
        %v5121 = vrot.slane %v4416, 5
        %v5122 = vsel %vm1762, %v5120, %v5121
        %v5123 = vrot.slane %v5067, 5
        %v5124 = vrot.slane %v5123, 4
        %v5125 = vrot.slane %v4418, 5
        %v5126 = vsel %vm1762, %v5124, %v5125
        %v5127 = vrot.slane %v5125, 4
        %v5128 = vrot.slane %v4419, 5
        %v5129 = vsel %vm1762, %v5127, %v5128
        %v5130 = vrot.slane %v5068, 5
        %v5131 = vrot.slane %v5130, 4
        %v5132 = vrot.slane %v4421, 5
        %v5133 = vsel %vm1762, %v5131, %v5132
        %v5134 = vrot.slane %v5132, 4
        %v5135 = vrot.slane %v4422, 5
        %v5136 = vsel %vm1762, %v5134, %v5135
        %v5137 = vrot.slane %v5069, 5
        %v5138 = vrot.slane %v5137, 4
        %v5139 = vrot.slane %v4424, 5
        %v5140 = vsel %vm1762, %v5138, %v5139
        %v5141 = vrot.slane %v5139, 4
        %v5142 = vrot.slane %v4425, 5
        %v5143 = vsel %vm1762, %v5141, %v5142
        %v5144 = vrot.slane %v5070, 5
        %v5145 = vrot.slane %v5144, 4
        %v5146 = vrot.slane %v4427, 5
        %v5147 = vsel %vm1762, %v5145, %v5146
        %v5148 = vrot.slane %v5146, 4
        %v5149 = vrot.slane %v4428, 5
        %v5150 = vsel %vm1762, %v5148, %v5149
        %s5151 = scalar_lea.vmem %s1, 1152
        %v5152 = vld [vmem:[%s5151] sm:$0xf]
        %v5153 = vld [vmem:[%s5151 + $0x4] sm:$0xf]
        %v5154 = vld [vmem:[%s5151 + $0x8] sm:$0xf]
        %v5155 = vld [vmem:[%s5151 + $0xc] sm:$0xf]
        %v5156 = vld [vmem:[%s5151 + $0x10] sm:$0xf]
        %v5157 = vld [vmem:[%s5151 + $0x14] sm:$0xf]
        %v5158 = vld [vmem:[%s5151 + $0x18] sm:$0xf]
        %v5159 = vld [vmem:[%s5151 + $0x1c] sm:$0xf]
        %v5160 = vld [vmem:[%s5151 + $0x20] sm:$0xf]
        %v5161 = vld [vmem:[%s5151 + $0x24] sm:$0xf]
        %v5162 = vld [vmem:[%s5151 + $0x28] sm:$0xf]
        %v5163 = vld [vmem:[%s5151 + $0x2c] sm:$0xf]
        %v5164 = vld [vmem:[%s5151 + $0x30] sm:$0xf]
        %v5165 = vld [vmem:[%s5151 + $0x34] sm:$0xf]
        %v5166 = vld [vmem:[%s5151 + $0x38] sm:$0xf]
        %v5167 = vld [vmem:[%s5151 + $0x3c] sm:$0xf]
        %v5168 = vld [vmem:[%s5151 + $0x40] sm:$0xf]
        %v5169 = vld [vmem:[%s5151 + $0x44] sm:$0xf]
        %v5170 = vld [vmem:[%s5151 + $0x48] sm:$0xf]
        %v5171 = vld [vmem:[%s5151 + $0x4c] sm:$0xf]
        %v5172 = vld [vmem:[%s5151 + $0x50] sm:$0xf]
        %v5173 = vld [vmem:[%s5151 + $0x54] sm:$0xf]
        %v5174 = vld [vmem:[%s5151 + $0x58] sm:$0xf]
        %v5175 = vld [vmem:[%s5151 + $0x5c] sm:$0xf]
        %v5176 = vld [vmem:[%s5151 + $0x60] sm:$0xf]
        %v5177 = vld [vmem:[%s5151 + $0x64] sm:$0xf]
        %v5178 = vld [vmem:[%s5151 + $0x68] sm:$0xf]
        %v5179 = vld [vmem:[%s5151 + $0x6c] sm:$0xf]
        %v5180 = vld [vmem:[%s5151 + $0x70] sm:$0xf]
        %v5181 = vld [vmem:[%s5151 + $0x74] sm:$0xf]
        %v5182 = vld [vmem:[%s5151 + $0x78] sm:$0xf]
        %v5183 = vld [vmem:[%s5151 + $0x7c] sm:$0xf]
        %v5184 = vld [vmem:[%s5151 + $0x80] sm:$0xf]
        %v5185 = vld [vmem:[%s5151 + $0x84] sm:$0xf]
        %v5186 = vld [vmem:[%s5151 + $0x88] sm:$0xf]
        %v5187 = vld [vmem:[%s5151 + $0x8c] sm:$0xf]
        %v5224 = vunpack.c.l.b16 %v5152
        %v5225 = vunpack.c.l.b16 %v5153
        %v5226 = vunpack.c.l.b16 %v5154
        %v5227 = vunpack.c.l.b16 %v5155
        %v5228 = vunpack.c.l.b16 %v5156
        %v5229 = vunpack.c.l.b16 %v5157
        %v5230 = vunpack.c.l.b16 %v5158
        %v5231 = vunpack.c.l.b16 %v5159
        %v5232 = vunpack.c.l.b16 %v5160
        %v5233 = vunpack.c.l.b16 %v5161
        %v5234 = vunpack.c.l.b16 %v5162
        %v5235 = vunpack.c.l.b16 %v5163
        %v5236 = vunpack.c.l.b16 %v5164
        %v5237 = vunpack.c.l.b16 %v5165
        %v5238 = vunpack.c.l.b16 %v5166
        %v5239 = vunpack.c.l.b16 %v5167
        %v5240 = vunpack.c.l.b16 %v5168
        %v5241 = vunpack.c.l.b16 %v5169
        %v5242 = vunpack.c.l.b16 %v5170
        %v5243 = vunpack.c.l.b16 %v5171
        %v5244 = vunpack.c.l.b16 %v5172
        %v5245 = vunpack.c.l.b16 %v5173
        %v5246 = vunpack.c.l.b16 %v5174
        %v5247 = vunpack.c.l.b16 %v5175
        %v5248 = vunpack.c.l.b16 %v5176
        %v5249 = vunpack.c.l.b16 %v5177
        %v5250 = vunpack.c.l.b16 %v5178
        %v5251 = vunpack.c.l.b16 %v5179
        %v5252 = vunpack.c.l.b16 %v5180
        %v5253 = vunpack.c.l.b16 %v5181
        %v5254 = vunpack.c.l.b16 %v5182
        %v5255 = vunpack.c.l.b16 %v5183
        %v5256 = vunpack.c.l.b16 %v5184
        %v5257 = vunpack.c.l.b16 %v5185
        %v5258 = vunpack.c.l.b16 %v5186
        %v5259 = vunpack.c.l.b16 %v5187
        %v5260 = vpack.c.b16 %v5225, %v5224
        %v5261 = vpack.c.b16 %v5227, %v5226
        %v5262 = vpack.c.b16 %v5229, %v5228
        %v5263 = vpack.c.b16 %v5231, %v5230
        %v5264 = vpack.c.b16 %v5233, %v5232
        %v5265 = vpack.c.b16 %v5235, %v5234
        %v5266 = vpack.c.b16 %v5237, %v5236
        %v5267 = vpack.c.b16 %v5239, %v5238
        %v5268 = vpack.c.b16 %v5241, %v5240
        %v5269 = vpack.c.b16 %v5243, %v5242
        %v5270 = vpack.c.b16 %v5245, %v5244
        %v5271 = vpack.c.b16 %v5247, %v5246
        %v5272 = vpack.c.b16 %v5249, %v5248
        %v5273 = vpack.c.b16 %v5251, %v5250
        %v5274 = vpack.c.b16 %v5253, %v5252
        %v5275 = vpack.c.b16 %v5255, %v5254
        %v5276 = vpack.c.b16 %v5257, %v5256
        %v5277 = vpack.c.b16 %v5259, %v5258
        %v5278 = vunpack.c.l.b16 %v5098
        %v5279 = vunpack.c.l.b16 %v5101
        %v5280 = vunpack.c.l.b16 %v5105
        %v5281 = vunpack.c.l.b16 %v5108
        %v5282 = vunpack.c.l.b16 %v5112
        %v5283 = vunpack.c.l.b16 %v5115
        %v5284 = vunpack.c.l.b16 %v5119
        %v5285 = vunpack.c.l.b16 %v5122
        %v5286 = vunpack.c.l.b16 %v5126
        %v5287 = vunpack.c.l.b16 %v5129
        %v5288 = vunpack.c.l.b16 %v5133
        %v5289 = vunpack.c.l.b16 %v5136
        %v5290 = vunpack.c.l.b16 %v5140
        %v5291 = vunpack.c.l.b16 %v5143
        %v5292 = vunpack.c.l.b16 %v5147
        %v5293 = vunpack.c.l.b16 %v5150
        %v5294 = vpack.c.b16 %v5279, %v5278
        %v5295 = vpack.c.b16 %v5281, %v5280
        %v5296 = vpack.c.b16 %v5283, %v5282
        %v5297 = vpack.c.b16 %v5285, %v5284
        %v5298 = vpack.c.b16 %v5287, %v5286
        %v5299 = vpack.c.b16 %v5289, %v5288
        %v5300 = vpack.c.b16 %v5291, %v5290
        %v5301 = vpack.c.b16 %v5293, %v5292
        %v5303 = vsel %vm320, %v5260, 0
        %v5306 = vsel %vm320, %v5261, 0
        %v5309 = vsel %vm320, %v5262, 0
        %v5312 = vsel %vm320, %v5263, 0
        %v5315 = vsel %vm320, %v5264, 0
        %v5318 = vsel %vm320, %v5265, 0
        %v5321 = vsel %vm320, %v5266, 0
        %v5324 = vsel %vm320, %v5267, 0
        %v5327 = vsel %vm320, %v5268, 0
        %v5330 = vsel %vm320, %v5269, 0
        %v5333 = vsel %vm320, %v5270, 0
        %v5336 = vsel %vm320, %v5271, 0
        %v5339 = vsel %vm320, %v5272, 0
        %v5342 = vsel %vm320, %v5273, 0
        %v5345 = vsel %vm320, %v5274, 0
        %v5348 = vsel %vm320, %v5275, 0
        %v5351 = vsel %vm320, %v5276, 0
        %v5354 = vsel %vm320, %v5277, 0
        %v5357 = vsel %vm320, %v5294, 0
        %v5360 = vsel %vm320, %v5295, 0
        %v5363 = vsel %vm320, %v5296, 0
        %v5366 = vsel %vm320, %v5297, 0
        %v5369 = vsel %vm320, %v5298, 0
        %v5372 = vsel %vm320, %v5299, 0
        %v5375 = vsel %vm320, %v5300, 0
        %v5378 = vsel %vm320, %v5301, 0
        %5380 = vmatprep.subr.bf16.mxu0 0
        %5381 = vmatpush1.bf16.xpose.msra.mxu0 %v5357
        %5382 = vmatprep.subr.bf16.mxu0 0
        %5383 = vmatpush1.bf16.xpose.msra.mxu0 %v5360
        %5384 = vmatprep.subr.bf16.mxu0 0
        %5385 = vmatpush1.bf16.xpose.msra.mxu0 %v5363
        %5386 = vmatprep.subr.bf16.mxu0 0
        %5387 = vmatpush1.bf16.xpose.msra.mxu0 %v5366
        %5388 = vmatprep.subr.bf16.mxu0 0
        %5389 = vmatpush1.bf16.xpose.msra.mxu0 %v5369
        %5390 = vmatprep.subr.bf16.mxu0 0
        %5391 = vmatpush1.bf16.xpose.msra.mxu0 %v5372
        %5392 = vmatprep.subr.bf16.mxu0 0
        %5393 = vmatpush1.bf16.xpose.msra.mxu0 %v5375
        %5394 = vmatprep.subr.bf16.mxu0 0
        %5395 = vmatpush1.bf16.xpose.msra.mxu0 %v5378
        %5396 = vmatprep.subr.bf16.mxu0 0
        %5397 = vmatpush1.bf16.xpose.msra.mxu0 0
        %5398 = vmatprep.subr.bf16.mxu0 0
        %5399 = vmatpush1.bf16.xpose.msra.mxu0 0
        %5400 = vmatprep.subr.bf16.mxu0 0
        %5401 = vmatpush1.bf16.xpose.msra.mxu0 0
        %5402 = vmatprep.subr.bf16.mxu0 0
        %5403 = vmatpush1.bf16.xpose.msra.mxu0 0
        %5404 = vmatprep.subr.bf16.mxu0 0
        %5405 = vmatpush1.bf16.xpose.msra.mxu0 0
        %5406 = vmatprep.subr.bf16.mxu0 0
        %5407 = vmatpush1.bf16.xpose.msra.mxu0 0
        %5408 = vmatprep.subr.bf16.mxu0 0
        %5409 = vmatpush1.bf16.xpose.msra.mxu0 0
        %5410 = vmatprep.subr.bf16.mxu0 0
        %5411 = vmatpush1.bf16.xpose.msra.mxu0 0
        %5412 = vmatprep.mubr.bf16.mxu0 0
        %5413 = vmatmul.mubr.bf16.gmra.mrb[0].mxu0 %v5303
        %v5414 = vpop.f32.mrb[0].mxu0
        %v5415 = vadd.f32 0.0, %v5414
        %v5416 = vpop.f32.mrb[0].mxu0
        %v5417 = vpop.f32.mrb[0].mxu0
        %v5418 = vadd.f32 0.0, %v5417
        %v5419 = vpop.f32.mrb[0].mxu0
        %5420 = vmatprep.mubr.bf16.mxu0 0
        %5421 = vmatmul.mubr.bf16.gmra.mrb[0].mxu0 %v5306
        %v5422 = vpop.f32.mrb[0].mxu0
        %v5423 = vadd.f32 0.0, %v5422
        %v5424 = vpop.f32.mrb[0].mxu0
        %v5425 = vpop.f32.mrb[0].mxu0
        %v5426 = vadd.f32 0.0, %v5425
        %v5427 = vpop.f32.mrb[0].mxu0
        %5428 = vmatprep.mubr.bf16.mxu0 0
        %5429 = vmatmul.mubr.bf16.gmra.mrb[0].mxu0 %v5309
        %v5430 = vpop.f32.mrb[0].mxu0
        %v5431 = vadd.f32 0.0, %v5430
        %v5432 = vpop.f32.mrb[0].mxu0
        %v5433 = vpop.f32.mrb[0].mxu0
        %v5434 = vadd.f32 0.0, %v5433
        %v5435 = vpop.f32.mrb[0].mxu0
        %5436 = vmatprep.mubr.bf16.mxu0 0
        %5437 = vmatmul.mubr.bf16.gmra.mrb[0].mxu0 %v5312
        %v5438 = vpop.f32.mrb[0].mxu0
        %v5439 = vadd.f32 0.0, %v5438
        %v5440 = vpop.f32.mrb[0].mxu0
        %v5441 = vpop.f32.mrb[0].mxu0
        %v5442 = vadd.f32 0.0, %v5441
        %v5443 = vpop.f32.mrb[0].mxu0
        %5444 = vmatprep.mubr.bf16.mxu0 0
        %5445 = vmatmul.mubr.bf16.gmra.mrb[0].mxu0 %v5315
        %v5446 = vpop.f32.mrb[0].mxu0
        %v5447 = vadd.f32 0.0, %v5446
        %v5448 = vpop.f32.mrb[0].mxu0
        %v5449 = vpop.f32.mrb[0].mxu0
        %v5450 = vadd.f32 0.0, %v5449
        %v5451 = vpop.f32.mrb[0].mxu0
        %5452 = vmatprep.mubr.bf16.mxu0 0
        %5453 = vmatmul.mubr.bf16.gmra.mrb[0].mxu0 %v5318
        %v5454 = vpop.f32.mrb[0].mxu0
        %v5455 = vadd.f32 0.0, %v5454
        %v5456 = vpop.f32.mrb[0].mxu0
        %v5457 = vpop.f32.mrb[0].mxu0
        %v5458 = vadd.f32 0.0, %v5457
        %v5459 = vpop.f32.mrb[0].mxu0
        %5460 = vmatprep.mubr.bf16.mxu0 0
        %5461 = vmatmul.mubr.bf16.gmra.mrb[0].mxu0 %v5321
        %v5462 = vpop.f32.mrb[0].mxu0
        %v5463 = vadd.f32 0.0, %v5462
        %v5464 = vpop.f32.mrb[0].mxu0
        %v5465 = vpop.f32.mrb[0].mxu0
        %v5466 = vadd.f32 0.0, %v5465
        %v5467 = vpop.f32.mrb[0].mxu0
        %5468 = vmatprep.mubr.bf16.mxu0 0
        %5469 = vmatmul.mubr.bf16.gmra.mrb[0].mxu0 %v5324
        %v5470 = vpop.f32.mrb[0].mxu0
        %v5471 = vadd.f32 0.0, %v5470
        %v5472 = vpop.f32.mrb[0].mxu0
        %v5473 = vpop.f32.mrb[0].mxu0
        %v5474 = vadd.f32 0.0, %v5473
        %v5475 = vpop.f32.mrb[0].mxu0
        %5476 = vmatprep.mubr.bf16.mxu0 0
        %5477 = vmatmul.mubr.bf16.gmra.mrb[0].mxu0 %v5327
        %v5478 = vpop.f32.mrb[0].mxu0
        %v5479 = vadd.f32 0.0, %v5478
        %v5480 = vpop.f32.mrb[0].mxu0
        %v5481 = vpop.f32.mrb[0].mxu0
        %v5482 = vadd.f32 0.0, %v5481
        %v5483 = vpop.f32.mrb[0].mxu0
        %5484 = vmatprep.mubr.bf16.mxu0 0
        %5485 = vmatmul.mubr.bf16.gmra.mrb[0].mxu0 %v5330
        %v5486 = vpop.f32.mrb[0].mxu0
        %v5487 = vadd.f32 0.0, %v5486
        %v5488 = vpop.f32.mrb[0].mxu0
        %v5489 = vpop.f32.mrb[0].mxu0
        %v5490 = vadd.f32 0.0, %v5489
        %v5491 = vpop.f32.mrb[0].mxu0
        %5492 = vmatprep.mubr.bf16.mxu0 0
        %5493 = vmatmul.mubr.bf16.gmra.mrb[0].mxu0 %v5333
        %v5494 = vpop.f32.mrb[0].mxu0
        %v5495 = vadd.f32 0.0, %v5494
        %v5496 = vpop.f32.mrb[0].mxu0
        %v5497 = vpop.f32.mrb[0].mxu0
        %v5498 = vadd.f32 0.0, %v5497
        %v5499 = vpop.f32.mrb[0].mxu0
        %5500 = vmatprep.mubr.bf16.mxu0 0
        %5501 = vmatmul.mubr.bf16.gmra.mrb[0].mxu0 %v5336
        %v5502 = vpop.f32.mrb[0].mxu0
        %v5503 = vadd.f32 0.0, %v5502
        %v5504 = vpop.f32.mrb[0].mxu0
        %v5505 = vpop.f32.mrb[0].mxu0
        %v5506 = vadd.f32 0.0, %v5505
        %v5507 = vpop.f32.mrb[0].mxu0
        %5508 = vmatprep.mubr.bf16.mxu0 0
        %5509 = vmatmul.mubr.bf16.gmra.mrb[0].mxu0 %v5339
        %v5510 = vpop.f32.mrb[0].mxu0
        %v5511 = vadd.f32 0.0, %v5510
        %v5512 = vpop.f32.mrb[0].mxu0
        %v5513 = vpop.f32.mrb[0].mxu0
        %v5514 = vadd.f32 0.0, %v5513
        %v5515 = vpop.f32.mrb[0].mxu0
        %5516 = vmatprep.mubr.bf16.mxu0 0
        %5517 = vmatmul.mubr.bf16.gmra.mrb[0].mxu0 %v5342
        %v5518 = vpop.f32.mrb[0].mxu0
        %v5519 = vadd.f32 0.0, %v5518
        %v5520 = vpop.f32.mrb[0].mxu0
        %v5521 = vpop.f32.mrb[0].mxu0
        %v5522 = vadd.f32 0.0, %v5521
        %v5523 = vpop.f32.mrb[0].mxu0
        %5524 = vmatprep.mubr.bf16.mxu0 0
        %5525 = vmatmul.mubr.bf16.gmra.mrb[0].mxu0 %v5345
        %v5526 = vpop.f32.mrb[0].mxu0
        %v5527 = vadd.f32 0.0, %v5526
        %v5528 = vpop.f32.mrb[0].mxu0
        %v5529 = vpop.f32.mrb[0].mxu0
        %v5530 = vadd.f32 0.0, %v5529
        %v5531 = vpop.f32.mrb[0].mxu0
        %5532 = vmatprep.mubr.bf16.mxu0 0
        %5533 = vmatmul.mubr.bf16.gmra.mrb[0].mxu0 %v5348
        %v5534 = vpop.f32.mrb[0].mxu0
        %v5535 = vadd.f32 0.0, %v5534
        %v5536 = vpop.f32.mrb[0].mxu0
        %v5537 = vpop.f32.mrb[0].mxu0
        %v5538 = vadd.f32 0.0, %v5537
        %v5539 = vpop.f32.mrb[0].mxu0
        %5540 = vmatprep.mubr.bf16.mxu0 0
        %5541 = vmatmul.mubr.bf16.gmra.mrb[0].mxu0 %v5351
        %v5542 = vpop.f32.mrb[0].mxu0
        %v5543 = vadd.f32 0.0, %v5542
        %v5544 = vpop.f32.mrb[0].mxu0
        %v5545 = vpop.f32.mrb[0].mxu0
        %v5546 = vadd.f32 0.0, %v5545
        %v5547 = vpop.f32.mrb[0].mxu0
        %5548 = vmatprep.mubr.bf16.mxu0 0
        %5549 = vmatmul.mubr.bf16.gmra.mrb[0].mxu0 %v5354
        %v5550 = vpop.f32.mrb[0].mxu0
        %v5551 = vadd.f32 0.0, %v5550
        %v5552 = vpop.f32.mrb[0].mxu0
        %v5553 = vpop.f32.mrb[0].mxu0
        %v5554 = vadd.f32 0.0, %v5553
        %v5555 = vpop.f32.mrb[0].mxu0
        %5556 = vdwg.mxu0
        %v5557 = vadd.f32 %v5027, %v5415
        %v5558 = vadd.f32 %v5028, %v5418
        %v5559 = vadd.f32 %v5029, %v5423
        %v5560 = vadd.f32 %v5030, %v5426
        %v5561 = vadd.f32 %v5031, %v5431
        %v5562 = vadd.f32 %v5032, %v5434
        %v5563 = vadd.f32 %v5033, %v5439
        %v5564 = vadd.f32 %v5034, %v5442
        %v5565 = vadd.f32 %v5035, %v5447
        %v5566 = vadd.f32 %v5036, %v5450
        %v5567 = vadd.f32 %v5037, %v5455
        %v5568 = vadd.f32 %v5038, %v5458
        %v5569 = vadd.f32 %v5039, %v5463
        %v5570 = vadd.f32 %v5040, %v5466
        %v5571 = vadd.f32 %v5041, %v5471
        %v5572 = vadd.f32 %v5042, %v5474
        %v5573 = vadd.f32 %v5043, %v5479
        %v5574 = vadd.f32 %v5044, %v5482
        %v5575 = vadd.f32 %v5045, %v5487
        %v5576 = vadd.f32 %v5046, %v5490
        %v5577 = vadd.f32 %v5047, %v5495
        %v5578 = vadd.f32 %v5048, %v5498
        %v5579 = vadd.f32 %v5049, %v5503
        %v5580 = vadd.f32 %v5050, %v5506
        %v5581 = vadd.f32 %v5051, %v5511
        %v5582 = vadd.f32 %v5052, %v5514
        %v5583 = vadd.f32 %v5053, %v5519
        %v5584 = vadd.f32 %v5054, %v5522
        %v5585 = vadd.f32 %v5055, %v5527
        %v5586 = vadd.f32 %v5056, %v5530
        %v5587 = vadd.f32 %v5057, %v5535
        %v5588 = vadd.f32 %v5058, %v5538
        %v5589 = vadd.f32 %v5059, %v5543
        %v5590 = vadd.f32 %v5060, %v5546
        %v5591 = vadd.f32 %v5061, %v5551
        %v5592 = vadd.f32 %v5062, %v5554
        %5594 = vset.pattern.permute.xlu0 0
        %5595 = vperm.xlu0 %5594, %v651
        %v5596 = vpop.permute.xlu0 %5595
        %5599 = vset.pattern.permute.xlu0 0
        %5600 = vperm.xlu0 %5599, %v652
        %v5601 = vpop.permute.xlu0 %5600
        %5604 = vset.pattern.permute.xlu0 0
        %5605 = vperm.xlu0 %5604, %v653
        %v5606 = vpop.permute.xlu0 %5605
        %5609 = vset.pattern.permute.xlu0 0
        %5610 = vperm.xlu0 %5609, %v654
        %v5611 = vpop.permute.xlu0 %5610
        %5614 = vset.pattern.permute.xlu0 0
        %5615 = vperm.xlu0 %5614, %v655
        %v5616 = vpop.permute.xlu0 %5615
        %5619 = vset.pattern.permute.xlu0 0
        %5620 = vperm.xlu0 %5619, %v656
        %v5621 = vpop.permute.xlu0 %5620
        %5624 = vset.pattern.permute.xlu0 0
        %5625 = vperm.xlu0 %5624, %v657
        %v5626 = vpop.permute.xlu0 %5625
        %5629 = vset.pattern.permute.xlu0 0
        %5630 = vperm.xlu0 %5629, %v658
        %v5631 = vpop.permute.xlu0 %5630
        %5634 = vset.pattern.permute.xlu0 0
        %5635 = vperm.xlu0 %5634, %v659
        %v5636 = vpop.permute.xlu0 %5635
        %5639 = vset.pattern.permute.xlu0 0
        %5640 = vperm.xlu0 %5639, %v660
        %v5641 = vpop.permute.xlu0 %5640
        %5644 = vset.pattern.permute.xlu0 0
        %5645 = vperm.xlu0 %5644, %v661
        %v5646 = vpop.permute.xlu0 %5645
        %5649 = vset.pattern.permute.xlu0 0
        %5650 = vperm.xlu0 %5649, %v662
        %v5651 = vpop.permute.xlu0 %5650
        %5654 = vset.pattern.permute.xlu0 0
        %5655 = vperm.xlu0 %5654, %v663
        %v5656 = vpop.permute.xlu0 %5655
        %5659 = vset.pattern.permute.xlu0 0
        %5660 = vperm.xlu0 %5659, %v664
        %v5661 = vpop.permute.xlu0 %5660
        %5664 = vset.pattern.permute.xlu0 0
        %5665 = vperm.xlu0 %5664, %v665
        %v5666 = vpop.permute.xlu0 %5665
        %5669 = vset.pattern.permute.xlu0 0
        %5670 = vperm.xlu0 %5669, %v666
        %v5671 = vpop.permute.xlu0 %5670
        %5674 = vset.pattern.permute.xlu0 0
        %5675 = vperm.xlu0 %5674, %v667
        %v5676 = vpop.permute.xlu0 %5675
        %5679 = vset.pattern.permute.xlu0 0
        %5680 = vperm.xlu0 %5679, %v668
        %v5681 = vpop.permute.xlu0 %5680
        %5684 = vset.pattern.permute.xlu0 0
        %5685 = vperm.xlu0 %5684, %v669
        %v5686 = vpop.permute.xlu0 %5685
        %5689 = vset.pattern.permute.xlu0 0
        %5690 = vperm.xlu0 %5689, %v670
        %v5691 = vpop.permute.xlu0 %5690
        %5694 = vset.pattern.permute.xlu0 0
        %5695 = vperm.xlu0 %5694, %v671
        %v5696 = vpop.permute.xlu0 %5695
        %5699 = vset.pattern.permute.xlu0 0
        %5700 = vperm.xlu0 %5699, %v672
        %v5701 = vpop.permute.xlu0 %5700
        %5704 = vset.pattern.permute.xlu0 0
        %5705 = vperm.xlu0 %5704, %v673
        %v5706 = vpop.permute.xlu0 %5705
        %5709 = vset.pattern.permute.xlu0 0
        %5710 = vperm.xlu0 %5709, %v674
        %v5711 = vpop.permute.xlu0 %5710
        %5714 = vset.pattern.permute.xlu0 0
        %5715 = vperm.xlu0 %5714, %v675
        %v5716 = vpop.permute.xlu0 %5715
        %5719 = vset.pattern.permute.xlu0 0
        %5720 = vperm.xlu0 %5719, %v676
        %v5721 = vpop.permute.xlu0 %5720
        %5724 = vset.pattern.permute.xlu0 0
        %5725 = vperm.xlu0 %5724, %v677
        %v5726 = vpop.permute.xlu0 %5725
        %5729 = vset.pattern.permute.xlu0 0
        %5730 = vperm.xlu0 %5729, %v678
        %v5731 = vpop.permute.xlu0 %5730
        %5734 = vset.pattern.permute.xlu0 0
        %5735 = vperm.xlu0 %5734, %v679
        %v5736 = vpop.permute.xlu0 %5735
        %5739 = vset.pattern.permute.xlu0 0
        %5740 = vperm.xlu0 %5739, %v680
        %v5741 = vpop.permute.xlu0 %5740
        %5744 = vset.pattern.permute.xlu0 0
        %5745 = vperm.xlu0 %5744, %v681
        %v5746 = vpop.permute.xlu0 %5745
        %5749 = vset.pattern.permute.xlu0 0
        %5750 = vperm.xlu0 %5749, %v682
        %v5751 = vpop.permute.xlu0 %5750
        %5754 = vset.pattern.permute.xlu0 0
        %5755 = vperm.xlu0 %5754, %v683
        %v5756 = vpop.permute.xlu0 %5755
        %5759 = vset.pattern.permute.xlu0 0
        %5760 = vperm.xlu0 %5759, %v684
        %v5761 = vpop.permute.xlu0 %5760
        %5764 = vset.pattern.permute.xlu0 0
        %5765 = vperm.xlu0 %5764, %v685
        %v5766 = vpop.permute.xlu0 %5765
        %5769 = vset.pattern.permute.xlu0 0
        %5770 = vperm.xlu0 %5769, %v686
        %v5771 = vpop.permute.xlu0 %5770
        %v5773 = vadd.f32 %v5557, %v5596
        %v5774 = vadd.f32 %v5558, %v5601
        %v5775 = vadd.f32 %v5559, %v5606
        %v5776 = vadd.f32 %v5560, %v5611
        %v5777 = vadd.f32 %v5561, %v5616
        %v5778 = vadd.f32 %v5562, %v5621
        %v5779 = vadd.f32 %v5563, %v5626
        %v5780 = vadd.f32 %v5564, %v5631
        %v5781 = vadd.f32 %v5565, %v5636
        %v5782 = vadd.f32 %v5566, %v5641
        %v5783 = vadd.f32 %v5567, %v5646
        %v5784 = vadd.f32 %v5568, %v5651
        %v5785 = vadd.f32 %v5569, %v5656
        %v5786 = vadd.f32 %v5570, %v5661
        %v5787 = vadd.f32 %v5571, %v5666
        %v5788 = vadd.f32 %v5572, %v5671
        %v5789 = vadd.f32 %v5573, %v5676
        %v5790 = vadd.f32 %v5574, %v5681
        %v5791 = vadd.f32 %v5575, %v5686
        %v5792 = vadd.f32 %v5576, %v5691
        %v5793 = vadd.f32 %v5577, %v5696
        %v5794 = vadd.f32 %v5578, %v5701
        %v5795 = vadd.f32 %v5579, %v5706
        %v5796 = vadd.f32 %v5580, %v5711
        %v5797 = vadd.f32 %v5581, %v5716
        %v5798 = vadd.f32 %v5582, %v5721
        %v5799 = vadd.f32 %v5583, %v5726
        %v5800 = vadd.f32 %v5584, %v5731
        %v5801 = vadd.f32 %v5585, %v5736
        %v5802 = vadd.f32 %v5586, %v5741
        %v5803 = vadd.f32 %v5587, %v5746
        %v5804 = vadd.f32 %v5588, %v5751
        %v5805 = vadd.f32 %v5589, %v5756
        %v5806 = vadd.f32 %v5590, %v5761
        %v5807 = vadd.f32 %v5591, %v5766
        %v5808 = vadd.f32 %v5592, %v5771
        %5809 = vst [vmem:[%s204] sm:$0xff] %v5773
        %5810 = vst [vmem:[%s204 + $0x8] sm:$0xff] %v5774
        %5811 = vst [vmem:[%s204 + $0x10] sm:$0xff] %v5775
        %5812 = vst [vmem:[%s204 + $0x18] sm:$0xff] %v5776
        %5813 = vst [vmem:[%s204 + $0x20] sm:$0xff] %v5777
        %5814 = vst [vmem:[%s204 + $0x28] sm:$0xff] %v5778
        %5815 = vst [vmem:[%s204 + $0x30] sm:$0xff] %v5779
        %5816 = vst [vmem:[%s204 + $0x38] sm:$0xff] %v5780
        %5817 = vst [vmem:[%s204 + $0x40] sm:$0xff] %v5781
        %5818 = vst [vmem:[%s204 + $0x48] sm:$0xff] %v5782
        %5819 = vst [vmem:[%s204 + $0x50] sm:$0xff] %v5783
        %5820 = vst [vmem:[%s204 + $0x58] sm:$0xff] %v5784
        %5821 = vst [vmem:[%s204 + $0x60] sm:$0xff] %v5785
        %5822 = vst [vmem:[%s204 + $0x68] sm:$0xff] %v5786
        %5823 = vst [vmem:[%s204 + $0x70] sm:$0xff] %v5787
        %5824 = vst [vmem:[%s204 + $0x78] sm:$0xff] %v5788
        %5825 = vst [vmem:[%s204 + $0x80] sm:$0xff] %v5789
        %5826 = vst [vmem:[%s204 + $0x88] sm:$0xff] %v5790
        %5827 = vst [vmem:[%s204 + $0x90] sm:$0xff] %v5791
        %5828 = vst [vmem:[%s204 + $0x98] sm:$0xff] %v5792
        %5829 = vst [vmem:[%s204 + $0xa0] sm:$0xff] %v5793
        %5830 = vst [vmem:[%s204 + $0xa8] sm:$0xff] %v5794
        %5831 = vst [vmem:[%s204 + $0xb0] sm:$0xff] %v5795
        %5832 = vst [vmem:[%s204 + $0xb8] sm:$0xff] %v5796
        %5833 = vst [vmem:[%s204 + $0xc0] sm:$0xff] %v5797
        %5834 = vst [vmem:[%s204 + $0xc8] sm:$0xff] %v5798
        %5835 = vst [vmem:[%s204 + $0xd0] sm:$0xff] %v5799
        %5836 = vst [vmem:[%s204 + $0xd8] sm:$0xff] %v5800
        %5837 = vst [vmem:[%s204 + $0xe0] sm:$0xff] %v5801
        %5838 = vst [vmem:[%s204 + $0xe8] sm:$0xff] %v5802
        %5839 = vst [vmem:[%s204 + $0xf0] sm:$0xff] %v5803
        %5840 = vst [vmem:[%s204 + $0xf8] sm:$0xff] %v5804
        %5841 = vst [vmem:[%s204 + $0x100] sm:$0xff] %v5805
        %5842 = vst [vmem:[%s204 + $0x108] sm:$0xff] %v5806
        %5843 = vst [vmem:[%s204 + $0x110] sm:$0xff] %v5807
        %5844 = vst [vmem:[%s204 + $0x118] sm:$0xff] %v5808
        %s5845 = sand.u32 %s129, 1
        %s5846 = scalar_lea.sflag [#allocation3], %s5845
        %s5847 = sand.u32 %s129, 1
        %s5848 = smul.addr %s5847, 288
        %s5849 = scalar_lea.vmem [#allocation2], %s5848
        // Predicated region
        $region37: #{tpu_custom_call.1} parent=35 // pred_check
          %p5850 = pneg %p139
        $region38: #{tpu_custom_call.1} parent=35 // pred_check_branch
          %5852 = sbr.rel (%p5850) target = $region40
        $region39: #{tpu_custom_call.1} parent=35 // pred_region
          %s5854 = ssub.s32 4608, 4608
          %5855 = vsyncadd %s5846, %s5854
          %s5856 = smul.addr %s22, 72
          %s5857 = sadd.s32 %s23, %s5856
          %s5858 = smul.addr %s5857, 128
          %s5859 = scalar_lea.hbm %s4, %s5858
          %s5860 = sshll.u32 %s5849, 4
          %s5861 = int_to_ptr.vmem [resolvable:$true] %s5860
          %5866 = dma.vmem_to_hbm [thread:$0]  %s5861, 4608, %s5859, %s5846, 128, 256, 8
        $region40: #{tpu_custom_call.1} parent=35 // pred_fallthru
          _
      $region36: #{tpu_custom_call.1} parent=5 // pred_fallthru
        _
      %p5867 = scmp.le.s32.totalorder 2, %s13
      // Predicated region
      $region41: #{tpu_custom_call.1} parent=5 // pred_check
        %p5868 = pneg %p5867
      $region42: #{tpu_custom_call.1} parent=5 // pred_check_branch
        %5870 = sbr.rel (%p5868) target = $region44
      $region43: #{tpu_custom_call.1} parent=5 // pred_region
        %s5871 = ssub.s32 %s13, 2
        // Predicated region
        $region45: #{tpu_custom_call.1} parent=43 // pred_check
          %p5872 = pneg %p145
        $region46: #{tpu_custom_call.1} parent=43 // pred_check_branch
          %5874 = sbr.rel (%p5872) target = $region48
        $region47: #{tpu_custom_call.1} parent=43 // pred_region
          %s5875 = sand.u32 %s130, 1
          %s5876 = scalar_lea.sflag [#allocation3], %s5875
          %s5877 = sand.u32 %s130, 1
          %s5878 = smul.addr %s5877, 288
          %s5879 = scalar_lea.vmem [#allocation2], %s5878
          %5880 = dma.done %s5876, 4608
        $region48: #{tpu_custom_call.1} parent=43 // pred_fallthru
          _
      $region44: #{tpu_custom_call.1} parent=5 // pred_fallthru
        _
    $region6: #{tpu_custom_call.1} parent=1 // loop_footer
      %s17 = sadd.s32 1, %s13
    $region7: #{tpu_custom_call.1} parent=1 // loop_footer_branch
      %12 = sbr.rel target = $region3
    $region8: #{tpu_custom_call.1} parent=1 // loop_exit
      _
    %5881 = vsyncpa [#allocation3], 1
    %s5882 = scalar_lea.sflag [#allocation3], 1
    %5883 = vsyncpa %s5882, 1

</llo_original>
